<compile_context>
chip_gen: v6e
topology: v6e:2x2x1
jax: 0.10.0
libtpu: 0.0.40
codegen_flags: <defaults>
</compile_context>

<pallas_src>
import math
import numpy as np
import jax
import jax.numpy as jnp
from jax import lax
from jax.experimental import pallas as pl
from jax.experimental.pallas import tpu as pltpu

# ---- hyperparameters from backtest.py ----
D_MODEL = 128
NHEAD = 8
NUM_LAYERS = 4
DIM_FEEDFORWARD = 512
NUM_CLASSES = 3
HEAD_DIM = D_MODEL // NHEAD
LN_EPS = 1e-5
PE_MAX_LEN = 5000


# ---------- math helpers (array -> array, shared by kernel and pure-JAX reference) ----------
def _layernorm(x, g, b):
    mu = jnp.mean(x, axis=-1, keepdims=True)
    var = jnp.mean((x - mu) ** 2, axis=-1, keepdims=True)
    return (x - mu) * jax.lax.rsqrt(var + LN_EPS) * g + b


def _erf(x):
    # Abramowitz & Stegun 7.1.26 polynomial (|err| < 1.5e-7); only exp/mul/add/where,
    # so it lowers cleanly in Mosaic.  Used to get erf-based (exact) GELU like nn.GELU().
    a1, a2, a3, a4, a5 = 0.254829592, -0.284496736, 1.421413741, -1.453152027, 1.061405429
    p = 0.3275911
    ax = jnp.abs(x)
    t = 1.0 / (1.0 + p * ax)
    poly = ((((a5 * t + a4) * t + a3) * t + a2) * t + a1) * t
    y = 1.0 - poly * jnp.exp(-ax * ax)
    return jnp.where(x >= 0, y, -y)


def _gelu(x):
    return 0.5 * x * (1.0 + _erf(x * 0.7071067811865476))


# ---------- the Pallas kernel (one batch element per grid step) ----------
def _kernel(x_ref, pe_ref,
            inp_w, inp_b, inp_g, inp_bt,
            gc_w, gc_b, gc_g, gc_bt,
            pe_w, pe_b, pe_g, pe_bt,
            qkv_w, qkv_b, ao_w, ao_b,
            ln1_g, ln1_b, ff_w1, ff_b1, ff_w2, ff_b2, ln2_g, ln2_b,
            c_w1, c_b1, c_g1, c_bt1,
            c_w2, c_b2, c_g2, c_bt2,
            c_w3, c_b3,
            out_ref):
    D = D_MODEL
    H = NHEAD
    DH = HEAD_DIM
    scale = 1.0 / math.sqrt(DH)
    f32 = jnp.float32

    x = x_ref[0]                                                      # (S, Din)

    # input_proj + input_norm
    h = jnp.dot(x, inp_w[...], preferred_element_type=f32) + inp_b[...]
    h = _layernorm(h, inp_g[...], inp_bt[...])

    # global context: mean over seq -> Linear -> LN -> ReLU, added with 0.1 scale
    gf = jnp.mean(h, axis=0, keepdims=True)                           # (1, D)
    gf = jnp.dot(gf, gc_w[...], preferred_element_type=f32) + gc_b[...]
    gf = jnp.maximum(_layernorm(gf, gc_g[...], gc_bt[...]), 0.0)
    h = h + 0.1 * gf                                                  # broadcast over S

    # positional encoding + time-aware projection (Linear -> LN -> GELU); dropout = id
    h = h + pe_ref[...]
    h = jnp.dot(h, pe_w[...], preferred_element_type=f32) + pe_b[...]
    h = _gelu(_layernorm(h, pe_g[...], pe_bt[...]))

    # transformer encoder: NUM_LAYERS post-norm layers, ReLU FFN, head-batched attention
    def layer(l, h):
        qkv = jnp.dot(h, qkv_w[l], preferred_element_type=f32) + qkv_b[l]   # (S, 3D)
        q = qkv[:, 0:D] * scale
        k = qkv[:, D:2 * D]
        v = qkv[:, 2 * D:3 * D]
        # split heads once (static lane slices + stack), heads become the batch axis
        qh = jnp.stack([q[:, i * DH:(i + 1) * DH] for i in range(H)], axis=0)  # (H,S,DH)
        kh = jnp.stack([k[:, i * DH:(i + 1) * DH] for i in range(H)], axis=0)
        vh = jnp.stack([v[:, i * DH:(i + 1) * DH] for i in range(H)], axis=0)
        sc = jnp.einsum('hqd,hkd->hqk', qh, kh,
                        preferred_element_type=f32)                    # (H, S, S)
        sc = sc - jnp.max(sc, axis=-1, keepdims=True)
        p = jnp.exp(sc)
        p = p / jnp.sum(p, axis=-1, keepdims=True)
        o = jnp.einsum('hqk,hkd->hqd', p, vh,
                       preferred_element_type=f32)                     # (H, S, DH)
        attn = jnp.concatenate([o[i] for i in range(H)], axis=-1)      # lane-dense (S, D)
        attn = jnp.dot(attn, ao_w[l], preferred_element_type=f32) + ao_b[l]
        h = _layernorm(h + attn, ln1_g[l], ln1_b[l])
        ff = jnp.maximum(
            jnp.dot(h, ff_w1[l], preferred_element_type=f32) + ff_b1[l], 0.0)
        ff = jnp.dot(ff, ff_w2[l], preferred_element_type=f32) + ff_b2[l]
        return _layernorm(h + ff, ln2_g[l], ln2_b[l])

    h = lax.fori_loop(0, NUM_LAYERS, layer, h)

    # pooling: mean over seq + 0.5 * last step
    z = jnp.mean(h, axis=0, keepdims=True) + 0.5 * h[-1:, :]           # (1, D)

    # classifier head (dropouts = identity in eval)
    z = jnp.dot(z, c_w1[...], preferred_element_type=f32) + c_b1[...]
    z = jnp.maximum(_layernorm(z, c_g1[...], c_bt1[...]), 0.0)
    z = jnp.dot(z, c_w2[...], preferred_element_type=f32) + c_b2[...]
    z = jnp.maximum(_layernorm(z, c_g2[...], c_bt2[...]), 0.0)
    out_ref[0] = jnp.dot(z, c_w3[...], preferred_element_type=f32) + c_b3[...]


# ---------- parameter construction (deterministic, in-script) ----------
def sinusoidal_pe(max_len, d_model):
    pos = np.arange(max_len, dtype=np.float32)[:, None]
    div = np.exp(np.arange(0, d_model, 2, dtype=np.float32) * (-np.log(10000.0) / d_model))
    pe = np.zeros((max_len, d_model), dtype=np.float32)
    pe[:, 0::2] = np.sin(pos * div)
    pe[:, 1::2] = np.cos(pos * div)
    return jnp.asarray(pe)


def init_params(key, input_dim):
    D, F, L = D_MODEL, DIM_FEEDFORWARD, NUM_LAYERS
    keys = iter(jax.random.split(key, 64))

    def xavier(shape):
        fan_in, fan_out = shape[-2], shape[-1]
        a = math.sqrt(6.0 / (fan_in + fan_out))
        return jax.random.uniform(next(keys), shape, jnp.float32, -a, a)

    zeros = lambda *s: jnp.zeros(s, jnp.float32)
    ones = lambda *s: jnp.ones(s, jnp.float32)

    p = {}
    p["pe"] = sinusoidal_pe(PE_MAX_LEN, D)                      # learnable pe, sinusoid init
    p["inp_w"], p["inp_b"] = xavier((input_dim, D)), zeros(1, D)
    p["inp_g"], p["inp_bt"] = ones(1, D), zeros(1, D)
    p["gc_w"], p["gc_b"] = xavier((D, D)), zeros(1, D)
    p["gc_g"], p["gc_bt"] = ones(1, D), zeros(1, D)
    p["pe_w"], p["pe_b"] = xavier((D, D)), zeros(1, D)
    p["pe_g"], p["pe_bt"] = ones(1, D), zeros(1, D)
    p["qkv_w"] = jnp.stack([xavier((D, 3 * D)) for _ in range(L)])
    p["qkv_b"] = zeros(L, 1, 3 * D)
    p["ao_w"] = jnp.stack([xavier((D, D)) for _ in range(L)])
    p["ao_b"] = zeros(L, 1, D)
    p["ln1_g"], p["ln1_b"] = ones(L, 1, D), zeros(L, 1, D)
    p["ff_w1"] = jnp.stack([xavier((D, F)) for _ in range(L)])
    p["ff_b1"] = zeros(L, 1, F)
    p["ff_w2"] = jnp.stack([xavier((F, D)) for _ in range(L)])
    p["ff_b2"] = zeros(L, 1, D)
    p["ln2_g"], p["ln2_b"] = ones(L, 1, D), zeros(L, 1, D)
    p["c_w1"], p["c_b1"] = xavier((D, 2 * D)), zeros(1, 2 * D)
    p["c_g1"], p["c_bt1"] = ones(1, 2 * D), zeros(1, 2 * D)
    p["c_w2"], p["c_b2"] = xavier((2 * D, D)), zeros(1, D)
    p["c_g2"], p["c_bt2"] = ones(1, D), zeros(1, D)
    p["c_w3"], p["c_b3"] = xavier((D, NUM_CLASSES)), zeros(1, NUM_CLASSES)
    return p


# ---------- wrapper that calls pallas_call ----------
def transformer_forward(x, params):
    B, S, Din = x.shape
    x = x.astype(jnp.float32)
    pe = params["pe"][:S]                                       # (S, D) — no host-side tiling

    weight_args = (
        params["inp_w"], params["inp_b"], params["inp_g"], params["inp_bt"],
        params["gc_w"], params["gc_b"], params["gc_g"], params["gc_bt"],
        params["pe_w"], params["pe_b"], params["pe_g"], params["pe_bt"],
        params["qkv_w"], params["qkv_b"], params["ao_w"], params["ao_b"],
        params["ln1_g"], params["ln1_b"], params["ff_w1"], params["ff_b1"],
        params["ff_w2"], params["ff_b2"], params["ln2_g"], params["ln2_b"],
        params["c_w1"], params["c_b1"], params["c_g1"], params["c_bt1"],
        params["c_w2"], params["c_b2"], params["c_g2"], params["c_bt2"],
        params["c_w3"], params["c_b3"])

    def const_spec(a):
        nd = a.ndim
        return pl.BlockSpec(a.shape, lambda b, _nd=nd: (0,) * _nd)   # resident across grid

    in_specs = ([pl.BlockSpec((1, S, Din), lambda b: (b, 0, 0)),      # per-batch activations
                 pl.BlockSpec((S, D_MODEL), lambda b: (0, 0))]        # positional encoding
                + [const_spec(a) for a in weight_args])

    out = pl.pallas_call(
        _kernel,
        grid=(B,),
        out_shape=jax.ShapeDtypeStruct((B, 1, NUM_CLASSES), jnp.float32),
        in_specs=in_specs,
        out_specs=pl.BlockSpec((1, 1, NUM_CLASSES), lambda b: (b, 0, 0)),
        compiler_params=pltpu.CompilerParams(
            dimension_semantics=("parallel",),        # 2-TC batch sharding on v7x
            vmem_limit_bytes=32 * 1024 * 1024),       # safe on v5e/v6e/v7x (64 MiB physical)
    )(x, pe, *weight_args)
    return out.reshape(B, NUM_CLASSES)


# ---------- pure-JAX reference (mirrors the PyTorch eval-mode forward) ----------
def reference_forward(x, params):
    B, S, _ = x.shape
    h = x @ params["inp_w"] + params["inp_b"]
    h = _layernorm(h, params["inp_g"], params["inp_bt"])
    gf = jnp.mean(h, axis=1, keepdims=True)
    gf = gf @ params["gc_w"] + params["gc_b"]
    gf = jnp.maximum(_layernorm(gf, params["gc_g"], params["gc_bt"]), 0.0)
    h = h + 0.1 * gf
    h = h + params["pe"][None, :S]
    h = h @ params["pe_w"] + params["pe_b"]
    h = _gelu(_layernorm(h, params["pe_g"], params["pe_bt"]))
    for l in range(NUM_LAYERS):
        qkv = h @ params["qkv_w"][l] + params["qkv_b"][l]
        q, k, v = jnp.split(qkv, 3, axis=-1)
        heads = lambda t: t.reshape(B, S, NHEAD, HEAD_DIM).transpose(0, 2, 1, 3)
        qh, kh, vh = heads(q), heads(k), heads(v)
        sc = (qh / math.sqrt(HEAD_DIM)) @ kh.transpose(0, 1, 3, 2)
        o = (jax.nn.softmax(sc, axis=-1) @ vh).transpose(0, 2, 1, 3).reshape(B, S, D_MODEL)
        attn = o @ params["ao_w"][l] + params["ao_b"][l]
        h = _layernorm(h + attn, params["ln1_g"][l], params["ln1_b"][l])
        ff = jnp.maximum(h @ params["ff_w1"][l] + params["ff_b1"][l], 0.0)
        ff = ff @ params["ff_w2"][l] + params["ff_b2"][l]
        h = _layernorm(h + ff, params["ln2_g"][l], params["ln2_b"][l])
    z = jnp.mean(h, axis=1) + 0.5 * h[:, -1, :]
    z = z @ params["c_w1"] + params["c_b1"]
    z = jnp.maximum(_layernorm(z, params["c_g1"], params["c_bt1"]), 0.0)
    z = z @ params["c_w2"] + params["c_b2"]
    z = jnp.maximum(_layernorm(z, params["c_g2"], params["c_bt2"]), 0.0)
    return z @ params["c_w3"] + params["c_b3"]


if __name__ == "__main__":
    B, S, INPUT_DIM = 2, 8, 16
    kx, kp = jax.random.split(jax.random.PRNGKey(0))
    x = jax.random.normal(kx, (B, S, INPUT_DIM), jnp.float32)
    params = init_params(kp, INPUT_DIM)

    out = jax.block_until_ready(transformer_forward(x, params))
    ref = reference_forward(x, params)

    assert out.shape == (B, NUM_CLASSES)
    assert bool(jnp.allclose(out, ref, atol=1e-3, rtol=1e-3)), (out, ref)
    print("KERNEL_OK")
</pallas_src>

<mosaic_0001>
module attributes {stable_mosaic.version = 11 : i64} {
  func.func @_kernel(%arg0: i32, %arg1: memref<1x8x16xf32, #tpu.memory_space<vmem>>, %arg2: memref<8x128xf32, #tpu.memory_space<vmem>>, %arg3: memref<16x128xf32, #tpu.memory_space<vmem>>, %arg4: memref<1x128xf32, #tpu.memory_space<vmem>>, %arg5: memref<1x128xf32, #tpu.memory_space<vmem>>, %arg6: memref<1x128xf32, #tpu.memory_space<vmem>>, %arg7: memref<128x128xf32, #tpu.memory_space<vmem>>, %arg8: memref<1x128xf32, #tpu.memory_space<vmem>>, %arg9: memref<1x128xf32, #tpu.memory_space<vmem>>, %arg10: memref<1x128xf32, #tpu.memory_space<vmem>>, %arg11: memref<128x128xf32, #tpu.memory_space<vmem>>, %arg12: memref<1x128xf32, #tpu.memory_space<vmem>>, %arg13: memref<1x128xf32, #tpu.memory_space<vmem>>, %arg14: memref<1x128xf32, #tpu.memory_space<vmem>>, %arg15: memref<4x128x384xf32, #tpu.memory_space<vmem>>, %arg16: memref<4x1x384xf32, #tpu.memory_space<vmem>>, %arg17: memref<4x128x128xf32, #tpu.memory_space<vmem>>, %arg18: memref<4x1x128xf32, #tpu.memory_space<vmem>>, %arg19: memref<4x1x128xf32, #tpu.memory_space<vmem>>, %arg20: memref<4x1x128xf32, #tpu.memory_space<vmem>>, %arg21: memref<4x128x512xf32, #tpu.memory_space<vmem>>, %arg22: memref<4x1x512xf32, #tpu.memory_space<vmem>>, %arg23: memref<4x512x128xf32, #tpu.memory_space<vmem>>, %arg24: memref<4x1x128xf32, #tpu.memory_space<vmem>>, %arg25: memref<4x1x128xf32, #tpu.memory_space<vmem>>, %arg26: memref<4x1x128xf32, #tpu.memory_space<vmem>>, %arg27: memref<128x256xf32, #tpu.memory_space<vmem>>, %arg28: memref<1x256xf32, #tpu.memory_space<vmem>>, %arg29: memref<1x256xf32, #tpu.memory_space<vmem>>, %arg30: memref<1x256xf32, #tpu.memory_space<vmem>>, %arg31: memref<256x128xf32, #tpu.memory_space<vmem>>, %arg32: memref<1x128xf32, #tpu.memory_space<vmem>>, %arg33: memref<1x128xf32, #tpu.memory_space<vmem>>, %arg34: memref<1x128xf32, #tpu.memory_space<vmem>>, %arg35: memref<128x3xf32, #tpu.memory_space<vmem>>, %arg36: memref<1x3xf32, #tpu.memory_space<vmem>>, %arg37: memref<1x1x3xf32, #tpu.memory_space<vmem>>) attributes {dimension_semantics = [#tpu.dimension_semantics<parallel>], iteration_bounds = array<i64: 2>, scalar_prefetch = 0 : i64, scratch_operands = 0 : i64, tpu.core_type = #tpu.core_type<tc>, window_params = [{transform_indices = @transform_0, window_bounds = array<i64: 1, 8, 16>}, {pipeline_mode = #tpu.pipeline_mode<synchronous>, transform_indices = @transform_1, window_bounds = array<i64: 8, 128>}, {pipeline_mode = #tpu.pipeline_mode<synchronous>, transform_indices = @transform_2, window_bounds = array<i64: 16, 128>}, {pipeline_mode = #tpu.pipeline_mode<synchronous>, transform_indices = @transform_3, window_bounds = array<i64: 1, 128>}, {pipeline_mode = #tpu.pipeline_mode<synchronous>, transform_indices = @transform_4, window_bounds = array<i64: 1, 128>}, {pipeline_mode = #tpu.pipeline_mode<synchronous>, transform_indices = @transform_5, window_bounds = array<i64: 1, 128>}, {pipeline_mode = #tpu.pipeline_mode<synchronous>, transform_indices = @transform_6, window_bounds = array<i64: 128, 128>}, {pipeline_mode = #tpu.pipeline_mode<synchronous>, transform_indices = @transform_7, window_bounds = array<i64: 1, 128>}, {pipeline_mode = #tpu.pipeline_mode<synchronous>, transform_indices = @transform_8, window_bounds = array<i64: 1, 128>}, {pipeline_mode = #tpu.pipeline_mode<synchronous>, transform_indices = @transform_9, window_bounds = array<i64: 1, 128>}, {pipeline_mode = #tpu.pipeline_mode<synchronous>, transform_indices = @transform_10, window_bounds = array<i64: 128, 128>}, {pipeline_mode = #tpu.pipeline_mode<synchronous>, transform_indices = @transform_11, window_bounds = array<i64: 1, 128>}, {pipeline_mode = #tpu.pipeline_mode<synchronous>, transform_indices = @transform_12, window_bounds = array<i64: 1, 128>}, {pipeline_mode = #tpu.pipeline_mode<synchronous>, transform_indices = @transform_13, window_bounds = array<i64: 1, 128>}, {pipeline_mode = #tpu.pipeline_mode<synchronous>, transform_indices = @transform_14, window_bounds = array<i64: 4, 128, 384>}, {pipeline_mode = #tpu.pipeline_mode<synchronous>, transform_indices = @transform_15, window_bounds = array<i64: 4, 1, 384>}, {pipeline_mode = #tpu.pipeline_mode<synchronous>, transform_indices = @transform_16, window_bounds = array<i64: 4, 128, 128>}, {pipeline_mode = #tpu.pipeline_mode<synchronous>, transform_indices = @transform_17, window_bounds = array<i64: 4, 1, 128>}, {pipeline_mode = #tpu.pipeline_mode<synchronous>, transform_indices = @transform_18, window_bounds = array<i64: 4, 1, 128>}, {pipeline_mode = #tpu.pipeline_mode<synchronous>, transform_indices = @transform_19, window_bounds = array<i64: 4, 1, 128>}, {pipeline_mode = #tpu.pipeline_mode<synchronous>, transform_indices = @transform_20, window_bounds = array<i64: 4, 128, 512>}, {pipeline_mode = #tpu.pipeline_mode<synchronous>, transform_indices = @transform_21, window_bounds = array<i64: 4, 1, 512>}, {pipeline_mode = #tpu.pipeline_mode<synchronous>, transform_indices = @transform_22, window_bounds = array<i64: 4, 512, 128>}, {pipeline_mode = #tpu.pipeline_mode<synchronous>, transform_indices = @transform_23, window_bounds = array<i64: 4, 1, 128>}, {pipeline_mode = #tpu.pipeline_mode<synchronous>, transform_indices = @transform_24, window_bounds = array<i64: 4, 1, 128>}, {pipeline_mode = #tpu.pipeline_mode<synchronous>, transform_indices = @transform_25, window_bounds = array<i64: 4, 1, 128>}, {pipeline_mode = #tpu.pipeline_mode<synchronous>, transform_indices = @transform_26, window_bounds = array<i64: 128, 256>}, {pipeline_mode = #tpu.pipeline_mode<synchronous>, transform_indices = @transform_27, window_bounds = array<i64: 1, 256>}, {pipeline_mode = #tpu.pipeline_mode<synchronous>, transform_indices = @transform_28, window_bounds = array<i64: 1, 256>}, {pipeline_mode = #tpu.pipeline_mode<synchronous>, transform_indices = @transform_29, window_bounds = array<i64: 1, 256>}, {pipeline_mode = #tpu.pipeline_mode<synchronous>, transform_indices = @transform_30, window_bounds = array<i64: 256, 128>}, {pipeline_mode = #tpu.pipeline_mode<synchronous>, transform_indices = @transform_31, window_bounds = array<i64: 1, 128>}, {pipeline_mode = #tpu.pipeline_mode<synchronous>, transform_indices = @transform_32, window_bounds = array<i64: 1, 128>}, {pipeline_mode = #tpu.pipeline_mode<synchronous>, transform_indices = @transform_33, window_bounds = array<i64: 1, 128>}, {pipeline_mode = #tpu.pipeline_mode<synchronous>, transform_indices = @transform_34, window_bounds = array<i64: 128, 3>}, {pipeline_mode = #tpu.pipeline_mode<synchronous>, transform_indices = @transform_35, window_bounds = array<i64: 1, 3>}, {transform_indices = @transform_36, window_bounds = array<i64: 1, 1, 3>}]} {
    %c0 = arith.constant 0 : index
    %c0_0 = arith.constant 0 : index
    %c0_1 = arith.constant 0 : index
    %0 = vector.load %arg1[%c0, %c0_0, %c0_1] : memref<1x8x16xf32, #tpu.memory_space<vmem>>, vector<1x8x16xf32>
    %1 = vector.shape_cast %0 : vector<1x8x16xf32> to vector<8x16xf32>
    %c0_2 = arith.constant 0 : index
    %c0_3 = arith.constant 0 : index
    %2 = vector.load %arg3[%c0_2, %c0_3] : memref<16x128xf32, #tpu.memory_space<vmem>>, vector<16x128xf32>
    %cst = arith.constant dense<0.000000e+00> : vector<8x128xf32>
    %3 = tpu.matmul %1, %2, %cst {dimension_numbers = #tpu.dot_dimension_numbers<[1], [0], [0], [1], [0, 0, 1, 1], [], []>} : vector<8x16xf32>, vector<16x128xf32>, vector<8x128xf32> -> vector<8x128xf32>
    %c0_4 = arith.constant 0 : index
    %c0_5 = arith.constant 0 : index
    %4 = vector.load %arg4[%c0_4, %c0_5] : memref<1x128xf32, #tpu.memory_space<vmem>>, vector<1x128xf32>
    %5 = vector.broadcast %4 : vector<1x128xf32> to vector<8x128xf32>
    %6 = arith.addf %3, %5 : vector<8x128xf32>
    %c0_6 = arith.constant 0 : index
    %c0_7 = arith.constant 0 : index
    %7 = vector.load %arg5[%c0_6, %c0_7] : memref<1x128xf32, #tpu.memory_space<vmem>>, vector<1x128xf32>
    %c0_8 = arith.constant 0 : index
    %c0_9 = arith.constant 0 : index
    %8 = vector.load %arg6[%c0_8, %c0_9] : memref<1x128xf32, #tpu.memory_space<vmem>>, vector<1x128xf32>
    %cst_10 = arith.constant dense<0.000000e+00> : vector<8xf32>
    %9 = vector.multi_reduction <add>, %6, %cst_10 [1] : vector<8x128xf32> to vector<8xf32>
    %10 = vector.shape_cast %9 : vector<8xf32> to vector<8x1xf32>
    %cst_11 = arith.constant 1.280000e+02 : f32
    %11 = vector.broadcast %cst_11 : f32 to vector<8x1xf32>
    %12 = arith.divf %10, %11 : vector<8x1xf32>
    %13 = vector.broadcast %12 : vector<8x1xf32> to vector<8x128xf32>
    %14 = arith.subf %6, %13 : vector<8x128xf32>
    %15 = arith.mulf %14, %14 : vector<8x128xf32>
    %cst_12 = arith.constant dense<0.000000e+00> : vector<8xf32>
    %16 = vector.multi_reduction <add>, %15, %cst_12 [1] : vector<8x128xf32> to vector<8xf32>
    %17 = vector.shape_cast %16 : vector<8xf32> to vector<8x1xf32>
    %cst_13 = arith.constant 1.280000e+02 : f32
    %18 = vector.broadcast %cst_13 : f32 to vector<8x1xf32>
    %19 = arith.divf %17, %18 : vector<8x1xf32>
    %20 = vector.broadcast %12 : vector<8x1xf32> to vector<8x128xf32>
    %21 = arith.subf %6, %20 : vector<8x128xf32>
    %cst_14 = arith.constant 9.99999974E-6 : f32
    %22 = vector.broadcast %cst_14 : f32 to vector<8x1xf32>
    %23 = arith.addf %19, %22 : vector<8x1xf32>
    %24 = math.rsqrt %23 : vector<8x1xf32>
    %25 = vector.broadcast %24 : vector<8x1xf32> to vector<8x128xf32>
    %26 = arith.mulf %21, %25 : vector<8x128xf32>
    %27 = vector.broadcast %7 : vector<1x128xf32> to vector<8x128xf32>
    %28 = arith.mulf %26, %27 : vector<8x128xf32>
    %29 = vector.broadcast %8 : vector<1x128xf32> to vector<8x128xf32>
    %30 = arith.addf %28, %29 : vector<8x128xf32>
    %cst_15 = arith.constant dense<0.000000e+00> : vector<128xf32>
    %31 = vector.multi_reduction <add>, %30, %cst_15 [0] : vector<8x128xf32> to vector<128xf32>
    %32 = vector.shape_cast %31 : vector<128xf32> to vector<1x128xf32>
    %cst_16 = arith.constant 8.000000e+00 : f32
    %33 = vector.broadcast %cst_16 : f32 to vector<1x128xf32>
    %34 = arith.divf %32, %33 : vector<1x128xf32>
    %c0_17 = arith.constant 0 : index
    %c0_18 = arith.constant 0 : index
    %35 = vector.load %arg7[%c0_17, %c0_18] : memref<128x128xf32, #tpu.memory_space<vmem>>, vector<128x128xf32>
    %cst_19 = arith.constant dense<0.000000e+00> : vector<1x128xf32>
    %36 = tpu.matmul %34, %35, %cst_19 {dimension_numbers = #tpu.dot_dimension_numbers<[1], [0], [0], [1], [0, 0, 1, 1], [], []>} : vector<1x128xf32>, vector<128x128xf32>, vector<1x128xf32> -> vector<1x128xf32>
    %c0_20 = arith.constant 0 : index
    %c0_21 = arith.constant 0 : index
    %37 = vector.load %arg8[%c0_20, %c0_21] : memref<1x128xf32, #tpu.memory_space<vmem>>, vector<1x128xf32>
    %38 = arith.addf %36, %37 : vector<1x128xf32>
    %c0_22 = arith.constant 0 : index
    %c0_23 = arith.constant 0 : index
    %39 = vector.load %arg9[%c0_22, %c0_23] : memref<1x128xf32, #tpu.memory_space<vmem>>, vector<1x128xf32>
    %c0_24 = arith.constant 0 : index
    %c0_25 = arith.constant 0 : index
    %40 = vector.load %arg10[%c0_24, %c0_25] : memref<1x128xf32, #tpu.memory_space<vmem>>, vector<1x128xf32>
    %cst_26 = arith.constant dense<0.000000e+00> : vector<1xf32>
    %41 = vector.multi_reduction <add>, %38, %cst_26 [1] : vector<1x128xf32> to vector<1xf32>
    %42 = vector.shape_cast %41 : vector<1xf32> to vector<1x1xf32>
    %cst_27 = arith.constant 1.280000e+02 : f32
    %43 = vector.broadcast %cst_27 : f32 to vector<1x1xf32>
    %44 = arith.divf %42, %43 : vector<1x1xf32>
    %45 = vector.broadcast %44 : vector<1x1xf32> to vector<1x128xf32>
    %46 = arith.subf %38, %45 : vector<1x128xf32>
    %47 = arith.mulf %46, %46 : vector<1x128xf32>
    %cst_28 = arith.constant dense<0.000000e+00> : vector<1xf32>
    %48 = vector.multi_reduction <add>, %47, %cst_28 [1] : vector<1x128xf32> to vector<1xf32>
    %49 = vector.shape_cast %48 : vector<1xf32> to vector<1x1xf32>
    %cst_29 = arith.constant 1.280000e+02 : f32
    %50 = vector.broadcast %cst_29 : f32 to vector<1x1xf32>
    %51 = arith.divf %49, %50 : vector<1x1xf32>
    %52 = vector.broadcast %44 : vector<1x1xf32> to vector<1x128xf32>
    %53 = arith.subf %38, %52 : vector<1x128xf32>
    %cst_30 = arith.constant 9.99999974E-6 : f32
    %54 = vector.broadcast %cst_30 : f32 to vector<1x1xf32>
    %55 = arith.addf %51, %54 : vector<1x1xf32>
    %56 = math.rsqrt %55 : vector<1x1xf32>
    %57 = vector.broadcast %56 : vector<1x1xf32> to vector<1x128xf32>
    %58 = arith.mulf %53, %57 : vector<1x128xf32>
    %59 = arith.mulf %58, %39 : vector<1x128xf32>
    %60 = arith.addf %59, %40 : vector<1x128xf32>
    %cst_31 = arith.constant 0.000000e+00 : f32
    %61 = vector.broadcast %cst_31 : f32 to vector<1x128xf32>
    %62 = arith.maximumf %60, %61 : vector<1x128xf32>
    %cst_32 = arith.constant 1.000000e-01 : f32
    %63 = vector.broadcast %cst_32 : f32 to vector<1x128xf32>
    %64 = arith.mulf %63, %62 : vector<1x128xf32>
    %65 = vector.broadcast %64 : vector<1x128xf32> to vector<8x128xf32>
    %66 = arith.addf %30, %65 : vector<8x128xf32>
    %c0_33 = arith.constant 0 : index
    %c0_34 = arith.constant 0 : index
    %67 = vector.load %arg2[%c0_33, %c0_34] : memref<8x128xf32, #tpu.memory_space<vmem>>, vector<8x128xf32>
    %68 = arith.addf %66, %67 : vector<8x128xf32>
    %c0_35 = arith.constant 0 : index
    %c0_36 = arith.constant 0 : index
    %69 = vector.load %arg11[%c0_35, %c0_36] : memref<128x128xf32, #tpu.memory_space<vmem>>, vector<128x128xf32>
    %cst_37 = arith.constant dense<0.000000e+00> : vector<8x128xf32>
    %70 = tpu.matmul %68, %69, %cst_37 {dimension_numbers = #tpu.dot_dimension_numbers<[1], [0], [0], [1], [0, 0, 1, 1], [], []>} : vector<8x128xf32>, vector<128x128xf32>, vector<8x128xf32> -> vector<8x128xf32>
    %c0_38 = arith.constant 0 : index
    %c0_39 = arith.constant 0 : index
    %71 = vector.load %arg12[%c0_38, %c0_39] : memref<1x128xf32, #tpu.memory_space<vmem>>, vector<1x128xf32>
    %72 = vector.broadcast %71 : vector<1x128xf32> to vector<8x128xf32>
    %73 = arith.addf %70, %72 : vector<8x128xf32>
    %c0_40 = arith.constant 0 : index
    %c0_41 = arith.constant 0 : index
    %74 = vector.load %arg13[%c0_40, %c0_41] : memref<1x128xf32, #tpu.memory_space<vmem>>, vector<1x128xf32>
    %c0_42 = arith.constant 0 : index
    %c0_43 = arith.constant 0 : index
    %75 = vector.load %arg14[%c0_42, %c0_43] : memref<1x128xf32, #tpu.memory_space<vmem>>, vector<1x128xf32>
    %cst_44 = arith.constant dense<0.000000e+00> : vector<8xf32>
    %76 = vector.multi_reduction <add>, %73, %cst_44 [1] : vector<8x128xf32> to vector<8xf32>
    %77 = vector.shape_cast %76 : vector<8xf32> to vector<8x1xf32>
    %cst_45 = arith.constant 1.280000e+02 : f32
    %78 = vector.broadcast %cst_45 : f32 to vector<8x1xf32>
    %79 = arith.divf %77, %78 : vector<8x1xf32>
    %80 = vector.broadcast %79 : vector<8x1xf32> to vector<8x128xf32>
    %81 = arith.subf %73, %80 : vector<8x128xf32>
    %82 = arith.mulf %81, %81 : vector<8x128xf32>
    %cst_46 = arith.constant dense<0.000000e+00> : vector<8xf32>
    %83 = vector.multi_reduction <add>, %82, %cst_46 [1] : vector<8x128xf32> to vector<8xf32>
    %84 = vector.shape_cast %83 : vector<8xf32> to vector<8x1xf32>
    %cst_47 = arith.constant 1.280000e+02 : f32
    %85 = vector.broadcast %cst_47 : f32 to vector<8x1xf32>
    %86 = arith.divf %84, %85 : vector<8x1xf32>
    %87 = vector.broadcast %79 : vector<8x1xf32> to vector<8x128xf32>
    %88 = arith.subf %73, %87 : vector<8x128xf32>
    %cst_48 = arith.constant 9.99999974E-6 : f32
    %89 = vector.broadcast %cst_48 : f32 to vector<8x1xf32>
    %90 = arith.addf %86, %89 : vector<8x1xf32>
    %91 = math.rsqrt %90 : vector<8x1xf32>
    %92 = vector.broadcast %91 : vector<8x1xf32> to vector<8x128xf32>
    %93 = arith.mulf %88, %92 : vector<8x128xf32>
    %94 = vector.broadcast %74 : vector<1x128xf32> to vector<8x128xf32>
    %95 = arith.mulf %93, %94 : vector<8x128xf32>
    %96 = vector.broadcast %75 : vector<1x128xf32> to vector<8x128xf32>
    %97 = arith.addf %95, %96 : vector<8x128xf32>
    %cst_49 = arith.constant 5.000000e-01 : f32
    %98 = vector.broadcast %cst_49 : f32 to vector<8x128xf32>
    %99 = arith.mulf %98, %97 : vector<8x128xf32>
    %cst_50 = arith.constant 0.707106769 : f32
    %100 = vector.broadcast %cst_50 : f32 to vector<8x128xf32>
    %101 = arith.mulf %97, %100 : vector<8x128xf32>
    %102 = math.absf %101 : vector<8x128xf32>
    %cst_51 = arith.constant 0.327591091 : f32
    %103 = vector.broadcast %cst_51 : f32 to vector<8x128xf32>
    %104 = arith.mulf %103, %102 : vector<8x128xf32>
    %cst_52 = arith.constant 1.000000e+00 : f32
    %105 = vector.broadcast %cst_52 : f32 to vector<8x128xf32>
    %106 = arith.addf %105, %104 : vector<8x128xf32>
    %cst_53 = arith.constant 1.000000e+00 : f32
    %107 = vector.broadcast %cst_53 : f32 to vector<8x128xf32>
    %108 = arith.divf %107, %106 : vector<8x128xf32>
    %cst_54 = arith.constant 1.06140542 : f32
    %109 = vector.broadcast %cst_54 : f32 to vector<8x128xf32>
    %110 = arith.mulf %109, %108 : vector<8x128xf32>
    %cst_55 = arith.constant -1.45315206 : f32
    %111 = vector.broadcast %cst_55 : f32 to vector<8x128xf32>
    %112 = arith.addf %110, %111 : vector<8x128xf32>
    %113 = arith.mulf %112, %108 : vector<8x128xf32>
    %cst_56 = arith.constant 1.42141378 : f32
    %114 = vector.broadcast %cst_56 : f32 to vector<8x128xf32>
    %115 = arith.addf %113, %114 : vector<8x128xf32>
    %116 = arith.mulf %115, %108 : vector<8x128xf32>
    %cst_57 = arith.constant -0.284496725 : f32
    %117 = vector.broadcast %cst_57 : f32 to vector<8x128xf32>
    %118 = arith.addf %116, %117 : vector<8x128xf32>
    %119 = arith.mulf %118, %108 : vector<8x128xf32>
    %cst_58 = arith.constant 0.254829586 : f32
    %120 = vector.broadcast %cst_58 : f32 to vector<8x128xf32>
    %121 = arith.addf %119, %120 : vector<8x128xf32>
    %122 = arith.mulf %121, %108 : vector<8x128xf32>
    %cst_59 = arith.constant 0.000000e+00 : f32
    %123 = vector.broadcast %cst_59 : f32 to vector<8x128xf32>
    %124 = arith.subf %123, %102 : vector<8x128xf32>
    %125 = arith.mulf %124, %102 : vector<8x128xf32>
    %126 = math.exp %125 : vector<8x128xf32>
    %127 = arith.mulf %122, %126 : vector<8x128xf32>
    %cst_60 = arith.constant 1.000000e+00 : f32
    %128 = vector.broadcast %cst_60 : f32 to vector<8x128xf32>
    %129 = arith.subf %128, %127 : vector<8x128xf32>
    %cst_61 = arith.constant 0.000000e+00 : f32
    %130 = vector.broadcast %cst_61 : f32 to vector<8x128xf32>
    %131 = arith.cmpf oge, %101, %130 : vector<8x128xf32>
    %cst_62 = arith.constant 0.000000e+00 : f32
    %132 = vector.broadcast %cst_62 : f32 to vector<8x128xf32>
    %133 = arith.subf %132, %129 : vector<8x128xf32>
    %134 = arith.select %131, %129, %133 : vector<8x128xi1>, vector<8x128xf32>
    %cst_63 = arith.constant 1.000000e+00 : f32
    %135 = vector.broadcast %cst_63 : f32 to vector<8x128xf32>
    %136 = arith.addf %135, %134 : vector<8x128xf32>
    %137 = arith.mulf %99, %136 : vector<8x128xf32>
    %c0_i32 = arith.constant 0 : i32
    %c4_i32 = arith.constant 4 : i32
    %138 = arith.addi %c0_i32, %c4_i32 : i32
    %c1_i32 = arith.constant 1 : i32
    %139 = scf.for %arg38 = %c0_i32 to %138 step %c1_i32 iter_args(%arg39 = %137) -> (vector<8x128xf32>)  : i32 {
      %211 = arith.index_cast %arg38 : i32 to index
      %c0_106 = arith.constant 0 : index
      %c0_107 = arith.constant 0 : index
      %212 = vector.load %arg15[%211, %c0_106, %c0_107] : memref<4x128x384xf32, #tpu.memory_space<vmem>>, vector<1x128x384xf32>
      %213 = vector.shape_cast %212 : vector<1x128x384xf32> to vector<128x384xf32>
      %cst_108 = arith.constant dense<0.000000e+00> : vector<8x384xf32>
      %214 = tpu.matmul %arg39, %213, %cst_108 {dimension_numbers = #tpu.dot_dimension_numbers<[1], [0], [0], [1], [0, 0, 1, 1], [], []>} : vector<8x128xf32>, vector<128x384xf32>, vector<8x384xf32> -> vector<8x384xf32>
      %215 = arith.index_cast %arg38 : i32 to index
      %c0_109 = arith.constant 0 : index
      %c0_110 = arith.constant 0 : index
      %216 = vector.load %arg16[%215, %c0_109, %c0_110] : memref<4x1x384xf32, #tpu.memory_space<vmem>>, vector<1x1x384xf32>
      %217 = vector.shape_cast %216 : vector<1x1x384xf32> to vector<1x384xf32>
      %218 = vector.broadcast %217 : vector<1x384xf32> to vector<8x384xf32>
      %219 = arith.addf %214, %218 : vector<8x384xf32>
      %220 = vector.extract_strided_slice %219 {offsets = [0, 0], sizes = [8, 128], strides = [1, 1]} : vector<8x384xf32> to vector<8x128xf32>
      %cst_111 = arith.constant 2.500000e-01 : f32
      %221 = vector.broadcast %cst_111 : f32 to vector<8x128xf32>
      %222 = arith.mulf %220, %221 : vector<8x128xf32>
      %223 = vector.extract_strided_slice %219 {offsets = [0, 128], sizes = [8, 128], strides = [1, 1]} : vector<8x384xf32> to vector<8x128xf32>
      %224 = vector.extract_strided_slice %219 {offsets = [0, 256], sizes = [8, 128], strides = [1, 1]} : vector<8x384xf32> to vector<8x128xf32>
      %225 = vector.extract_strided_slice %222 {offsets = [0, 0], sizes = [8, 16], strides = [1, 1]} : vector<8x128xf32> to vector<8x16xf32>
      %226 = vector.extract_strided_slice %222 {offsets = [0, 16], sizes = [8, 16], strides = [1, 1]} : vector<8x128xf32> to vector<8x16xf32>
      %227 = vector.extract_strided_slice %222 {offsets = [0, 32], sizes = [8, 16], strides = [1, 1]} : vector<8x128xf32> to vector<8x16xf32>
      %228 = vector.extract_strided_slice %222 {offsets = [0, 48], sizes = [8, 16], strides = [1, 1]} : vector<8x128xf32> to vector<8x16xf32>
      %229 = vector.extract_strided_slice %222 {offsets = [0, 64], sizes = [8, 16], strides = [1, 1]} : vector<8x128xf32> to vector<8x16xf32>
      %230 = vector.extract_strided_slice %222 {offsets = [0, 80], sizes = [8, 16], strides = [1, 1]} : vector<8x128xf32> to vector<8x16xf32>
      %231 = vector.extract_strided_slice %222 {offsets = [0, 96], sizes = [8, 16], strides = [1, 1]} : vector<8x128xf32> to vector<8x16xf32>
      %232 = vector.extract_strided_slice %222 {offsets = [0, 112], sizes = [8, 16], strides = [1, 1]} : vector<8x128xf32> to vector<8x16xf32>
      %233 = vector.shape_cast %225 : vector<8x16xf32> to vector<1x8x16xf32>
      %234 = vector.shape_cast %226 : vector<8x16xf32> to vector<1x8x16xf32>
      %235 = vector.shape_cast %227 : vector<8x16xf32> to vector<1x8x16xf32>
      %236 = vector.shape_cast %228 : vector<8x16xf32> to vector<1x8x16xf32>
      %237 = vector.shape_cast %229 : vector<8x16xf32> to vector<1x8x16xf32>
      %238 = vector.shape_cast %230 : vector<8x16xf32> to vector<1x8x16xf32>
      %239 = vector.shape_cast %231 : vector<8x16xf32> to vector<1x8x16xf32>
      %240 = vector.shape_cast %232 : vector<8x16xf32> to vector<1x8x16xf32>
      %241 = tpu.concatenate %233, %234, %235, %236, %237, %238, %239, %240 in 0 : vector<1x8x16xf32>, vector<1x8x16xf32>, vector<1x8x16xf32>, vector<1x8x16xf32>, vector<1x8x16xf32>, vector<1x8x16xf32>, vector<1x8x16xf32>, vector<1x8x16xf32> -> vector<8x8x16xf32>
      %242 = vector.extract_strided_slice %223 {offsets = [0, 0], sizes = [8, 16], strides = [1, 1]} : vector<8x128xf32> to vector<8x16xf32>
      %243 = vector.extract_strided_slice %223 {offsets = [0, 16], sizes = [8, 16], strides = [1, 1]} : vector<8x128xf32> to vector<8x16xf32>
      %244 = vector.extract_strided_slice %223 {offsets = [0, 32], sizes = [8, 16], strides = [1, 1]} : vector<8x128xf32> to vector<8x16xf32>
      %245 = vector.extract_strided_slice %223 {offsets = [0, 48], sizes = [8, 16], strides = [1, 1]} : vector<8x128xf32> to vector<8x16xf32>
      %246 = vector.extract_strided_slice %223 {offsets = [0, 64], sizes = [8, 16], strides = [1, 1]} : vector<8x128xf32> to vector<8x16xf32>
      %247 = vector.extract_strided_slice %223 {offsets = [0, 80], sizes = [8, 16], strides = [1, 1]} : vector<8x128xf32> to vector<8x16xf32>
      %248 = vector.extract_strided_slice %223 {offsets = [0, 96], sizes = [8, 16], strides = [1, 1]} : vector<8x128xf32> to vector<8x16xf32>
      %249 = vector.extract_strided_slice %223 {offsets = [0, 112], sizes = [8, 16], strides = [1, 1]} : vector<8x128xf32> to vector<8x16xf32>
      %250 = vector.shape_cast %242 : vector<8x16xf32> to vector<1x8x16xf32>
      %251 = vector.shape_cast %243 : vector<8x16xf32> to vector<1x8x16xf32>
      %252 = vector.shape_cast %244 : vector<8x16xf32> to vector<1x8x16xf32>
      %253 = vector.shape_cast %245 : vector<8x16xf32> to vector<1x8x16xf32>
      %254 = vector.shape_cast %246 : vector<8x16xf32> to vector<1x8x16xf32>
      %255 = vector.shape_cast %247 : vector<8x16xf32> to vector<1x8x16xf32>
      %256 = vector.shape_cast %248 : vector<8x16xf32> to vector<1x8x16xf32>
      %257 = vector.shape_cast %249 : vector<8x16xf32> to vector<1x8x16xf32>
      %258 = tpu.concatenate %250, %251, %252, %253, %254, %255, %256, %257 in 0 : vector<1x8x16xf32>, vector<1x8x16xf32>, vector<1x8x16xf32>, vector<1x8x16xf32>, vector<1x8x16xf32>, vector<1x8x16xf32>, vector<1x8x16xf32>, vector<1x8x16xf32> -> vector<8x8x16xf32>
      %259 = vector.extract_strided_slice %224 {offsets = [0, 0], sizes = [8, 16], strides = [1, 1]} : vector<8x128xf32> to vector<8x16xf32>
      %260 = vector.extract_strided_slice %224 {offsets = [0, 16], sizes = [8, 16], strides = [1, 1]} : vector<8x128xf32> to vector<8x16xf32>
      %261 = vector.extract_strided_slice %224 {offsets = [0, 32], sizes = [8, 16], strides = [1, 1]} : vector<8x128xf32> to vector<8x16xf32>
      %262 = vector.extract_strided_slice %224 {offsets = [0, 48], sizes = [8, 16], strides = [1, 1]} : vector<8x128xf32> to vector<8x16xf32>
      %263 = vector.extract_strided_slice %224 {offsets = [0, 64], sizes = [8, 16], strides = [1, 1]} : vector<8x128xf32> to vector<8x16xf32>
      %264 = vector.extract_strided_slice %224 {offsets = [0, 80], sizes = [8, 16], strides = [1, 1]} : vector<8x128xf32> to vector<8x16xf32>
      %265 = vector.extract_strided_slice %224 {offsets = [0, 96], sizes = [8, 16], strides = [1, 1]} : vector<8x128xf32> to vector<8x16xf32>
      %266 = vector.extract_strided_slice %224 {offsets = [0, 112], sizes = [8, 16], strides = [1, 1]} : vector<8x128xf32> to vector<8x16xf32>
      %267 = vector.shape_cast %259 : vector<8x16xf32> to vector<1x8x16xf32>
      %268 = vector.shape_cast %260 : vector<8x16xf32> to vector<1x8x16xf32>
      %269 = vector.shape_cast %261 : vector<8x16xf32> to vector<1x8x16xf32>
      %270 = vector.shape_cast %262 : vector<8x16xf32> to vector<1x8x16xf32>
      %271 = vector.shape_cast %263 : vector<8x16xf32> to vector<1x8x16xf32>
      %272 = vector.shape_cast %264 : vector<8x16xf32> to vector<1x8x16xf32>
      %273 = vector.shape_cast %265 : vector<8x16xf32> to vector<1x8x16xf32>
      %274 = vector.shape_cast %266 : vector<8x16xf32> to vector<1x8x16xf32>
      %275 = tpu.concatenate %267, %268, %269, %270, %271, %272, %273, %274 in 0 : vector<1x8x16xf32>, vector<1x8x16xf32>, vector<1x8x16xf32>, vector<1x8x16xf32>, vector<1x8x16xf32>, vector<1x8x16xf32>, vector<1x8x16xf32>, vector<1x8x16xf32> -> vector<8x8x16xf32>
      "tpu.trace_start"() <{level = 10 : i32, message = "hqd,hkd->hqk"}> : () -> ()
      %cst_112 = arith.constant dense<0.000000e+00> : vector<8x8x8xf32>
      %276 = tpu.matmul %241, %258, %cst_112 {dimension_numbers = #tpu.dot_dimension_numbers<[2], [2], [1], [1], [0, 0, 0, 1, 1, 1], [0], [0]>} : vector<8x8x16xf32>, vector<8x8x16xf32>, vector<8x8x8xf32> -> vector<8x8x8xf32>
      "tpu.trace_stop"() : () -> ()
      %cst_113 = arith.constant dense<0xFF800000> : vector<8x8xf32>
      %277 = vector.multi_reduction <maximumf>, %276, %cst_113 [2] : vector<8x8x8xf32> to vector<8x8xf32>
      %278 = vector.shape_cast %277 : vector<8x8xf32> to vector<8x8x1xf32>
      %279 = vector.broadcast %278 : vector<8x8x1xf32> to vector<8x8x8xf32>
      %280 = arith.subf %276, %279 : vector<8x8x8xf32>
      %281 = math.exp %280 : vector<8x8x8xf32>
      %cst_114 = arith.constant dense<0.000000e+00> : vector<8x8xf32>
      %282 = vector.multi_reduction <add>, %281, %cst_114 [2] : vector<8x8x8xf32> to vector<8x8xf32>
      %283 = vector.shape_cast %282 : vector<8x8xf32> to vector<8x8x1xf32>
      %284 = vector.broadcast %283 : vector<8x8x1xf32> to vector<8x8x8xf32>
      %285 = arith.divf %281, %284 : vector<8x8x8xf32>
      "tpu.trace_start"() <{level = 10 : i32, message = "hqk,hkd->hqd"}> : () -> ()
      %cst_115 = arith.constant dense<0.000000e+00> : vector<8x8x16xf32>
      %286 = tpu.matmul %285, %275, %cst_115 {dimension_numbers = #tpu.dot_dimension_numbers<[2], [1], [1], [2], [0, 0, 0, 1, 1, 2], [0], [0]>} : vector<8x8x8xf32>, vector<8x8x16xf32>, vector<8x8x16xf32> -> vector<8x8x16xf32>
      "tpu.trace_stop"() : () -> ()
      %287 = vector.extract_strided_slice %286 {offsets = [0, 0, 0], sizes = [1, 8, 16], strides = [1, 1, 1]} : vector<8x8x16xf32> to vector<1x8x16xf32>
      %288 = vector.shape_cast %287 : vector<1x8x16xf32> to vector<8x16xf32>
      %289 = vector.extract_strided_slice %286 {offsets = [1, 0, 0], sizes = [1, 8, 16], strides = [1, 1, 1]} : vector<8x8x16xf32> to vector<1x8x16xf32>
      %290 = vector.shape_cast %289 : vector<1x8x16xf32> to vector<8x16xf32>
      %291 = vector.extract_strided_slice %286 {offsets = [2, 0, 0], sizes = [1, 8, 16], strides = [1, 1, 1]} : vector<8x8x16xf32> to vector<1x8x16xf32>
      %292 = vector.shape_cast %291 : vector<1x8x16xf32> to vector<8x16xf32>
      %293 = vector.extract_strided_slice %286 {offsets = [3, 0, 0], sizes = [1, 8, 16], strides = [1, 1, 1]} : vector<8x8x16xf32> to vector<1x8x16xf32>
      %294 = vector.shape_cast %293 : vector<1x8x16xf32> to vector<8x16xf32>
      %295 = vector.extract_strided_slice %286 {offsets = [4, 0, 0], sizes = [1, 8, 16], strides = [1, 1, 1]} : vector<8x8x16xf32> to vector<1x8x16xf32>
      %296 = vector.shape_cast %295 : vector<1x8x16xf32> to vector<8x16xf32>
      %297 = vector.extract_strided_slice %286 {offsets = [5, 0, 0], sizes = [1, 8, 16], strides = [1, 1, 1]} : vector<8x8x16xf32> to vector<1x8x16xf32>
      %298 = vector.shape_cast %297 : vector<1x8x16xf32> to vector<8x16xf32>
      %299 = vector.extract_strided_slice %286 {offsets = [6, 0, 0], sizes = [1, 8, 16], strides = [1, 1, 1]} : vector<8x8x16xf32> to vector<1x8x16xf32>
      %300 = vector.shape_cast %299 : vector<1x8x16xf32> to vector<8x16xf32>
      %301 = vector.extract_strided_slice %286 {offsets = [7, 0, 0], sizes = [1, 8, 16], strides = [1, 1, 1]} : vector<8x8x16xf32> to vector<1x8x16xf32>
      %302 = vector.shape_cast %301 : vector<1x8x16xf32> to vector<8x16xf32>
      %303 = tpu.concatenate %288, %290, %292, %294, %296, %298, %300, %302 in 1 : vector<8x16xf32>, vector<8x16xf32>, vector<8x16xf32>, vector<8x16xf32>, vector<8x16xf32>, vector<8x16xf32>, vector<8x16xf32>, vector<8x16xf32> -> vector<8x128xf32>
      %304 = arith.index_cast %arg38 : i32 to index
      %c0_116 = arith.constant 0 : index
      %c0_117 = arith.constant 0 : index
      %305 = vector.load %arg17[%304, %c0_116, %c0_117] : memref<4x128x128xf32, #tpu.memory_space<vmem>>, vector<1x128x128xf32>
      %306 = vector.shape_cast %305 : vector<1x128x128xf32> to vector<128x128xf32>
      %cst_118 = arith.constant dense<0.000000e+00> : vector<8x128xf32>
      %307 = tpu.matmul %303, %306, %cst_118 {dimension_numbers = #tpu.dot_dimension_numbers<[1], [0], [0], [1], [0, 0, 1, 1], [], []>} : vector<8x128xf32>, vector<128x128xf32>, vector<8x128xf32> -> vector<8x128xf32>
      %308 = arith.index_cast %arg38 : i32 to index
      %c0_119 = arith.constant 0 : index
      %c0_120 = arith.constant 0 : index
      %309 = vector.load %arg18[%308, %c0_119, %c0_120] : memref<4x1x128xf32, #tpu.memory_space<vmem>>, vector<1x1x128xf32>
      %310 = vector.shape_cast %309 : vector<1x1x128xf32> to vector<1x128xf32>
      %311 = vector.broadcast %310 : vector<1x128xf32> to vector<8x128xf32>
      %312 = arith.addf %307, %311 : vector<8x128xf32>
      %313 = arith.addf %arg39, %312 : vector<8x128xf32>
      %314 = arith.index_cast %arg38 : i32 to index
      %c0_121 = arith.constant 0 : index
      %c0_122 = arith.constant 0 : index
      %315 = vector.load %arg19[%314, %c0_121, %c0_122] : memref<4x1x128xf32, #tpu.memory_space<vmem>>, vector<1x1x128xf32>
      %316 = vector.shape_cast %315 : vector<1x1x128xf32> to vector<1x128xf32>
      %317 = arith.index_cast %arg38 : i32 to index
      %c0_123 = arith.constant 0 : index
      %c0_124 = arith.constant 0 : index
      %318 = vector.load %arg20[%317, %c0_123, %c0_124] : memref<4x1x128xf32, #tpu.memory_space<vmem>>, vector<1x1x128xf32>
      %319 = vector.shape_cast %318 : vector<1x1x128xf32> to vector<1x128xf32>
      %cst_125 = arith.constant dense<0.000000e+00> : vector<8xf32>
      %320 = vector.multi_reduction <add>, %313, %cst_125 [1] : vector<8x128xf32> to vector<8xf32>
      %321 = vector.shape_cast %320 : vector<8xf32> to vector<8x1xf32>
      %cst_126 = arith.constant 1.280000e+02 : f32
      %322 = vector.broadcast %cst_126 : f32 to vector<8x1xf32>
      %323 = arith.divf %321, %322 : vector<8x1xf32>
      %324 = vector.broadcast %323 : vector<8x1xf32> to vector<8x128xf32>
      %325 = arith.subf %313, %324 : vector<8x128xf32>
      %326 = arith.mulf %325, %325 : vector<8x128xf32>
      %cst_127 = arith.constant dense<0.000000e+00> : vector<8xf32>
      %327 = vector.multi_reduction <add>, %326, %cst_127 [1] : vector<8x128xf32> to vector<8xf32>
      %328 = vector.shape_cast %327 : vector<8xf32> to vector<8x1xf32>
      %cst_128 = arith.constant 1.280000e+02 : f32
      %329 = vector.broadcast %cst_128 : f32 to vector<8x1xf32>
      %330 = arith.divf %328, %329 : vector<8x1xf32>
      %331 = vector.broadcast %323 : vector<8x1xf32> to vector<8x128xf32>
      %332 = arith.subf %313, %331 : vector<8x128xf32>
      %cst_129 = arith.constant 9.99999974E-6 : f32
      %333 = vector.broadcast %cst_129 : f32 to vector<8x1xf32>
      %334 = arith.addf %330, %333 : vector<8x1xf32>
      %335 = math.rsqrt %334 : vector<8x1xf32>
      %336 = vector.broadcast %335 : vector<8x1xf32> to vector<8x128xf32>
      %337 = arith.mulf %332, %336 : vector<8x128xf32>
      %338 = vector.broadcast %316 : vector<1x128xf32> to vector<8x128xf32>
      %339 = arith.mulf %337, %338 : vector<8x128xf32>
      %340 = vector.broadcast %319 : vector<1x128xf32> to vector<8x128xf32>
      %341 = arith.addf %339, %340 : vector<8x128xf32>
      %342 = arith.index_cast %arg38 : i32 to index
      %c0_130 = arith.constant 0 : index
      %c0_131 = arith.constant 0 : index
      %343 = vector.load %arg21[%342, %c0_130, %c0_131] : memref<4x128x512xf32, #tpu.memory_space<vmem>>, vector<1x128x512xf32>
      %344 = vector.shape_cast %343 : vector<1x128x512xf32> to vector<128x512xf32>
      %cst_132 = arith.constant dense<0.000000e+00> : vector<8x512xf32>
      %345 = tpu.matmul %341, %344, %cst_132 {dimension_numbers = #tpu.dot_dimension_numbers<[1], [0], [0], [1], [0, 0, 1, 1], [], []>} : vector<8x128xf32>, vector<128x512xf32>, vector<8x512xf32> -> vector<8x512xf32>
      %346 = arith.index_cast %arg38 : i32 to index
      %c0_133 = arith.constant 0 : index
      %c0_134 = arith.constant 0 : index
      %347 = vector.load %arg22[%346, %c0_133, %c0_134] : memref<4x1x512xf32, #tpu.memory_space<vmem>>, vector<1x1x512xf32>
      %348 = vector.shape_cast %347 : vector<1x1x512xf32> to vector<1x512xf32>
      %349 = vector.broadcast %348 : vector<1x512xf32> to vector<8x512xf32>
      %350 = arith.addf %345, %349 : vector<8x512xf32>
      %cst_135 = arith.constant 0.000000e+00 : f32
      %351 = vector.broadcast %cst_135 : f32 to vector<8x512xf32>
      %352 = arith.maximumf %350, %351 : vector<8x512xf32>
      %353 = arith.index_cast %arg38 : i32 to index
      %c0_136 = arith.constant 0 : index
      %c0_137 = arith.constant 0 : index
      %354 = vector.load %arg23[%353, %c0_136, %c0_137] : memref<4x512x128xf32, #tpu.memory_space<vmem>>, vector<1x512x128xf32>
      %355 = vector.shape_cast %354 : vector<1x512x128xf32> to vector<512x128xf32>
      %cst_138 = arith.constant dense<0.000000e+00> : vector<8x128xf32>
      %356 = tpu.matmul %352, %355, %cst_138 {dimension_numbers = #tpu.dot_dimension_numbers<[1], [0], [0], [1], [0, 0, 1, 1], [], []>} : vector<8x512xf32>, vector<512x128xf32>, vector<8x128xf32> -> vector<8x128xf32>
      %357 = arith.index_cast %arg38 : i32 to index
      %c0_139 = arith.constant 0 : index
      %c0_140 = arith.constant 0 : index
      %358 = vector.load %arg24[%357, %c0_139, %c0_140] : memref<4x1x128xf32, #tpu.memory_space<vmem>>, vector<1x1x128xf32>
      %359 = vector.shape_cast %358 : vector<1x1x128xf32> to vector<1x128xf32>
      %360 = vector.broadcast %359 : vector<1x128xf32> to vector<8x128xf32>
      %361 = arith.addf %356, %360 : vector<8x128xf32>
      %362 = arith.addf %341, %361 : vector<8x128xf32>
      %363 = arith.index_cast %arg38 : i32 to index
      %c0_141 = arith.constant 0 : index
      %c0_142 = arith.constant 0 : index
      %364 = vector.load %arg25[%363, %c0_141, %c0_142] : memref<4x1x128xf32, #tpu.memory_space<vmem>>, vector<1x1x128xf32>
      %365 = vector.shape_cast %364 : vector<1x1x128xf32> to vector<1x128xf32>
      %366 = arith.index_cast %arg38 : i32 to index
      %c0_143 = arith.constant 0 : index
      %c0_144 = arith.constant 0 : index
      %367 = vector.load %arg26[%366, %c0_143, %c0_144] : memref<4x1x128xf32, #tpu.memory_space<vmem>>, vector<1x1x128xf32>
      %368 = vector.shape_cast %367 : vector<1x1x128xf32> to vector<1x128xf32>
      %cst_145 = arith.constant dense<0.000000e+00> : vector<8xf32>
      %369 = vector.multi_reduction <add>, %362, %cst_145 [1] : vector<8x128xf32> to vector<8xf32>
      %370 = vector.shape_cast %369 : vector<8xf32> to vector<8x1xf32>
      %cst_146 = arith.constant 1.280000e+02 : f32
      %371 = vector.broadcast %cst_146 : f32 to vector<8x1xf32>
      %372 = arith.divf %370, %371 : vector<8x1xf32>
      %373 = vector.broadcast %372 : vector<8x1xf32> to vector<8x128xf32>
      %374 = arith.subf %362, %373 : vector<8x128xf32>
      %375 = arith.mulf %374, %374 : vector<8x128xf32>
      %cst_147 = arith.constant dense<0.000000e+00> : vector<8xf32>
      %376 = vector.multi_reduction <add>, %375, %cst_147 [1] : vector<8x128xf32> to vector<8xf32>
      %377 = vector.shape_cast %376 : vector<8xf32> to vector<8x1xf32>
      %cst_148 = arith.constant 1.280000e+02 : f32
      %378 = vector.broadcast %cst_148 : f32 to vector<8x1xf32>
      %379 = arith.divf %377, %378 : vector<8x1xf32>
      %380 = vector.broadcast %372 : vector<8x1xf32> to vector<8x128xf32>
      %381 = arith.subf %362, %380 : vector<8x128xf32>
      %cst_149 = arith.constant 9.99999974E-6 : f32
      %382 = vector.broadcast %cst_149 : f32 to vector<8x1xf32>
      %383 = arith.addf %379, %382 : vector<8x1xf32>
      %384 = math.rsqrt %383 : vector<8x1xf32>
      %385 = vector.broadcast %384 : vector<8x1xf32> to vector<8x128xf32>
      %386 = arith.mulf %381, %385 : vector<8x128xf32>
      %387 = vector.broadcast %365 : vector<1x128xf32> to vector<8x128xf32>
      %388 = arith.mulf %386, %387 : vector<8x128xf32>
      %389 = vector.broadcast %368 : vector<1x128xf32> to vector<8x128xf32>
      %390 = arith.addf %388, %389 : vector<8x128xf32>
      scf.yield %390 : vector<8x128xf32>
    }
    %c4_i32_64 = arith.constant 4 : i32
    %cst_65 = arith.constant dense<0.000000e+00> : vector<128xf32>
    %140 = vector.multi_reduction <add>, %139, %cst_65 [0] : vector<8x128xf32> to vector<128xf32>
    %141 = vector.shape_cast %140 : vector<128xf32> to vector<1x128xf32>
    %cst_66 = arith.constant 8.000000e+00 : f32
    %142 = vector.broadcast %cst_66 : f32 to vector<1x128xf32>
    %143 = arith.divf %141, %142 : vector<1x128xf32>
    %144 = vector.extract_strided_slice %139 {offsets = [7, 0], sizes = [1, 128], strides = [1, 1]} : vector<8x128xf32> to vector<1x128xf32>
    %cst_67 = arith.constant 5.000000e-01 : f32
    %145 = vector.broadcast %cst_67 : f32 to vector<1x128xf32>
    %146 = arith.mulf %145, %144 : vector<1x128xf32>
    %147 = arith.addf %143, %146 : vector<1x128xf32>
    %c0_68 = arith.constant 0 : index
    %c0_69 = arith.constant 0 : index
    %148 = vector.load %arg27[%c0_68, %c0_69] : memref<128x256xf32, #tpu.memory_space<vmem>>, vector<128x256xf32>
    %cst_70 = arith.constant dense<0.000000e+00> : vector<1x256xf32>
    %149 = tpu.matmul %147, %148, %cst_70 {dimension_numbers = #tpu.dot_dimension_numbers<[1], [0], [0], [1], [0, 0, 1, 1], [], []>} : vector<1x128xf32>, vector<128x256xf32>, vector<1x256xf32> -> vector<1x256xf32>
    %c0_71 = arith.constant 0 : index
    %c0_72 = arith.constant 0 : index
    %150 = vector.load %arg28[%c0_71, %c0_72] : memref<1x256xf32, #tpu.memory_space<vmem>>, vector<1x256xf32>
    %151 = arith.addf %149, %150 : vector<1x256xf32>
    %c0_73 = arith.constant 0 : index
    %c0_74 = arith.constant 0 : index
    %152 = vector.load %arg29[%c0_73, %c0_74] : memref<1x256xf32, #tpu.memory_space<vmem>>, vector<1x256xf32>
    %c0_75 = arith.constant 0 : index
    %c0_76 = arith.constant 0 : index
    %153 = vector.load %arg30[%c0_75, %c0_76] : memref<1x256xf32, #tpu.memory_space<vmem>>, vector<1x256xf32>
    %cst_77 = arith.constant dense<0.000000e+00> : vector<1xf32>
    %154 = vector.multi_reduction <add>, %151, %cst_77 [1] : vector<1x256xf32> to vector<1xf32>
    %155 = vector.shape_cast %154 : vector<1xf32> to vector<1x1xf32>
    %cst_78 = arith.constant 2.560000e+02 : f32
    %156 = vector.broadcast %cst_78 : f32 to vector<1x1xf32>
    %157 = arith.divf %155, %156 : vector<1x1xf32>
    %158 = vector.broadcast %157 : vector<1x1xf32> to vector<1x256xf32>
    %159 = arith.subf %151, %158 : vector<1x256xf32>
    %160 = arith.mulf %159, %159 : vector<1x256xf32>
    %cst_79 = arith.constant dense<0.000000e+00> : vector<1xf32>
    %161 = vector.multi_reduction <add>, %160, %cst_79 [1] : vector<1x256xf32> to vector<1xf32>
    %162 = vector.shape_cast %161 : vector<1xf32> to vector<1x1xf32>
    %cst_80 = arith.constant 2.560000e+02 : f32
    %163 = vector.broadcast %cst_80 : f32 to vector<1x1xf32>
    %164 = arith.divf %162, %163 : vector<1x1xf32>
    %165 = vector.broadcast %157 : vector<1x1xf32> to vector<1x256xf32>
    %166 = arith.subf %151, %165 : vector<1x256xf32>
    %cst_81 = arith.constant 9.99999974E-6 : f32
    %167 = vector.broadcast %cst_81 : f32 to vector<1x1xf32>
    %168 = arith.addf %164, %167 : vector<1x1xf32>
    %169 = math.rsqrt %168 : vector<1x1xf32>
    %170 = vector.broadcast %169 : vector<1x1xf32> to vector<1x256xf32>
    %171 = arith.mulf %166, %170 : vector<1x256xf32>
    %172 = arith.mulf %171, %152 : vector<1x256xf32>
    %173 = arith.addf %172, %153 : vector<1x256xf32>
    %cst_82 = arith.constant 0.000000e+00 : f32
    %174 = vector.broadcast %cst_82 : f32 to vector<1x256xf32>
    %175 = arith.maximumf %173, %174 : vector<1x256xf32>
    %c0_83 = arith.constant 0 : index
    %c0_84 = arith.constant 0 : index
    %176 = vector.load %arg31[%c0_83, %c0_84] : memref<256x128xf32, #tpu.memory_space<vmem>>, vector<256x128xf32>
    %cst_85 = arith.constant dense<0.000000e+00> : vector<1x128xf32>
    %177 = tpu.matmul %175, %176, %cst_85 {dimension_numbers = #tpu.dot_dimension_numbers<[1], [0], [0], [1], [0, 0, 1, 1], [], []>} : vector<1x256xf32>, vector<256x128xf32>, vector<1x128xf32> -> vector<1x128xf32>
    %c0_86 = arith.constant 0 : index
    %c0_87 = arith.constant 0 : index
    %178 = vector.load %arg32[%c0_86, %c0_87] : memref<1x128xf32, #tpu.memory_space<vmem>>, vector<1x128xf32>
    %179 = arith.addf %177, %178 : vector<1x128xf32>
    %c0_88 = arith.constant 0 : index
    %c0_89 = arith.constant 0 : index
    %180 = vector.load %arg33[%c0_88, %c0_89] : memref<1x128xf32, #tpu.memory_space<vmem>>, vector<1x128xf32>
    %c0_90 = arith.constant 0 : index
    %c0_91 = arith.constant 0 : index
    %181 = vector.load %arg34[%c0_90, %c0_91] : memref<1x128xf32, #tpu.memory_space<vmem>>, vector<1x128xf32>
    %cst_92 = arith.constant dense<0.000000e+00> : vector<1xf32>
    %182 = vector.multi_reduction <add>, %179, %cst_92 [1] : vector<1x128xf32> to vector<1xf32>
    %183 = vector.shape_cast %182 : vector<1xf32> to vector<1x1xf32>
    %cst_93 = arith.constant 1.280000e+02 : f32
    %184 = vector.broadcast %cst_93 : f32 to vector<1x1xf32>
    %185 = arith.divf %183, %184 : vector<1x1xf32>
    %186 = vector.broadcast %185 : vector<1x1xf32> to vector<1x128xf32>
    %187 = arith.subf %179, %186 : vector<1x128xf32>
    %188 = arith.mulf %187, %187 : vector<1x128xf32>
    %cst_94 = arith.constant dense<0.000000e+00> : vector<1xf32>
    %189 = vector.multi_reduction <add>, %188, %cst_94 [1] : vector<1x128xf32> to vector<1xf32>
    %190 = vector.shape_cast %189 : vector<1xf32> to vector<1x1xf32>
    %cst_95 = arith.constant 1.280000e+02 : f32
    %191 = vector.broadcast %cst_95 : f32 to vector<1x1xf32>
    %192 = arith.divf %190, %191 : vector<1x1xf32>
    %193 = vector.broadcast %185 : vector<1x1xf32> to vector<1x128xf32>
    %194 = arith.subf %179, %193 : vector<1x128xf32>
    %cst_96 = arith.constant 9.99999974E-6 : f32
    %195 = vector.broadcast %cst_96 : f32 to vector<1x1xf32>
    %196 = arith.addf %192, %195 : vector<1x1xf32>
    %197 = math.rsqrt %196 : vector<1x1xf32>
    %198 = vector.broadcast %197 : vector<1x1xf32> to vector<1x128xf32>
    %199 = arith.mulf %194, %198 : vector<1x128xf32>
    %200 = arith.mulf %199, %180 : vector<1x128xf32>
    %201 = arith.addf %200, %181 : vector<1x128xf32>
    %cst_97 = arith.constant 0.000000e+00 : f32
    %202 = vector.broadcast %cst_97 : f32 to vector<1x128xf32>
    %203 = arith.maximumf %201, %202 : vector<1x128xf32>
    %c0_98 = arith.constant 0 : index
    %c0_99 = arith.constant 0 : index
    %204 = vector.load %arg35[%c0_98, %c0_99] : memref<128x3xf32, #tpu.memory_space<vmem>>, vector<128x3xf32>
    %cst_100 = arith.constant dense<0.000000e+00> : vector<1x3xf32>
    %205 = tpu.matmul %203, %204, %cst_100 {dimension_numbers = #tpu.dot_dimension_numbers<[1], [0], [0], [1], [0, 0, 1, 1], [], []>} : vector<1x128xf32>, vector<128x3xf32>, vector<1x3xf32> -> vector<1x3xf32>
    %c0_101 = arith.constant 0 : index
    %c0_102 = arith.constant 0 : index
    %206 = vector.load %arg36[%c0_101, %c0_102] : memref<1x3xf32, #tpu.memory_space<vmem>>, vector<1x3xf32>
    %207 = arith.addf %205, %206 : vector<1x3xf32>
    %c0_103 = arith.constant 0 : index
    %c0_104 = arith.constant 0 : index
    %c0_105 = arith.constant 0 : index
    %208 = vector.load %arg37[%c0_103, %c0_104, %c0_105] : memref<1x1x3xf32, #tpu.memory_space<vmem>>, vector<1x1x3xf32>
    %209 = vector.shape_cast %208 : vector<1x1x3xf32> to vector<1x3xf32>
    %210 = vector.shape_cast %207 : vector<1x3xf32> to vector<1x1x3xf32>
    tpu.vector_store %arg37[%c0_103, %c0_104, %c0_105], %210 {strides = array<i32>} : memref<1x1x3xf32, #tpu.memory_space<vmem>>, vector<1x1x3xf32>,
    return
  }
  func.func @transform_0(%arg0: i32) -> (i32, i32, i32) {
    %c0_i32 = arith.constant 0 : i32
    %c0_i32_0 = arith.constant 0 : i32
    %c0_i32_1 = arith.constant 0 : i32
    return %arg0, %c0_i32, %c0_i32_0 : i32, i32, i32
  }
  func.func @transform_1(%arg0: i32) -> (i32, i32) {
    %c0_i32 = arith.constant 0 : i32
    %c0_i32_0 = arith.constant 0 : i32
    %c0_i32_1 = arith.constant 0 : i32
    return %c0_i32, %c0_i32_0 : i32, i32
  }
  func.func @transform_2(%arg0: i32) -> (i32, i32) {
    %c0_i32 = arith.constant 0 : i32
    %c0_i32_0 = arith.constant 0 : i32
    %c0_i32_1 = arith.constant 0 : i32
    return %c0_i32, %c0_i32_0 : i32, i32
  }
  func.func @transform_3(%arg0: i32) -> (i32, i32) {
    %c0_i32 = arith.constant 0 : i32
    %c0_i32_0 = arith.constant 0 : i32
    %c0_i32_1 = arith.constant 0 : i32
    return %c0_i32, %c0_i32_0 : i32, i32
  }
  func.func @transform_4(%arg0: i32) -> (i32, i32) {
    %c0_i32 = arith.constant 0 : i32
    %c0_i32_0 = arith.constant 0 : i32
    %c0_i32_1 = arith.constant 0 : i32
    return %c0_i32, %c0_i32_0 : i32, i32
  }
  func.func @transform_5(%arg0: i32) -> (i32, i32) {
    %c0_i32 = arith.constant 0 : i32
    %c0_i32_0 = arith.constant 0 : i32
    %c0_i32_1 = arith.constant 0 : i32
    return %c0_i32, %c0_i32_0 : i32, i32
  }
  func.func @transform_6(%arg0: i32) -> (i32, i32) {
    %c0_i32 = arith.constant 0 : i32
    %c0_i32_0 = arith.constant 0 : i32
    %c0_i32_1 = arith.constant 0 : i32
    return %c0_i32, %c0_i32_0 : i32, i32
  }
  func.func @transform_7(%arg0: i32) -> (i32, i32) {
    %c0_i32 = arith.constant 0 : i32
    %c0_i32_0 = arith.constant 0 : i32
    %c0_i32_1 = arith.constant 0 : i32
    return %c0_i32, %c0_i32_0 : i32, i32
  }
  func.func @transform_8(%arg0: i32) -> (i32, i32) {
    %c0_i32 = arith.constant 0 : i32
    %c0_i32_0 = arith.constant 0 : i32
    %c0_i32_1 = arith.constant 0 : i32
    return %c0_i32, %c0_i32_0 : i32, i32
  }
  func.func @transform_9(%arg0: i32) -> (i32, i32) {
    %c0_i32 = arith.constant 0 : i32
    %c0_i32_0 = arith.constant 0 : i32
    %c0_i32_1 = arith.constant 0 : i32
    return %c0_i32, %c0_i32_0 : i32, i32
  }
  func.func @transform_10(%arg0: i32) -> (i32, i32) {
    %c0_i32 = arith.constant 0 : i32
    %c0_i32_0 = arith.constant 0 : i32
    %c0_i32_1 = arith.constant 0 : i32
    return %c0_i32, %c0_i32_0 : i32, i32
  }
  func.func @transform_11(%arg0: i32) -> (i32, i32) {
    %c0_i32 = arith.constant 0 : i32
    %c0_i32_0 = arith.constant 0 : i32
    %c0_i32_1 = arith.constant 0 : i32
    return %c0_i32, %c0_i32_0 : i32, i32
  }
  func.func @transform_12(%arg0: i32) -> (i32, i32) {
    %c0_i32 = arith.constant 0 : i32
    %c0_i32_0 = arith.constant 0 : i32
    %c0_i32_1 = arith.constant 0 : i32
    return %c0_i32, %c0_i32_0 : i32, i32
  }
  func.func @transform_13(%arg0: i32) -> (i32, i32) {
    %c0_i32 = arith.constant 0 : i32
    %c0_i32_0 = arith.constant 0 : i32
    %c0_i32_1 = arith.constant 0 : i32
    return %c0_i32, %c0_i32_0 : i32, i32
  }
  func.func @transform_14(%arg0: i32) -> (i32, i32, i32) {
    %c0_i32 = arith.constant 0 : i32
    %c0_i32_0 = arith.constant 0 : i32
    %c0_i32_1 = arith.constant 0 : i32
    %c0_i32_2 = arith.constant 0 : i32
    return %c0_i32, %c0_i32_0, %c0_i32_1 : i32, i32, i32
  }
  func.func @transform_15(%arg0: i32) -> (i32, i32, i32) {
    %c0_i32 = arith.constant 0 : i32
    %c0_i32_0 = arith.constant 0 : i32
    %c0_i32_1 = arith.constant 0 : i32
    %c0_i32_2 = arith.constant 0 : i32
    return %c0_i32, %c0_i32_0, %c0_i32_1 : i32, i32, i32
  }
  func.func @transform_16(%arg0: i32) -> (i32, i32, i32) {
    %c0_i32 = arith.constant 0 : i32
    %c0_i32_0 = arith.constant 0 : i32
    %c0_i32_1 = arith.constant 0 : i32
    %c0_i32_2 = arith.constant 0 : i32
    return %c0_i32, %c0_i32_0, %c0_i32_1 : i32, i32, i32
  }
  func.func @transform_17(%arg0: i32) -> (i32, i32, i32) {
    %c0_i32 = arith.constant 0 : i32
    %c0_i32_0 = arith.constant 0 : i32
    %c0_i32_1 = arith.constant 0 : i32
    %c0_i32_2 = arith.constant 0 : i32
    return %c0_i32, %c0_i32_0, %c0_i32_1 : i32, i32, i32
  }
  func.func @transform_18(%arg0: i32) -> (i32, i32, i32) {
    %c0_i32 = arith.constant 0 : i32
    %c0_i32_0 = arith.constant 0 : i32
    %c0_i32_1 = arith.constant 0 : i32
    %c0_i32_2 = arith.constant 0 : i32
    return %c0_i32, %c0_i32_0, %c0_i32_1 : i32, i32, i32
  }
  func.func @transform_19(%arg0: i32) -> (i32, i32, i32) {
    %c0_i32 = arith.constant 0 : i32
    %c0_i32_0 = arith.constant 0 : i32
    %c0_i32_1 = arith.constant 0 : i32
    %c0_i32_2 = arith.constant 0 : i32
    return %c0_i32, %c0_i32_0, %c0_i32_1 : i32, i32, i32
  }
  func.func @transform_20(%arg0: i32) -> (i32, i32, i32) {
    %c0_i32 = arith.constant 0 : i32
    %c0_i32_0 = arith.constant 0 : i32
    %c0_i32_1 = arith.constant 0 : i32
    %c0_i32_2 = arith.constant 0 : i32
    return %c0_i32, %c0_i32_0, %c0_i32_1 : i32, i32, i32
  }
  func.func @transform_21(%arg0: i32) -> (i32, i32, i32) {
    %c0_i32 = arith.constant 0 : i32
    %c0_i32_0 = arith.constant 0 : i32
    %c0_i32_1 = arith.constant 0 : i32
    %c0_i32_2 = arith.constant 0 : i32
    return %c0_i32, %c0_i32_0, %c0_i32_1 : i32, i32, i32
  }
  func.func @transform_22(%arg0: i32) -> (i32, i32, i32) {
    %c0_i32 = arith.constant 0 : i32
    %c0_i32_0 = arith.constant 0 : i32
    %c0_i32_1 = arith.constant 0 : i32
    %c0_i32_2 = arith.constant 0 : i32
    return %c0_i32, %c0_i32_0, %c0_i32_1 : i32, i32, i32
  }
  func.func @transform_23(%arg0: i32) -> (i32, i32, i32) {
    %c0_i32 = arith.constant 0 : i32
    %c0_i32_0 = arith.constant 0 : i32
    %c0_i32_1 = arith.constant 0 : i32
    %c0_i32_2 = arith.constant 0 : i32
    return %c0_i32, %c0_i32_0, %c0_i32_1 : i32, i32, i32
  }
  func.func @transform_24(%arg0: i32) -> (i32, i32, i32) {
    %c0_i32 = arith.constant 0 : i32
    %c0_i32_0 = arith.constant 0 : i32
    %c0_i32_1 = arith.constant 0 : i32
    %c0_i32_2 = arith.constant 0 : i32
    return %c0_i32, %c0_i32_0, %c0_i32_1 : i32, i32, i32
  }
  func.func @transform_25(%arg0: i32) -> (i32, i32, i32) {
    %c0_i32 = arith.constant 0 : i32
    %c0_i32_0 = arith.constant 0 : i32
    %c0_i32_1 = arith.constant 0 : i32
    %c0_i32_2 = arith.constant 0 : i32
    return %c0_i32, %c0_i32_0, %c0_i32_1 : i32, i32, i32
  }
  func.func @transform_26(%arg0: i32) -> (i32, i32) {
    %c0_i32 = arith.constant 0 : i32
    %c0_i32_0 = arith.constant 0 : i32
    %c0_i32_1 = arith.constant 0 : i32
    return %c0_i32, %c0_i32_0 : i32, i32
  }
  func.func @transform_27(%arg0: i32) -> (i32, i32) {
    %c0_i32 = arith.constant 0 : i32
    %c0_i32_0 = arith.constant 0 : i32
    %c0_i32_1 = arith.constant 0 : i32
    return %c0_i32, %c0_i32_0 : i32, i32
  }
  func.func @transform_28(%arg0: i32) -> (i32, i32) {
    %c0_i32 = arith.constant 0 : i32
    %c0_i32_0 = arith.constant 0 : i32
    %c0_i32_1 = arith.constant 0 : i32
    return %c0_i32, %c0_i32_0 : i32, i32
  }
  func.func @transform_29(%arg0: i32) -> (i32, i32) {
    %c0_i32 = arith.constant 0 : i32
    %c0_i32_0 = arith.constant 0 : i32
    %c0_i32_1 = arith.constant 0 : i32
    return %c0_i32, %c0_i32_0 : i32, i32
  }
  func.func @transform_30(%arg0: i32) -> (i32, i32) {
    %c0_i32 = arith.constant 0 : i32
    %c0_i32_0 = arith.constant 0 : i32
    %c0_i32_1 = arith.constant 0 : i32
    return %c0_i32, %c0_i32_0 : i32, i32
  }
  func.func @transform_31(%arg0: i32) -> (i32, i32) {
    %c0_i32 = arith.constant 0 : i32
    %c0_i32_0 = arith.constant 0 : i32
    %c0_i32_1 = arith.constant 0 : i32
    return %c0_i32, %c0_i32_0 : i32, i32
  }
  func.func @transform_32(%arg0: i32) -> (i32, i32) {
    %c0_i32 = arith.constant 0 : i32
    %c0_i32_0 = arith.constant 0 : i32
    %c0_i32_1 = arith.constant 0 : i32
    return %c0_i32, %c0_i32_0 : i32, i32
  }
  func.func @transform_33(%arg0: i32) -> (i32, i32) {
    %c0_i32 = arith.constant 0 : i32
    %c0_i32_0 = arith.constant 0 : i32
    %c0_i32_1 = arith.constant 0 : i32
    return %c0_i32, %c0_i32_0 : i32, i32
  }
  func.func @transform_34(%arg0: i32) -> (i32, i32) {
    %c0_i32 = arith.constant 0 : i32
    %c0_i32_0 = arith.constant 0 : i32
    %c0_i32_1 = arith.constant 0 : i32
    return %c0_i32, %c0_i32_0 : i32, i32
  }
  func.func @transform_35(%arg0: i32) -> (i32, i32) {
    %c0_i32 = arith.constant 0 : i32
    %c0_i32_0 = arith.constant 0 : i32
    %c0_i32_1 = arith.constant 0 : i32
    return %c0_i32, %c0_i32_0 : i32, i32
  }
  func.func @transform_36(%arg0: i32) -> (i32, i32, i32) {
    %c0_i32 = arith.constant 0 : i32
    %c0_i32_0 = arith.constant 0 : i32
    %c0_i32_1 = arith.constant 0 : i32
    return %arg0, %c0_i32, %c0_i32_0 : i32, i32, i32
  }
}

</mosaic_0001>

<llo_original>
// kernel: tpu_custom_call.1
$region0: #{tpu_custom_call.1}
  #allocation0 [shape = 'u32[]', space=smem, size = 0x4, offset = 0x4, fixed_abs, tag = 'smem constant byte address 0x4 - core index']
  #allocation1 [shape = 'u32[144,128]{1,0:T(1,128)}', space=vmem, size = 0x12000, scoped, tag = 'internal scratch']
  %s0 = inlined_call_operand.smem [shape: u32[37], index: -1, kind: input, shape index: {}]
  %s1 = sld [smem:[%s0]]
  %s2 = scalar_lea.smem %s0, 1
  %s3 = sld [smem:[%s2]]
  %s4 = scalar_lea.smem %s0, 2
  %s5 = sld [smem:[%s4]]
  %s6 = scalar_lea.smem %s0, 3
  %s7 = sld [smem:[%s6]]
  %s8 = scalar_lea.smem %s0, 4
  %s9 = sld [smem:[%s8]]
  %s10 = scalar_lea.smem %s0, 5
  %s11 = sld [smem:[%s10]]
  %s12 = scalar_lea.smem %s0, 6
  %s13 = sld [smem:[%s12]]
  %s14 = scalar_lea.smem %s0, 7
  %s15 = sld [smem:[%s14]]
  %s16 = scalar_lea.smem %s0, 8
  %s17 = sld [smem:[%s16]]
  %s18 = scalar_lea.smem %s0, 9
  %s19 = sld [smem:[%s18]]
  %s20 = scalar_lea.smem %s0, 10
  %s21 = sld [smem:[%s20]]
  %s22 = scalar_lea.smem %s0, 11
  %s23 = sld [smem:[%s22]]
  %s24 = scalar_lea.smem %s0, 12
  %s25 = sld [smem:[%s24]]
  %s26 = scalar_lea.smem %s0, 13
  %s27 = sld [smem:[%s26]]
  %s28 = scalar_lea.smem %s0, 14
  %s29 = sld [smem:[%s28]]
  %s30 = scalar_lea.smem %s0, 15
  %s31 = sld [smem:[%s30]]
  %s32 = scalar_lea.smem %s0, 16
  %s33 = sld [smem:[%s32]]
  %s34 = scalar_lea.smem %s0, 17
  %s35 = sld [smem:[%s34]]
  %s36 = scalar_lea.smem %s0, 18
  %s37 = sld [smem:[%s36]]
  %s38 = scalar_lea.smem %s0, 19
  %s39 = sld [smem:[%s38]]
  %s40 = scalar_lea.smem %s0, 20
  %s41 = sld [smem:[%s40]]
  %s42 = scalar_lea.smem %s0, 21
  %s43 = sld [smem:[%s42]]
  %s44 = scalar_lea.smem %s0, 22
  %s45 = sld [smem:[%s44]]
  %s46 = scalar_lea.smem %s0, 23
  %s47 = sld [smem:[%s46]]
  %s48 = scalar_lea.smem %s0, 24
  %s49 = sld [smem:[%s48]]
  %s50 = scalar_lea.smem %s0, 25
  %s51 = sld [smem:[%s50]]
  %s52 = scalar_lea.smem %s0, 26
  %s53 = sld [smem:[%s52]]
  %s54 = scalar_lea.smem %s0, 27
  %s55 = sld [smem:[%s54]]
  %s56 = scalar_lea.smem %s0, 28
  %s57 = sld [smem:[%s56]]
  %s58 = scalar_lea.smem %s0, 29
  %s59 = sld [smem:[%s58]]
  %s60 = scalar_lea.smem %s0, 30
  %s61 = sld [smem:[%s60]]
  %s62 = scalar_lea.smem %s0, 31
  %s63 = sld [smem:[%s62]]
  %s64 = scalar_lea.smem %s0, 32
  %s65 = sld [smem:[%s64]]
  %s66 = scalar_lea.smem %s0, 33
  %s67 = sld [smem:[%s66]]
  %s68 = scalar_lea.smem %s0, 34
  %s69 = sld [smem:[%s68]]
  %s70 = scalar_lea.smem %s0, 35
  %s71 = sld [smem:[%s70]]
  %s72 = scalar_lea.smem %s0, 36
  %s73 = sld [smem:[%s72]]
  %s74 = sld [smem:[#allocation0]]
  $region272: #{tpu_custom_call.1} parent=0
    _
  %s76 = ssub.s32 1, %s74
  %s77 = scalar_select 0, %s76, %s74
  $region1: #{tpu_custom_call.1} parent=0
    #allocation2 [shape = 'u8[8192]{0}', space=vmem, size = 0x2000, scoped, tag = 'input window, operand 0']
    #allocation3 [shape = 's32[2]{0}', space=sflag, size = 0x8, scoped, tag = 'scoped memory for tpu_custom_call.1']
    #allocation4 [shape = 's32[2]{0}', space=sflag, size = 0x8, scoped, tag = 'scoped memory for tpu_custom_call.1']
    #allocation5 [shape = 'u8[4096]{0}', space=vmem, size = 0x1000, scoped, tag = 'input window, operand 1, single buffered']
    #allocation6 [shape = 's32[1]{0}', space=sflag, size = 0x4, scoped, tag = 'scoped memory for tpu_custom_call.1']
    #allocation7 [shape = 'u8[8192]{0}', space=vmem, size = 0x2000, scoped, tag = 'input window, operand 2, single buffered']
    #allocation8 [shape = 'u8[512]{0}', space=vmem, size = 0x400, scoped, tag = 'input window, operand 3, single buffered']
    #allocation9 [shape = 's32[1]{0}', space=sflag, size = 0x4, scoped, tag = 'scoped memory for tpu_custom_call.1']
    #allocation10 [shape = 'u8[512]{0}', space=vmem, size = 0x400, scoped, tag = 'input window, operand 4, single buffered']
    #allocation11 [shape = 'u8[512]{0}', space=vmem, size = 0x400, scoped, tag = 'input window, operand 5, single buffered']
    #allocation12 [shape = 's32[1]{0}', space=sflag, size = 0x4, scoped, tag = 'scoped memory for tpu_custom_call.1']
    #allocation13 [shape = 'u8[512]{0}', space=vmem, size = 0x400, scoped, tag = 'input window, operand 7, single buffered']
    #allocation14 [shape = 'u8[512]{0}', space=vmem, size = 0x400, scoped, tag = 'input window, operand 8, single buffered']
    #allocation15 [shape = 's32[1]{0}', space=sflag, size = 0x4, scoped, tag = 'scoped memory for tpu_custom_call.1']
    #allocation16 [shape = 'u8[512]{0}', space=vmem, size = 0x400, scoped, tag = 'input window, operand 9, single buffered']
    #allocation17 [shape = 'u8[65536]{0}', space=vmem, size = 0x10000, scoped, tag = 'input window, operand 10, single buffered']
    #allocation18 [shape = 's32[1]{0}', space=sflag, size = 0x4, scoped, tag = 'scoped memory for tpu_custom_call.1']
    #allocation19 [shape = 'u8[512]{0}', space=vmem, size = 0x400, scoped, tag = 'input window, operand 11, single buffered']
    #allocation20 [shape = 'u8[512]{0}', space=vmem, size = 0x400, scoped, tag = 'input window, operand 12, single buffered']
    #allocation21 [shape = 's32[1]{0}', space=sflag, size = 0x4, scoped, tag = 'scoped memory for tpu_custom_call.1']
    #allocation22 [shape = 'u8[512]{0}', space=vmem, size = 0x400, scoped, tag = 'input window, operand 13, single buffered']
    #allocation23 [shape = 'u8[786432]{0}', space=vmem, size = 0xc0000, scoped, tag = 'input window, operand 14, single buffered']
    #allocation24 [shape = 's32[1]{0}', space=sflag, size = 0x4, scoped, tag = 'scoped memory for tpu_custom_call.1']
    #allocation25 [shape = 'u8[262144]{0}', space=vmem, size = 0x40000, scoped, tag = 'input window, operand 16, single buffered']
    #allocation26 [shape = 'u8[2048]{0}', space=vmem, size = 0x800, scoped, tag = 'input window, operand 19, single buffered']
    #allocation27 [shape = 's32[1]{0}', space=sflag, size = 0x4, scoped, tag = 'scoped memory for tpu_custom_call.1']
    #allocation28 [shape = 'u8[1048576]{0}', space=vmem, size = 0x100000, scoped, tag = 'input window, operand 20, single buffered']
    #allocation29 [shape = 'u8[1048576]{0}', space=vmem, size = 0x100000, scoped, tag = 'input window, operand 22, single buffered']
    #allocation30 [shape = 's32[1]{0}', space=sflag, size = 0x4, scoped, tag = 'scoped memory for tpu_custom_call.1']
    #allocation31 [shape = 'u8[131072]{0}', space=vmem, size = 0x20000, scoped, tag = 'input window, operand 26, single buffered']
    #allocation32 [shape = 'u8[1024]{0}', space=vmem, size = 0x400, scoped, tag = 'input window, operand 27, single buffered']
    #allocation33 [shape = 's32[1]{0}', space=sflag, size = 0x4, scoped, tag = 'scoped memory for tpu_custom_call.1']
    #allocation34 [shape = 'u8[1024]{0}', space=vmem, size = 0x400, scoped, tag = 'input window, operand 29, single buffered']
    #allocation35 [shape = 'u8[131072]{0}', space=vmem, size = 0x20000, scoped, tag = 'input window, operand 30, single buffered']
    #allocation36 [shape = 's32[1]{0}', space=sflag, size = 0x4, scoped, tag = 'scoped memory for tpu_custom_call.1']
    #allocation37 [shape = 'u8[1024]{0}', space=vmem, size = 0x400, scoped, tag = 'output window, operand 0']
    %78 = vsyncpa [#allocation3], 0
    %s79 = scalar_lea.sflag [#allocation3], 1
    %80 = vsyncpa %s79, 0
    %81 = vsyncpa [#allocation6], 0
    %82 = vsyncpa [#allocation9], 0
    %83 = vsyncpa [#allocation12], 0
    %84 = vsyncpa [#allocation15], 0
    %85 = vsyncpa [#allocation18], 0
    %86 = vsyncpa [#allocation21], 0
    %87 = vsyncpa [#allocation24], 0
    %88 = vsyncpa [#allocation27], 0
    %89 = vsyncpa [#allocation30], 0
    %90 = vsyncpa [#allocation33], 0
    %91 = vsyncpa [#allocation36], 0
    %92 = vsyncpa [#allocation4], 0
    %s93 = scalar_lea.sflag [#allocation4], 1
    %94 = vsyncpa %s93, 0
    loop: start=0, step=1, limit=4
    $region2: #{tpu_custom_call.1} parent=1 // loop_pre_header
      _
    $region3: #{tpu_custom_call.1} parent=1 // loop_header
      %s96 = sphi 0, %s100
      %p97 = scmp.ge.s32.totalorder %s96, 4
      %s106 = sphi 0, %s108
      %s109 = sphi 0, %s106
      %s110 = sphi 0, %s109
      %s126 = sphi 0, %s110
      %s130 = sphi 0, %s130
      %s132 = sphi 0, %s130
      %s133 = sphi 0, %s132
      %s147 = sphi 0, %s133
      %s151 = sphi 0, %s151
      %s153 = sphi 0, %s151
      %s154 = sphi 0, %s153
      %s168 = sphi 0, %s154
      %s172 = sphi 0, %s172
      %s174 = sphi 0, %s172
      %s175 = sphi 0, %s174
      %s189 = sphi 0, %s175
      %s193 = sphi 0, %s193
      %s195 = sphi 0, %s193
      %s196 = sphi 0, %s195
      %s210 = sphi 0, %s196
      %s214 = sphi 0, %s214
      %s216 = sphi 0, %s214
      %s217 = sphi 0, %s216
      %s231 = sphi 0, %s217
      %s235 = sphi 0, %s235
      %s237 = sphi 0, %s235
      %s238 = sphi 0, %s237
      %s252 = sphi 0, %s238
      %s256 = sphi 0, %s256
      %s258 = sphi 0, %s256
      %s259 = sphi 0, %s258
      %s273 = sphi 0, %s259
      %s277 = sphi 0, %s277
      %s279 = sphi 0, %s277
      %s280 = sphi 0, %s279
      %s294 = sphi 0, %s280
      %s298 = sphi 0, %s298
      %s300 = sphi 0, %s298
      %s301 = sphi 0, %s300
      %s315 = sphi 0, %s301
      %s319 = sphi 0, %s319
      %s321 = sphi 0, %s319
      %s322 = sphi 0, %s321
      %s336 = sphi 0, %s322
      %s340 = sphi 0, %s340
      %s342 = sphi 0, %s340
      %s343 = sphi 0, %s342
      %s357 = sphi 0, %s343
      %s361 = sphi 0, %s361
      %s363 = sphi 0, %s361
      %s364 = sphi 0, %s363
      %s378 = sphi 0, %s364
      %s382 = sphi 0, %s382
      %s384 = sphi 0, %s382
      %s385 = sphi 0, %s384
      %s399 = sphi 0, %s385
      %s403 = sphi 0, %s403
      %s405 = sphi 0, %s403
      %s406 = sphi 0, %s405
      %s420 = sphi 0, %s406
      %s424 = sphi 0, %s424
      %s426 = sphi 0, %s424
      %s427 = sphi 0, %s426
      %s441 = sphi 0, %s427
      %s445 = sphi 0, %s445
      %s447 = sphi 0, %s445
      %s448 = sphi 0, %s447
      %s462 = sphi 0, %s448
      %s466 = sphi 0, %s466
      %s468 = sphi 0, %s466
      %s469 = sphi 0, %s468
      %s483 = sphi 0, %s469
      %s487 = sphi 0, %s487
      %s489 = sphi 0, %s487
      %s490 = sphi 0, %s489
      %s504 = sphi 0, %s490
      %s508 = sphi 0, %s508
      %s510 = sphi 0, %s508
      %s511 = sphi 0, %s510
      %s525 = sphi 0, %s511
      %s529 = sphi 0, %s529
      %s531 = sphi 0, %s529
      %s532 = sphi 0, %s531
      %s546 = sphi 0, %s532
      %s550 = sphi 0, %s550
      %s552 = sphi 0, %s550
      %s553 = sphi 0, %s552
      %s567 = sphi 0, %s553
      %s571 = sphi 0, %s571
      %s573 = sphi 0, %s571
      %s574 = sphi 0, %s573
      %s588 = sphi 0, %s574
      %s592 = sphi 0, %s592
      %s594 = sphi 0, %s592
      %s595 = sphi 0, %s594
      %s609 = sphi 0, %s595
      %s613 = sphi 0, %s613
      %s615 = sphi 0, %s613
      %s616 = sphi 0, %s615
      %s630 = sphi 0, %s616
      %s634 = sphi 0, %s634
      %s636 = sphi 0, %s634
      %s637 = sphi 0, %s636
      %s651 = sphi 0, %s637
      %s655 = sphi 0, %s655
      %s657 = sphi 0, %s655
      %s658 = sphi 0, %s657
      %s672 = sphi 0, %s658
      %s676 = sphi 0, %s676
      %s678 = sphi 0, %s676
      %s679 = sphi 0, %s678
      %s693 = sphi 0, %s679
      %s697 = sphi 0, %s697
      %s699 = sphi 0, %s697
      %s700 = sphi 0, %s699
      %s714 = sphi 0, %s700
      %s718 = sphi 0, %s718
      %s720 = sphi 0, %s718
      %s721 = sphi 0, %s720
      %s735 = sphi 0, %s721
      %s739 = sphi 0, %s739
      %s741 = sphi 0, %s739
      %s742 = sphi 0, %s741
      %s756 = sphi 0, %s742
      %s760 = sphi 0, %s760
      %s762 = sphi 0, %s760
      %s763 = sphi 0, %s762
      %s777 = sphi 0, %s763
      %s781 = sphi 0, %s781
      %s783 = sphi 0, %s781
      %s784 = sphi 0, %s783
      %s798 = sphi 0, %s784
      %s802 = sphi 0, %s802
      %s804 = sphi 0, %s802
      %s805 = sphi 0, %s804
      %s819 = sphi 0, %s805
      %s823 = sphi 0, %s823
      %s825 = sphi 0, %s823
      %s826 = sphi 0, %s825
      %s840 = sphi 0, %s826
      %s844 = sphi 0, %s844
      %s846 = sphi 0, %s844
      %s847 = sphi 0, %s846
      %s861 = sphi 0, %s847
      %s867 = sphi 0, %s869
      %s870 = sphi 0, %s867
      %s871 = sphi 0, %s870
      %s887 = sphi 0, %s871
    $region4: #{tpu_custom_call.1} parent=1 // loop_header_branch
      %99 = sbr.rel (%p97) target = $region8
    $region5: #{tpu_custom_call.1} parent=1 // loop_body
      %s101 = ssub.s32 %s96, 1
      %s102 = ssub.s32 %s96, 2
      %s103 = sadd.s32 %s96, 1
      %s104 = ssub.s32 %s96, %s103
      %p105 = scmp.eq.s32.totalorder %s104, 0
      %s107 = sadd.s32 %s106, 1
      %s108 = scalar_select %p105, %s106, %s107
      %p111 = pneg %p105
      %p112 = scmp.eq.s32.totalorder %s96, 1
      %p113 = por %p111, %p112
      %p114 = scmp.ne.s32.totalorder %s106, %s109
      %p115 = scmp.eq.s32.totalorder %s96, 0
      %p116 = por %p114, %p115
      %p117 = scmp.ne.s32.totalorder %s106, %s109
      %p118 = scmp.eq.s32.totalorder %s101, 1
      %p119 = por %p117, %p118
      %p120 = scmp.ne.s32.totalorder %s109, %s110
      %p121 = scmp.eq.s32.totalorder %s101, 0
      %p122 = por %p120, %p121
      %p123 = scmp.ne.s32.totalorder %s109, %s110
      %p124 = scmp.eq.s32.totalorder %s102, 1
      %p125 = por %p123, %p124
      %p127 = scmp.ne.s32.totalorder %s110, %s126
      %p128 = scmp.eq.s32.totalorder %s102, 0
      %p129 = por %p127, %p128
      %s131 = sadd.s32 %s130, 1
      %p134 = scmp.eq.s32.totalorder %s96, 1
      %p135 = scmp.ne.s32.totalorder %s130, %s132
      %p136 = scmp.eq.s32.totalorder %s96, 0
      %p137 = por %p135, %p136
      %p138 = scmp.ne.s32.totalorder %s130, %s132
      %p139 = scmp.eq.s32.totalorder %s101, 1
      %p140 = por %p138, %p139
      %p141 = scmp.ne.s32.totalorder %s132, %s133
      %p142 = scmp.eq.s32.totalorder %s101, 0
      %p143 = por %p141, %p142
      %p144 = scmp.ne.s32.totalorder %s132, %s133
      %p145 = scmp.eq.s32.totalorder %s102, 1
      %p146 = por %p144, %p145
      %p148 = scmp.ne.s32.totalorder %s133, %s147
      %p149 = scmp.eq.s32.totalorder %s102, 0
      %p150 = por %p148, %p149
      %s152 = sadd.s32 %s151, 1
      %p155 = scmp.eq.s32.totalorder %s96, 1
      %p156 = scmp.ne.s32.totalorder %s151, %s153
      %p157 = scmp.eq.s32.totalorder %s96, 0
      %p158 = por %p156, %p157
      %p159 = scmp.ne.s32.totalorder %s151, %s153
      %p160 = scmp.eq.s32.totalorder %s101, 1
      %p161 = por %p159, %p160
      %p162 = scmp.ne.s32.totalorder %s153, %s154
      %p163 = scmp.eq.s32.totalorder %s101, 0
      %p164 = por %p162, %p163
      %p165 = scmp.ne.s32.totalorder %s153, %s154
      %p166 = scmp.eq.s32.totalorder %s102, 1
      %p167 = por %p165, %p166
      %p169 = scmp.ne.s32.totalorder %s154, %s168
      %p170 = scmp.eq.s32.totalorder %s102, 0
      %p171 = por %p169, %p170
      %s173 = sadd.s32 %s172, 1
      %p176 = scmp.eq.s32.totalorder %s96, 1
      %p177 = scmp.ne.s32.totalorder %s172, %s174
      %p178 = scmp.eq.s32.totalorder %s96, 0
      %p179 = por %p177, %p178
      %p180 = scmp.ne.s32.totalorder %s172, %s174
      %p181 = scmp.eq.s32.totalorder %s101, 1
      %p182 = por %p180, %p181
      %p183 = scmp.ne.s32.totalorder %s174, %s175
      %p184 = scmp.eq.s32.totalorder %s101, 0
      %p185 = por %p183, %p184
      %p186 = scmp.ne.s32.totalorder %s174, %s175
      %p187 = scmp.eq.s32.totalorder %s102, 1
      %p188 = por %p186, %p187
      %p190 = scmp.ne.s32.totalorder %s175, %s189
      %p191 = scmp.eq.s32.totalorder %s102, 0
      %p192 = por %p190, %p191
      %s194 = sadd.s32 %s193, 1
      %p197 = scmp.eq.s32.totalorder %s96, 1
      %p198 = scmp.ne.s32.totalorder %s193, %s195
      %p199 = scmp.eq.s32.totalorder %s96, 0
      %p200 = por %p198, %p199
      %p201 = scmp.ne.s32.totalorder %s193, %s195
      %p202 = scmp.eq.s32.totalorder %s101, 1
      %p203 = por %p201, %p202
      %p204 = scmp.ne.s32.totalorder %s195, %s196
      %p205 = scmp.eq.s32.totalorder %s101, 0
      %p206 = por %p204, %p205
      %p207 = scmp.ne.s32.totalorder %s195, %s196
      %p208 = scmp.eq.s32.totalorder %s102, 1
      %p209 = por %p207, %p208
      %p211 = scmp.ne.s32.totalorder %s196, %s210
      %p212 = scmp.eq.s32.totalorder %s102, 0
      %p213 = por %p211, %p212
      %s215 = sadd.s32 %s214, 1
      %p218 = scmp.eq.s32.totalorder %s96, 1
      %p219 = scmp.ne.s32.totalorder %s214, %s216
      %p220 = scmp.eq.s32.totalorder %s96, 0
      %p221 = por %p219, %p220
      %p222 = scmp.ne.s32.totalorder %s214, %s216
      %p223 = scmp.eq.s32.totalorder %s101, 1
      %p224 = por %p222, %p223
      %p225 = scmp.ne.s32.totalorder %s216, %s217
      %p226 = scmp.eq.s32.totalorder %s101, 0
      %p227 = por %p225, %p226
      %p228 = scmp.ne.s32.totalorder %s216, %s217
      %p229 = scmp.eq.s32.totalorder %s102, 1
      %p230 = por %p228, %p229
      %p232 = scmp.ne.s32.totalorder %s217, %s231
      %p233 = scmp.eq.s32.totalorder %s102, 0
      %p234 = por %p232, %p233
      %s236 = sadd.s32 %s235, 1
      %p239 = scmp.eq.s32.totalorder %s96, 1
      %p240 = scmp.ne.s32.totalorder %s235, %s237
      %p241 = scmp.eq.s32.totalorder %s96, 0
      %p242 = por %p240, %p241
      %p243 = scmp.ne.s32.totalorder %s235, %s237
      %p244 = scmp.eq.s32.totalorder %s101, 1
      %p245 = por %p243, %p244
      %p246 = scmp.ne.s32.totalorder %s237, %s238
      %p247 = scmp.eq.s32.totalorder %s101, 0
      %p248 = por %p246, %p247
      %p249 = scmp.ne.s32.totalorder %s237, %s238
      %p250 = scmp.eq.s32.totalorder %s102, 1
      %p251 = por %p249, %p250
      %p253 = scmp.ne.s32.totalorder %s238, %s252
      %p254 = scmp.eq.s32.totalorder %s102, 0
      %p255 = por %p253, %p254
      %s257 = sadd.s32 %s256, 1
      %p260 = scmp.eq.s32.totalorder %s96, 1
      %p261 = scmp.ne.s32.totalorder %s256, %s258
      %p262 = scmp.eq.s32.totalorder %s96, 0
      %p263 = por %p261, %p262
      %p264 = scmp.ne.s32.totalorder %s256, %s258
      %p265 = scmp.eq.s32.totalorder %s101, 1
      %p266 = por %p264, %p265
      %p267 = scmp.ne.s32.totalorder %s258, %s259
      %p268 = scmp.eq.s32.totalorder %s101, 0
      %p269 = por %p267, %p268
      %p270 = scmp.ne.s32.totalorder %s258, %s259
      %p271 = scmp.eq.s32.totalorder %s102, 1
      %p272 = por %p270, %p271
      %p274 = scmp.ne.s32.totalorder %s259, %s273
      %p275 = scmp.eq.s32.totalorder %s102, 0
      %p276 = por %p274, %p275
      %s278 = sadd.s32 %s277, 1
      %p281 = scmp.eq.s32.totalorder %s96, 1
      %p282 = scmp.ne.s32.totalorder %s277, %s279
      %p283 = scmp.eq.s32.totalorder %s96, 0
      %p284 = por %p282, %p283
      %p285 = scmp.ne.s32.totalorder %s277, %s279
      %p286 = scmp.eq.s32.totalorder %s101, 1
      %p287 = por %p285, %p286
      %p288 = scmp.ne.s32.totalorder %s279, %s280
      %p289 = scmp.eq.s32.totalorder %s101, 0
      %p290 = por %p288, %p289
      %p291 = scmp.ne.s32.totalorder %s279, %s280
      %p292 = scmp.eq.s32.totalorder %s102, 1
      %p293 = por %p291, %p292
      %p295 = scmp.ne.s32.totalorder %s280, %s294
      %p296 = scmp.eq.s32.totalorder %s102, 0
      %p297 = por %p295, %p296
      %s299 = sadd.s32 %s298, 1
      %p302 = scmp.eq.s32.totalorder %s96, 1
      %p303 = scmp.ne.s32.totalorder %s298, %s300
      %p304 = scmp.eq.s32.totalorder %s96, 0
      %p305 = por %p303, %p304
      %p306 = scmp.ne.s32.totalorder %s298, %s300
      %p307 = scmp.eq.s32.totalorder %s101, 1
      %p308 = por %p306, %p307
      %p309 = scmp.ne.s32.totalorder %s300, %s301
      %p310 = scmp.eq.s32.totalorder %s101, 0
      %p311 = por %p309, %p310
      %p312 = scmp.ne.s32.totalorder %s300, %s301
      %p313 = scmp.eq.s32.totalorder %s102, 1
      %p314 = por %p312, %p313
      %p316 = scmp.ne.s32.totalorder %s301, %s315
      %p317 = scmp.eq.s32.totalorder %s102, 0
      %p318 = por %p316, %p317
      %s320 = sadd.s32 %s319, 1
      %p323 = scmp.eq.s32.totalorder %s96, 1
      %p324 = scmp.ne.s32.totalorder %s319, %s321
      %p325 = scmp.eq.s32.totalorder %s96, 0
      %p326 = por %p324, %p325
      %p327 = scmp.ne.s32.totalorder %s319, %s321
      %p328 = scmp.eq.s32.totalorder %s101, 1
      %p329 = por %p327, %p328
      %p330 = scmp.ne.s32.totalorder %s321, %s322
      %p331 = scmp.eq.s32.totalorder %s101, 0
      %p332 = por %p330, %p331
      %p333 = scmp.ne.s32.totalorder %s321, %s322
      %p334 = scmp.eq.s32.totalorder %s102, 1
      %p335 = por %p333, %p334
      %p337 = scmp.ne.s32.totalorder %s322, %s336
      %p338 = scmp.eq.s32.totalorder %s102, 0
      %p339 = por %p337, %p338
      %s341 = sadd.s32 %s340, 1
      %p344 = scmp.eq.s32.totalorder %s96, 1
      %p345 = scmp.ne.s32.totalorder %s340, %s342
      %p346 = scmp.eq.s32.totalorder %s96, 0
      %p347 = por %p345, %p346
      %p348 = scmp.ne.s32.totalorder %s340, %s342
      %p349 = scmp.eq.s32.totalorder %s101, 1
      %p350 = por %p348, %p349
      %p351 = scmp.ne.s32.totalorder %s342, %s343
      %p352 = scmp.eq.s32.totalorder %s101, 0
      %p353 = por %p351, %p352
      %p354 = scmp.ne.s32.totalorder %s342, %s343
      %p355 = scmp.eq.s32.totalorder %s102, 1
      %p356 = por %p354, %p355
      %p358 = scmp.ne.s32.totalorder %s343, %s357
      %p359 = scmp.eq.s32.totalorder %s102, 0
      %p360 = por %p358, %p359
      %s362 = sadd.s32 %s361, 1
      %p365 = scmp.eq.s32.totalorder %s96, 1
      %p366 = scmp.ne.s32.totalorder %s361, %s363
      %p367 = scmp.eq.s32.totalorder %s96, 0
      %p368 = por %p366, %p367
      %p369 = scmp.ne.s32.totalorder %s361, %s363
      %p370 = scmp.eq.s32.totalorder %s101, 1
      %p371 = por %p369, %p370
      %p372 = scmp.ne.s32.totalorder %s363, %s364
      %p373 = scmp.eq.s32.totalorder %s101, 0
      %p374 = por %p372, %p373
      %p375 = scmp.ne.s32.totalorder %s363, %s364
      %p376 = scmp.eq.s32.totalorder %s102, 1
      %p377 = por %p375, %p376
      %p379 = scmp.ne.s32.totalorder %s364, %s378
      %p380 = scmp.eq.s32.totalorder %s102, 0
      %p381 = por %p379, %p380
      %s383 = sadd.s32 %s382, 1
      %p386 = scmp.eq.s32.totalorder %s96, 1
      %p387 = scmp.ne.s32.totalorder %s382, %s384
      %p388 = scmp.eq.s32.totalorder %s96, 0
      %p389 = por %p387, %p388
      %p390 = scmp.ne.s32.totalorder %s382, %s384
      %p391 = scmp.eq.s32.totalorder %s101, 1
      %p392 = por %p390, %p391
      %p393 = scmp.ne.s32.totalorder %s384, %s385
      %p394 = scmp.eq.s32.totalorder %s101, 0
      %p395 = por %p393, %p394
      %p396 = scmp.ne.s32.totalorder %s384, %s385
      %p397 = scmp.eq.s32.totalorder %s102, 1
      %p398 = por %p396, %p397
      %p400 = scmp.ne.s32.totalorder %s385, %s399
      %p401 = scmp.eq.s32.totalorder %s102, 0
      %p402 = por %p400, %p401
      %s404 = sadd.s32 %s403, 1
      %p407 = scmp.eq.s32.totalorder %s96, 1
      %p408 = scmp.ne.s32.totalorder %s403, %s405
      %p409 = scmp.eq.s32.totalorder %s96, 0
      %p410 = por %p408, %p409
      %p411 = scmp.ne.s32.totalorder %s403, %s405
      %p412 = scmp.eq.s32.totalorder %s101, 1
      %p413 = por %p411, %p412
      %p414 = scmp.ne.s32.totalorder %s405, %s406
      %p415 = scmp.eq.s32.totalorder %s101, 0
      %p416 = por %p414, %p415
      %p417 = scmp.ne.s32.totalorder %s405, %s406
      %p418 = scmp.eq.s32.totalorder %s102, 1
      %p419 = por %p417, %p418
      %p421 = scmp.ne.s32.totalorder %s406, %s420
      %p422 = scmp.eq.s32.totalorder %s102, 0
      %p423 = por %p421, %p422
      %s425 = sadd.s32 %s424, 1
      %p428 = scmp.eq.s32.totalorder %s96, 1
      %p429 = scmp.ne.s32.totalorder %s424, %s426
      %p430 = scmp.eq.s32.totalorder %s96, 0
      %p431 = por %p429, %p430
      %p432 = scmp.ne.s32.totalorder %s424, %s426
      %p433 = scmp.eq.s32.totalorder %s101, 1
      %p434 = por %p432, %p433
      %p435 = scmp.ne.s32.totalorder %s426, %s427
      %p436 = scmp.eq.s32.totalorder %s101, 0
      %p437 = por %p435, %p436
      %p438 = scmp.ne.s32.totalorder %s426, %s427
      %p439 = scmp.eq.s32.totalorder %s102, 1
      %p440 = por %p438, %p439
      %p442 = scmp.ne.s32.totalorder %s427, %s441
      %p443 = scmp.eq.s32.totalorder %s102, 0
      %p444 = por %p442, %p443
      %s446 = sadd.s32 %s445, 1
      %p449 = scmp.eq.s32.totalorder %s96, 1
      %p450 = scmp.ne.s32.totalorder %s445, %s447
      %p451 = scmp.eq.s32.totalorder %s96, 0
      %p452 = por %p450, %p451
      %p453 = scmp.ne.s32.totalorder %s445, %s447
      %p454 = scmp.eq.s32.totalorder %s101, 1
      %p455 = por %p453, %p454
      %p456 = scmp.ne.s32.totalorder %s447, %s448
      %p457 = scmp.eq.s32.totalorder %s101, 0
      %p458 = por %p456, %p457
      %p459 = scmp.ne.s32.totalorder %s447, %s448
      %p460 = scmp.eq.s32.totalorder %s102, 1
      %p461 = por %p459, %p460
      %p463 = scmp.ne.s32.totalorder %s448, %s462
      %p464 = scmp.eq.s32.totalorder %s102, 0
      %p465 = por %p463, %p464
      %s467 = sadd.s32 %s466, 1
      %p470 = scmp.eq.s32.totalorder %s96, 1
      %p471 = scmp.ne.s32.totalorder %s466, %s468
      %p472 = scmp.eq.s32.totalorder %s96, 0
      %p473 = por %p471, %p472
      %p474 = scmp.ne.s32.totalorder %s466, %s468
      %p475 = scmp.eq.s32.totalorder %s101, 1
      %p476 = por %p474, %p475
      %p477 = scmp.ne.s32.totalorder %s468, %s469
      %p478 = scmp.eq.s32.totalorder %s101, 0
      %p479 = por %p477, %p478
      %p480 = scmp.ne.s32.totalorder %s468, %s469
      %p481 = scmp.eq.s32.totalorder %s102, 1
      %p482 = por %p480, %p481
      %p484 = scmp.ne.s32.totalorder %s469, %s483
      %p485 = scmp.eq.s32.totalorder %s102, 0
      %p486 = por %p484, %p485
      %s488 = sadd.s32 %s487, 1
      %p491 = scmp.eq.s32.totalorder %s96, 1
      %p492 = scmp.ne.s32.totalorder %s487, %s489
      %p493 = scmp.eq.s32.totalorder %s96, 0
      %p494 = por %p492, %p493
      %p495 = scmp.ne.s32.totalorder %s487, %s489
      %p496 = scmp.eq.s32.totalorder %s101, 1
      %p497 = por %p495, %p496
      %p498 = scmp.ne.s32.totalorder %s489, %s490
      %p499 = scmp.eq.s32.totalorder %s101, 0
      %p500 = por %p498, %p499
      %p501 = scmp.ne.s32.totalorder %s489, %s490
      %p502 = scmp.eq.s32.totalorder %s102, 1
      %p503 = por %p501, %p502
      %p505 = scmp.ne.s32.totalorder %s490, %s504
      %p506 = scmp.eq.s32.totalorder %s102, 0
      %p507 = por %p505, %p506
      %s509 = sadd.s32 %s508, 1
      %p512 = scmp.eq.s32.totalorder %s96, 1
      %p513 = scmp.ne.s32.totalorder %s508, %s510
      %p514 = scmp.eq.s32.totalorder %s96, 0
      %p515 = por %p513, %p514
      %p516 = scmp.ne.s32.totalorder %s508, %s510
      %p517 = scmp.eq.s32.totalorder %s101, 1
      %p518 = por %p516, %p517
      %p519 = scmp.ne.s32.totalorder %s510, %s511
      %p520 = scmp.eq.s32.totalorder %s101, 0
      %p521 = por %p519, %p520
      %p522 = scmp.ne.s32.totalorder %s510, %s511
      %p523 = scmp.eq.s32.totalorder %s102, 1
      %p524 = por %p522, %p523
      %p526 = scmp.ne.s32.totalorder %s511, %s525
      %p527 = scmp.eq.s32.totalorder %s102, 0
      %p528 = por %p526, %p527
      %s530 = sadd.s32 %s529, 1
      %p533 = scmp.eq.s32.totalorder %s96, 1
      %p534 = scmp.ne.s32.totalorder %s529, %s531
      %p535 = scmp.eq.s32.totalorder %s96, 0
      %p536 = por %p534, %p535
      %p537 = scmp.ne.s32.totalorder %s529, %s531
      %p538 = scmp.eq.s32.totalorder %s101, 1
      %p539 = por %p537, %p538
      %p540 = scmp.ne.s32.totalorder %s531, %s532
      %p541 = scmp.eq.s32.totalorder %s101, 0
      %p542 = por %p540, %p541
      %p543 = scmp.ne.s32.totalorder %s531, %s532
      %p544 = scmp.eq.s32.totalorder %s102, 1
      %p545 = por %p543, %p544
      %p547 = scmp.ne.s32.totalorder %s532, %s546
      %p548 = scmp.eq.s32.totalorder %s102, 0
      %p549 = por %p547, %p548
      %s551 = sadd.s32 %s550, 1
      %p554 = scmp.eq.s32.totalorder %s96, 1
      %p555 = scmp.ne.s32.totalorder %s550, %s552
      %p556 = scmp.eq.s32.totalorder %s96, 0
      %p557 = por %p555, %p556
      %p558 = scmp.ne.s32.totalorder %s550, %s552
      %p559 = scmp.eq.s32.totalorder %s101, 1
      %p560 = por %p558, %p559
      %p561 = scmp.ne.s32.totalorder %s552, %s553
      %p562 = scmp.eq.s32.totalorder %s101, 0
      %p563 = por %p561, %p562
      %p564 = scmp.ne.s32.totalorder %s552, %s553
      %p565 = scmp.eq.s32.totalorder %s102, 1
      %p566 = por %p564, %p565
      %p568 = scmp.ne.s32.totalorder %s553, %s567
      %p569 = scmp.eq.s32.totalorder %s102, 0
      %p570 = por %p568, %p569
      %s572 = sadd.s32 %s571, 1
      %p575 = scmp.eq.s32.totalorder %s96, 1
      %p576 = scmp.ne.s32.totalorder %s571, %s573
      %p577 = scmp.eq.s32.totalorder %s96, 0
      %p578 = por %p576, %p577
      %p579 = scmp.ne.s32.totalorder %s571, %s573
      %p580 = scmp.eq.s32.totalorder %s101, 1
      %p581 = por %p579, %p580
      %p582 = scmp.ne.s32.totalorder %s573, %s574
      %p583 = scmp.eq.s32.totalorder %s101, 0
      %p584 = por %p582, %p583
      %p585 = scmp.ne.s32.totalorder %s573, %s574
      %p586 = scmp.eq.s32.totalorder %s102, 1
      %p587 = por %p585, %p586
      %p589 = scmp.ne.s32.totalorder %s574, %s588
      %p590 = scmp.eq.s32.totalorder %s102, 0
      %p591 = por %p589, %p590
      %s593 = sadd.s32 %s592, 1
      %p596 = scmp.eq.s32.totalorder %s96, 1
      %p597 = scmp.ne.s32.totalorder %s592, %s594
      %p598 = scmp.eq.s32.totalorder %s96, 0
      %p599 = por %p597, %p598
      %p600 = scmp.ne.s32.totalorder %s592, %s594
      %p601 = scmp.eq.s32.totalorder %s101, 1
      %p602 = por %p600, %p601
      %p603 = scmp.ne.s32.totalorder %s594, %s595
      %p604 = scmp.eq.s32.totalorder %s101, 0
      %p605 = por %p603, %p604
      %p606 = scmp.ne.s32.totalorder %s594, %s595
      %p607 = scmp.eq.s32.totalorder %s102, 1
      %p608 = por %p606, %p607
      %p610 = scmp.ne.s32.totalorder %s595, %s609
      %p611 = scmp.eq.s32.totalorder %s102, 0
      %p612 = por %p610, %p611
      %s614 = sadd.s32 %s613, 1
      %p617 = scmp.eq.s32.totalorder %s96, 1
      %p618 = scmp.ne.s32.totalorder %s613, %s615
      %p619 = scmp.eq.s32.totalorder %s96, 0
      %p620 = por %p618, %p619
      %p621 = scmp.ne.s32.totalorder %s613, %s615
      %p622 = scmp.eq.s32.totalorder %s101, 1
      %p623 = por %p621, %p622
      %p624 = scmp.ne.s32.totalorder %s615, %s616
      %p625 = scmp.eq.s32.totalorder %s101, 0
      %p626 = por %p624, %p625
      %p627 = scmp.ne.s32.totalorder %s615, %s616
      %p628 = scmp.eq.s32.totalorder %s102, 1
      %p629 = por %p627, %p628
      %p631 = scmp.ne.s32.totalorder %s616, %s630
      %p632 = scmp.eq.s32.totalorder %s102, 0
      %p633 = por %p631, %p632
      %s635 = sadd.s32 %s634, 1
      %p638 = scmp.eq.s32.totalorder %s96, 1
      %p639 = scmp.ne.s32.totalorder %s634, %s636
      %p640 = scmp.eq.s32.totalorder %s96, 0
      %p641 = por %p639, %p640
      %p642 = scmp.ne.s32.totalorder %s634, %s636
      %p643 = scmp.eq.s32.totalorder %s101, 1
      %p644 = por %p642, %p643
      %p645 = scmp.ne.s32.totalorder %s636, %s637
      %p646 = scmp.eq.s32.totalorder %s101, 0
      %p647 = por %p645, %p646
      %p648 = scmp.ne.s32.totalorder %s636, %s637
      %p649 = scmp.eq.s32.totalorder %s102, 1
      %p650 = por %p648, %p649
      %p652 = scmp.ne.s32.totalorder %s637, %s651
      %p653 = scmp.eq.s32.totalorder %s102, 0
      %p654 = por %p652, %p653
      %s656 = sadd.s32 %s655, 1
      %p659 = scmp.eq.s32.totalorder %s96, 1
      %p660 = scmp.ne.s32.totalorder %s655, %s657
      %p661 = scmp.eq.s32.totalorder %s96, 0
      %p662 = por %p660, %p661
      %p663 = scmp.ne.s32.totalorder %s655, %s657
      %p664 = scmp.eq.s32.totalorder %s101, 1
      %p665 = por %p663, %p664
      %p666 = scmp.ne.s32.totalorder %s657, %s658
      %p667 = scmp.eq.s32.totalorder %s101, 0
      %p668 = por %p666, %p667
      %p669 = scmp.ne.s32.totalorder %s657, %s658
      %p670 = scmp.eq.s32.totalorder %s102, 1
      %p671 = por %p669, %p670
      %p673 = scmp.ne.s32.totalorder %s658, %s672
      %p674 = scmp.eq.s32.totalorder %s102, 0
      %p675 = por %p673, %p674
      %s677 = sadd.s32 %s676, 1
      %p680 = scmp.eq.s32.totalorder %s96, 1
      %p681 = scmp.ne.s32.totalorder %s676, %s678
      %p682 = scmp.eq.s32.totalorder %s96, 0
      %p683 = por %p681, %p682
      %p684 = scmp.ne.s32.totalorder %s676, %s678
      %p685 = scmp.eq.s32.totalorder %s101, 1
      %p686 = por %p684, %p685
      %p687 = scmp.ne.s32.totalorder %s678, %s679
      %p688 = scmp.eq.s32.totalorder %s101, 0
      %p689 = por %p687, %p688
      %p690 = scmp.ne.s32.totalorder %s678, %s679
      %p691 = scmp.eq.s32.totalorder %s102, 1
      %p692 = por %p690, %p691
      %p694 = scmp.ne.s32.totalorder %s679, %s693
      %p695 = scmp.eq.s32.totalorder %s102, 0
      %p696 = por %p694, %p695
      %s698 = sadd.s32 %s697, 1
      %p701 = scmp.eq.s32.totalorder %s96, 1
      %p702 = scmp.ne.s32.totalorder %s697, %s699
      %p703 = scmp.eq.s32.totalorder %s96, 0
      %p704 = por %p702, %p703
      %p705 = scmp.ne.s32.totalorder %s697, %s699
      %p706 = scmp.eq.s32.totalorder %s101, 1
      %p707 = por %p705, %p706
      %p708 = scmp.ne.s32.totalorder %s699, %s700
      %p709 = scmp.eq.s32.totalorder %s101, 0
      %p710 = por %p708, %p709
      %p711 = scmp.ne.s32.totalorder %s699, %s700
      %p712 = scmp.eq.s32.totalorder %s102, 1
      %p713 = por %p711, %p712
      %p715 = scmp.ne.s32.totalorder %s700, %s714
      %p716 = scmp.eq.s32.totalorder %s102, 0
      %p717 = por %p715, %p716
      %s719 = sadd.s32 %s718, 1
      %p722 = scmp.eq.s32.totalorder %s96, 1
      %p723 = scmp.ne.s32.totalorder %s718, %s720
      %p724 = scmp.eq.s32.totalorder %s96, 0
      %p725 = por %p723, %p724
      %p726 = scmp.ne.s32.totalorder %s718, %s720
      %p727 = scmp.eq.s32.totalorder %s101, 1
      %p728 = por %p726, %p727
      %p729 = scmp.ne.s32.totalorder %s720, %s721
      %p730 = scmp.eq.s32.totalorder %s101, 0
      %p731 = por %p729, %p730
      %p732 = scmp.ne.s32.totalorder %s720, %s721
      %p733 = scmp.eq.s32.totalorder %s102, 1
      %p734 = por %p732, %p733
      %p736 = scmp.ne.s32.totalorder %s721, %s735
      %p737 = scmp.eq.s32.totalorder %s102, 0
      %p738 = por %p736, %p737
      %s740 = sadd.s32 %s739, 1
      %p743 = scmp.eq.s32.totalorder %s96, 1
      %p744 = scmp.ne.s32.totalorder %s739, %s741
      %p745 = scmp.eq.s32.totalorder %s96, 0
      %p746 = por %p744, %p745
      %p747 = scmp.ne.s32.totalorder %s739, %s741
      %p748 = scmp.eq.s32.totalorder %s101, 1
      %p749 = por %p747, %p748
      %p750 = scmp.ne.s32.totalorder %s741, %s742
      %p751 = scmp.eq.s32.totalorder %s101, 0
      %p752 = por %p750, %p751
      %p753 = scmp.ne.s32.totalorder %s741, %s742
      %p754 = scmp.eq.s32.totalorder %s102, 1
      %p755 = por %p753, %p754
      %p757 = scmp.ne.s32.totalorder %s742, %s756
      %p758 = scmp.eq.s32.totalorder %s102, 0
      %p759 = por %p757, %p758
      %s761 = sadd.s32 %s760, 1
      %p764 = scmp.eq.s32.totalorder %s96, 1
      %p765 = scmp.ne.s32.totalorder %s760, %s762
      %p766 = scmp.eq.s32.totalorder %s96, 0
      %p767 = por %p765, %p766
      %p768 = scmp.ne.s32.totalorder %s760, %s762
      %p769 = scmp.eq.s32.totalorder %s101, 1
      %p770 = por %p768, %p769
      %p771 = scmp.ne.s32.totalorder %s762, %s763
      %p772 = scmp.eq.s32.totalorder %s101, 0
      %p773 = por %p771, %p772
      %p774 = scmp.ne.s32.totalorder %s762, %s763
      %p775 = scmp.eq.s32.totalorder %s102, 1
      %p776 = por %p774, %p775
      %p778 = scmp.ne.s32.totalorder %s763, %s777
      %p779 = scmp.eq.s32.totalorder %s102, 0
      %p780 = por %p778, %p779
      %s782 = sadd.s32 %s781, 1
      %p785 = scmp.eq.s32.totalorder %s96, 1
      %p786 = scmp.ne.s32.totalorder %s781, %s783
      %p787 = scmp.eq.s32.totalorder %s96, 0
      %p788 = por %p786, %p787
      %p789 = scmp.ne.s32.totalorder %s781, %s783
      %p790 = scmp.eq.s32.totalorder %s101, 1
      %p791 = por %p789, %p790
      %p792 = scmp.ne.s32.totalorder %s783, %s784
      %p793 = scmp.eq.s32.totalorder %s101, 0
      %p794 = por %p792, %p793
      %p795 = scmp.ne.s32.totalorder %s783, %s784
      %p796 = scmp.eq.s32.totalorder %s102, 1
      %p797 = por %p795, %p796
      %p799 = scmp.ne.s32.totalorder %s784, %s798
      %p800 = scmp.eq.s32.totalorder %s102, 0
      %p801 = por %p799, %p800
      %s803 = sadd.s32 %s802, 1
      %p806 = scmp.eq.s32.totalorder %s96, 1
      %p807 = scmp.ne.s32.totalorder %s802, %s804
      %p808 = scmp.eq.s32.totalorder %s96, 0
      %p809 = por %p807, %p808
      %p810 = scmp.ne.s32.totalorder %s802, %s804
      %p811 = scmp.eq.s32.totalorder %s101, 1
      %p812 = por %p810, %p811
      %p813 = scmp.ne.s32.totalorder %s804, %s805
      %p814 = scmp.eq.s32.totalorder %s101, 0
      %p815 = por %p813, %p814
      %p816 = scmp.ne.s32.totalorder %s804, %s805
      %p817 = scmp.eq.s32.totalorder %s102, 1
      %p818 = por %p816, %p817
      %p820 = scmp.ne.s32.totalorder %s805, %s819
      %p821 = scmp.eq.s32.totalorder %s102, 0
      %p822 = por %p820, %p821
      %s824 = sadd.s32 %s823, 1
      %p827 = scmp.eq.s32.totalorder %s96, 1
      %p828 = scmp.ne.s32.totalorder %s823, %s825
      %p829 = scmp.eq.s32.totalorder %s96, 0
      %p830 = por %p828, %p829
      %p831 = scmp.ne.s32.totalorder %s823, %s825
      %p832 = scmp.eq.s32.totalorder %s101, 1
      %p833 = por %p831, %p832
      %p834 = scmp.ne.s32.totalorder %s825, %s826
      %p835 = scmp.eq.s32.totalorder %s101, 0
      %p836 = por %p834, %p835
      %p837 = scmp.ne.s32.totalorder %s825, %s826
      %p838 = scmp.eq.s32.totalorder %s102, 1
      %p839 = por %p837, %p838
      %p841 = scmp.ne.s32.totalorder %s826, %s840
      %p842 = scmp.eq.s32.totalorder %s102, 0
      %p843 = por %p841, %p842
      %s845 = sadd.s32 %s844, 1
      %p848 = scmp.eq.s32.totalorder %s96, 1
      %p849 = scmp.ne.s32.totalorder %s844, %s846
      %p850 = scmp.eq.s32.totalorder %s96, 0
      %p851 = por %p849, %p850
      %p852 = scmp.ne.s32.totalorder %s844, %s846
      %p853 = scmp.eq.s32.totalorder %s101, 1
      %p854 = por %p852, %p853
      %p855 = scmp.ne.s32.totalorder %s846, %s847
      %p856 = scmp.eq.s32.totalorder %s101, 0
      %p857 = por %p855, %p856
      %p858 = scmp.ne.s32.totalorder %s846, %s847
      %p859 = scmp.eq.s32.totalorder %s102, 1
      %p860 = por %p858, %p859
      %p862 = scmp.ne.s32.totalorder %s847, %s861
      %p863 = scmp.eq.s32.totalorder %s102, 0
      %p864 = por %p862, %p863
      %s865 = ssub.s32 %s96, %s103
      %p866 = scmp.eq.s32.totalorder %s865, 0
      %s868 = sadd.s32 %s867, 1
      %s869 = scalar_select %p866, %s867, %s868
      %p872 = pneg %p866
      %p873 = scmp.eq.s32.totalorder %s96, 1
      %p874 = por %p872, %p873
      %p875 = scmp.ne.s32.totalorder %s867, %s870
      %p876 = scmp.eq.s32.totalorder %s96, 0
      %p877 = por %p875, %p876
      %p878 = scmp.ne.s32.totalorder %s867, %s870
      %p879 = scmp.eq.s32.totalorder %s101, 1
      %p880 = por %p878, %p879
      %p881 = scmp.ne.s32.totalorder %s870, %s871
      %p882 = scmp.eq.s32.totalorder %s101, 0
      %p883 = por %p881, %p882
      %p884 = scmp.ne.s32.totalorder %s870, %s871
      %p885 = scmp.eq.s32.totalorder %s102, 1
      %p886 = por %p884, %p885
      %p888 = scmp.ne.s32.totalorder %s871, %s887
      %p889 = scmp.eq.s32.totalorder %s102, 0
      %p890 = por %p888, %p889
      %p891 = scmp.le.s32.totalorder 1, %s96
      %p892 = scmp.lt.s32.totalorder %s96, 3
      %p893 = pnand %p891, %p892
      %p894 = pneg %p893
      // Predicated region
      $region9: #{tpu_custom_call.1} parent=5 // pred_check
        _
      $region10: #{tpu_custom_call.1} parent=5 // pred_check_branch
        %896 = sbr.rel (%p893) target = $region12
      $region11: #{tpu_custom_call.1} parent=5 // pred_region
        %s897 = ssub.s32 %s96, 1
        // Predicated region
        $region13: #{tpu_custom_call.1} parent=11 // pred_check
          %p898 = pneg %p143
        $region14: #{tpu_custom_call.1} parent=11 // pred_check_branch
          %900 = sbr.rel (%p898) target = $region16
        $region15: #{tpu_custom_call.1} parent=11 // pred_region
          %s902 = ssub.s32 128, 128
          %903 = vsyncadd [#allocation6], %s902
          %s905 = sshll.u32 [#allocation5], 4
          %s906 = int_to_ptr.vmem [resolvable:$true] %s905
          %908 = dma.hbm_to_vmem [thread:$0]  %s3, 128, %s906, [#allocation6]
        $region16: #{tpu_custom_call.1} parent=11 // pred_fallthru
          _
        // Predicated region
        $region17: #{tpu_custom_call.1} parent=11 // pred_check
          %p909 = pneg %p164
        $region18: #{tpu_custom_call.1} parent=11 // pred_check_branch
          %911 = sbr.rel (%p909) target = $region20
        $region19: #{tpu_custom_call.1} parent=11 // pred_region
          %s913 = ssub.s32 256, 256
          %914 = vsyncadd [#allocation6], %s913
          %s915 = sshll.u32 [#allocation7], 4
          %s916 = int_to_ptr.vmem [resolvable:$true] %s915
          %921 = dma.hbm_to_vmem [thread:$0]  %s5, 256, %s916, [#allocation6], 128, 128, 8
        $region20: #{tpu_custom_call.1} parent=11 // pred_fallthru
          _
        // Predicated region
        $region21: #{tpu_custom_call.1} parent=11 // pred_check
          %p922 = pneg %p185
        $region22: #{tpu_custom_call.1} parent=11 // pred_check_branch
          %924 = sbr.rel (%p922) target = $region24
        $region23: #{tpu_custom_call.1} parent=11 // pred_region
          %s926 = ssub.s32 16, 16
          %927 = vsyncadd [#allocation9], %s926
          %s929 = sshll.u32 [#allocation8], 4
          %s930 = int_to_ptr.vmem [resolvable:$true] %s929
          %932 = dma.hbm_to_vmem [thread:$0]  %s7, 16, %s930, [#allocation9]
        $region24: #{tpu_custom_call.1} parent=11 // pred_fallthru
          _
        // Predicated region
        $region25: #{tpu_custom_call.1} parent=11 // pred_check
          %p933 = pneg %p206
        $region26: #{tpu_custom_call.1} parent=11 // pred_check_branch
          %935 = sbr.rel (%p933) target = $region28
        $region27: #{tpu_custom_call.1} parent=11 // pred_region
          %s937 = ssub.s32 16, 16
          %938 = vsyncadd [#allocation9], %s937
          %s940 = sshll.u32 [#allocation10], 4
          %s941 = int_to_ptr.vmem [resolvable:$true] %s940
          %943 = dma.hbm_to_vmem [thread:$0]  %s9, 16, %s941, [#allocation9]
        $region28: #{tpu_custom_call.1} parent=11 // pred_fallthru
          _
        // Predicated region
        $region29: #{tpu_custom_call.1} parent=11 // pred_check
          %p944 = pneg %p227
        $region30: #{tpu_custom_call.1} parent=11 // pred_check_branch
          %946 = sbr.rel (%p944) target = $region32
        $region31: #{tpu_custom_call.1} parent=11 // pred_region
          %s948 = ssub.s32 16, 16
          %949 = vsyncadd [#allocation12], %s948
          %s951 = sshll.u32 [#allocation11], 4
          %s952 = int_to_ptr.vmem [resolvable:$true] %s951
          %954 = dma.hbm_to_vmem [thread:$0]  %s11, 16, %s952, [#allocation12]
        $region32: #{tpu_custom_call.1} parent=11 // pred_fallthru
          _
        // Predicated region
        $region33: #{tpu_custom_call.1} parent=11 // pred_check
          %p955 = pneg %p248
        $region34: #{tpu_custom_call.1} parent=11 // pred_check_branch
          %957 = sbr.rel (%p955) target = $region36
        $region35: #{tpu_custom_call.1} parent=11 // pred_region
          _
        $region36: #{tpu_custom_call.1} parent=11 // pred_fallthru
          _
        // Predicated region
        $region37: #{tpu_custom_call.1} parent=11 // pred_check
          %p958 = pneg %p269
        $region38: #{tpu_custom_call.1} parent=11 // pred_check_branch
          %960 = sbr.rel (%p958) target = $region40
        $region39: #{tpu_custom_call.1} parent=11 // pred_region
          %s962 = ssub.s32 16, 16
          %963 = vsyncadd [#allocation12], %s962
          %s965 = sshll.u32 [#allocation13], 4
          %s966 = int_to_ptr.vmem [resolvable:$true] %s965
          %968 = dma.hbm_to_vmem [thread:$0]  %s15, 16, %s966, [#allocation12]
        $region40: #{tpu_custom_call.1} parent=11 // pred_fallthru
          _
        // Predicated region
        $region41: #{tpu_custom_call.1} parent=11 // pred_check
          %p969 = pneg %p290
        $region42: #{tpu_custom_call.1} parent=11 // pred_check_branch
          %971 = sbr.rel (%p969) target = $region44
        $region43: #{tpu_custom_call.1} parent=11 // pred_region
          %s973 = ssub.s32 16, 16
          %974 = vsyncadd [#allocation15], %s973
          %s976 = sshll.u32 [#allocation14], 4
          %s977 = int_to_ptr.vmem [resolvable:$true] %s976
          %979 = dma.hbm_to_vmem [thread:$0]  %s17, 16, %s977, [#allocation15]
        $region44: #{tpu_custom_call.1} parent=11 // pred_fallthru
          _
        // Predicated region
        $region45: #{tpu_custom_call.1} parent=11 // pred_check
          %p980 = pneg %p311
        $region46: #{tpu_custom_call.1} parent=11 // pred_check_branch
          %982 = sbr.rel (%p980) target = $region48
        $region47: #{tpu_custom_call.1} parent=11 // pred_region
          %s984 = ssub.s32 16, 16
          %985 = vsyncadd [#allocation15], %s984
          %s987 = sshll.u32 [#allocation16], 4
          %s988 = int_to_ptr.vmem [resolvable:$true] %s987
          %990 = dma.hbm_to_vmem [thread:$0]  %s19, 16, %s988, [#allocation15]
        $region48: #{tpu_custom_call.1} parent=11 // pred_fallthru
          _
        // Predicated region
        $region49: #{tpu_custom_call.1} parent=11 // pred_check
          %p991 = pneg %p332
        $region50: #{tpu_custom_call.1} parent=11 // pred_check_branch
          %993 = sbr.rel (%p991) target = $region52
        $region51: #{tpu_custom_call.1} parent=11 // pred_region
          %s995 = ssub.s32 2048, 2048
          %996 = vsyncadd [#allocation18], %s995
          %s997 = sshll.u32 [#allocation17], 4
          %s998 = int_to_ptr.vmem [resolvable:$true] %s997
          %1003 = dma.hbm_to_vmem [thread:$0]  %s21, 2048, %s998, [#allocation18], 128, 128, 8
        $region52: #{tpu_custom_call.1} parent=11 // pred_fallthru
          _
        // Predicated region
        $region53: #{tpu_custom_call.1} parent=11 // pred_check
          %p1004 = pneg %p353
        $region54: #{tpu_custom_call.1} parent=11 // pred_check_branch
          %1006 = sbr.rel (%p1004) target = $region56
        $region55: #{tpu_custom_call.1} parent=11 // pred_region
          %s1008 = ssub.s32 16, 16
          %1009 = vsyncadd [#allocation18], %s1008
          %s1011 = sshll.u32 [#allocation19], 4
          %s1012 = int_to_ptr.vmem [resolvable:$true] %s1011
          %1014 = dma.hbm_to_vmem [thread:$0]  %s23, 16, %s1012, [#allocation18]
        $region56: #{tpu_custom_call.1} parent=11 // pred_fallthru
          _
        // Predicated region
        $region57: #{tpu_custom_call.1} parent=11 // pred_check
          %p1015 = pneg %p374
        $region58: #{tpu_custom_call.1} parent=11 // pred_check_branch
          %1017 = sbr.rel (%p1015) target = $region60
        $region59: #{tpu_custom_call.1} parent=11 // pred_region
          %s1019 = ssub.s32 16, 16
          %1020 = vsyncadd [#allocation21], %s1019
          %s1022 = sshll.u32 [#allocation20], 4
          %s1023 = int_to_ptr.vmem [resolvable:$true] %s1022
          %1025 = dma.hbm_to_vmem [thread:$0]  %s25, 16, %s1023, [#allocation21]
        $region60: #{tpu_custom_call.1} parent=11 // pred_fallthru
          _
        // Predicated region
        $region61: #{tpu_custom_call.1} parent=11 // pred_check
          %p1026 = pneg %p395
        $region62: #{tpu_custom_call.1} parent=11 // pred_check_branch
          %1028 = sbr.rel (%p1026) target = $region64
        $region63: #{tpu_custom_call.1} parent=11 // pred_region
          %s1030 = ssub.s32 16, 16
          %1031 = vsyncadd [#allocation21], %s1030
          %s1033 = sshll.u32 [#allocation22], 4
          %s1034 = int_to_ptr.vmem [resolvable:$true] %s1033
          %1036 = dma.hbm_to_vmem [thread:$0]  %s27, 16, %s1034, [#allocation21]
        $region64: #{tpu_custom_call.1} parent=11 // pred_fallthru
          _
        // Predicated region
        $region65: #{tpu_custom_call.1} parent=11 // pred_check
          %p1037 = pneg %p416
        $region66: #{tpu_custom_call.1} parent=11 // pred_check_branch
          %1039 = sbr.rel (%p1037) target = $region68
        $region67: #{tpu_custom_call.1} parent=11 // pred_region
          %s1041 = ssub.s32 24576, 24576
          %1042 = vsyncadd [#allocation24], %s1041
          %s1043 = sshll.u32 [#allocation23], 4
          %s1044 = int_to_ptr.vmem [resolvable:$true] %s1043
          %1049 = dma.hbm_to_vmem [thread:$0]  %s29, 24576, %s1044, [#allocation24], 384, 384, 24
        $region68: #{tpu_custom_call.1} parent=11 // pred_fallthru
          _
        // Predicated region
        $region69: #{tpu_custom_call.1} parent=11 // pred_check
          %p1050 = pneg %p437
        $region70: #{tpu_custom_call.1} parent=11 // pred_check_branch
          %1052 = sbr.rel (%p1050) target = $region72
        $region71: #{tpu_custom_call.1} parent=11 // pred_region
          _
        $region72: #{tpu_custom_call.1} parent=11 // pred_fallthru
          _
        // Predicated region
        $region73: #{tpu_custom_call.1} parent=11 // pred_check
          %p1053 = pneg %p458
        $region74: #{tpu_custom_call.1} parent=11 // pred_check_branch
          %1055 = sbr.rel (%p1053) target = $region76
        $region75: #{tpu_custom_call.1} parent=11 // pred_region
          %s1057 = ssub.s32 8192, 8192
          %1058 = vsyncadd [#allocation24], %s1057
          %s1059 = sshll.u32 [#allocation25], 4
          %s1060 = int_to_ptr.vmem [resolvable:$true] %s1059
          %1065 = dma.hbm_to_vmem [thread:$0]  %s33, 8192, %s1060, [#allocation24], 128, 128, 8
        $region76: #{tpu_custom_call.1} parent=11 // pred_fallthru
          _
        // Predicated region
        $region77: #{tpu_custom_call.1} parent=11 // pred_check
          %p1066 = pneg %p479
        $region78: #{tpu_custom_call.1} parent=11 // pred_check_branch
          %1068 = sbr.rel (%p1066) target = $region80
        $region79: #{tpu_custom_call.1} parent=11 // pred_region
          _
        $region80: #{tpu_custom_call.1} parent=11 // pred_fallthru
          _
        // Predicated region
        $region81: #{tpu_custom_call.1} parent=11 // pred_check
          %p1069 = pneg %p500
        $region82: #{tpu_custom_call.1} parent=11 // pred_check_branch
          %1071 = sbr.rel (%p1069) target = $region84
        $region83: #{tpu_custom_call.1} parent=11 // pred_region
          _
        $region84: #{tpu_custom_call.1} parent=11 // pred_fallthru
          _
        // Predicated region
        $region85: #{tpu_custom_call.1} parent=11 // pred_check
          %p1072 = pneg %p521
        $region86: #{tpu_custom_call.1} parent=11 // pred_check_branch
          %1074 = sbr.rel (%p1072) target = $region88
        $region87: #{tpu_custom_call.1} parent=11 // pred_region
          %s1076 = ssub.s32 64, 64
          %1077 = vsyncadd [#allocation27], %s1076
          %s1078 = sshll.u32 [#allocation26], 4
          %s1079 = int_to_ptr.vmem [resolvable:$true] %s1078
          %1084 = dma.hbm_to_vmem [thread:$0]  %s39, 64, %s1079, [#allocation27], 16, 16, 1
        $region88: #{tpu_custom_call.1} parent=11 // pred_fallthru
          _
        // Predicated region
        $region89: #{tpu_custom_call.1} parent=11 // pred_check
          %p1085 = pneg %p542
        $region90: #{tpu_custom_call.1} parent=11 // pred_check_branch
          %1087 = sbr.rel (%p1085) target = $region92
        $region91: #{tpu_custom_call.1} parent=11 // pred_region
          %s1089 = ssub.s32 32768, 32768
          %1090 = vsyncadd [#allocation27], %s1089
          %s1091 = sshll.u32 [#allocation28], 4
          %s1092 = int_to_ptr.vmem [resolvable:$true] %s1091
          %1097 = dma.hbm_to_vmem [thread:$0]  %s41, 32768, %s1092, [#allocation27], 512, 512, 32
        $region92: #{tpu_custom_call.1} parent=11 // pred_fallthru
          _
        // Predicated region
        $region93: #{tpu_custom_call.1} parent=11 // pred_check
          %p1098 = pneg %p563
        $region94: #{tpu_custom_call.1} parent=11 // pred_check_branch
          %1100 = sbr.rel (%p1098) target = $region96
        $region95: #{tpu_custom_call.1} parent=11 // pred_region
          _
        $region96: #{tpu_custom_call.1} parent=11 // pred_fallthru
          _
        // Predicated region
        $region97: #{tpu_custom_call.1} parent=11 // pred_check
          %p1101 = pneg %p584
        $region98: #{tpu_custom_call.1} parent=11 // pred_check_branch
          %1103 = sbr.rel (%p1101) target = $region100
        $region99: #{tpu_custom_call.1} parent=11 // pred_region
          %s1105 = ssub.s32 32768, 32768
          %1106 = vsyncadd [#allocation30], %s1105
          %s1107 = sshll.u32 [#allocation29], 4
          %s1108 = int_to_ptr.vmem [resolvable:$true] %s1107
          %1113 = dma.hbm_to_vmem [thread:$0]  %s45, 32768, %s1108, [#allocation30], 128, 128, 8
        $region100: #{tpu_custom_call.1} parent=11 // pred_fallthru
          _
        // Predicated region
        $region101: #{tpu_custom_call.1} parent=11 // pred_check
          %p1114 = pneg %p605
        $region102: #{tpu_custom_call.1} parent=11 // pred_check_branch
          %1116 = sbr.rel (%p1114) target = $region104
        $region103: #{tpu_custom_call.1} parent=11 // pred_region
          _
        $region104: #{tpu_custom_call.1} parent=11 // pred_fallthru
          _
        // Predicated region
        $region105: #{tpu_custom_call.1} parent=11 // pred_check
          %p1117 = pneg %p626
        $region106: #{tpu_custom_call.1} parent=11 // pred_check_branch
          %1119 = sbr.rel (%p1117) target = $region108
        $region107: #{tpu_custom_call.1} parent=11 // pred_region
          _
        $region108: #{tpu_custom_call.1} parent=11 // pred_fallthru
          _
        // Predicated region
        $region109: #{tpu_custom_call.1} parent=11 // pred_check
          %p1120 = pneg %p647
        $region110: #{tpu_custom_call.1} parent=11 // pred_check_branch
          %1122 = sbr.rel (%p1120) target = $region112
        $region111: #{tpu_custom_call.1} parent=11 // pred_region
          _
        $region112: #{tpu_custom_call.1} parent=11 // pred_fallthru
          _
        // Predicated region
        $region113: #{tpu_custom_call.1} parent=11 // pred_check
          %p1123 = pneg %p668
        $region114: #{tpu_custom_call.1} parent=11 // pred_check_branch
          %1125 = sbr.rel (%p1123) target = $region116
        $region115: #{tpu_custom_call.1} parent=11 // pred_region
          %s1127 = ssub.s32 4096, 4096
          %1128 = vsyncadd [#allocation30], %s1127
          %s1129 = sshll.u32 [#allocation31], 4
          %s1130 = int_to_ptr.vmem [resolvable:$true] %s1129
          %1135 = dma.hbm_to_vmem [thread:$0]  %s53, 4096, %s1130, [#allocation30], 256, 256, 16
        $region116: #{tpu_custom_call.1} parent=11 // pred_fallthru
          _
        // Predicated region
        $region117: #{tpu_custom_call.1} parent=11 // pred_check
          %p1136 = pneg %p689
        $region118: #{tpu_custom_call.1} parent=11 // pred_check_branch
          %1138 = sbr.rel (%p1136) target = $region120
        $region119: #{tpu_custom_call.1} parent=11 // pred_region
          %s1140 = ssub.s32 32, 32
          %1141 = vsyncadd [#allocation33], %s1140
          %s1143 = sshll.u32 [#allocation32], 4
          %s1144 = int_to_ptr.vmem [resolvable:$true] %s1143
          %1146 = dma.hbm_to_vmem [thread:$0]  %s55, 32, %s1144, [#allocation33]
        $region120: #{tpu_custom_call.1} parent=11 // pred_fallthru
          _
        // Predicated region
        $region121: #{tpu_custom_call.1} parent=11 // pred_check
          %p1147 = pneg %p710
        $region122: #{tpu_custom_call.1} parent=11 // pred_check_branch
          %1149 = sbr.rel (%p1147) target = $region124
        $region123: #{tpu_custom_call.1} parent=11 // pred_region
          _
        $region124: #{tpu_custom_call.1} parent=11 // pred_fallthru
          _
        // Predicated region
        $region125: #{tpu_custom_call.1} parent=11 // pred_check
          %p1150 = pneg %p731
        $region126: #{tpu_custom_call.1} parent=11 // pred_check_branch
          %1152 = sbr.rel (%p1150) target = $region128
        $region127: #{tpu_custom_call.1} parent=11 // pred_region
          %s1154 = ssub.s32 32, 32
          %1155 = vsyncadd [#allocation33], %s1154
          %s1157 = sshll.u32 [#allocation34], 4
          %s1158 = int_to_ptr.vmem [resolvable:$true] %s1157
          %1160 = dma.hbm_to_vmem [thread:$0]  %s59, 32, %s1158, [#allocation33]
        $region128: #{tpu_custom_call.1} parent=11 // pred_fallthru
          _
        // Predicated region
        $region129: #{tpu_custom_call.1} parent=11 // pred_check
          %p1161 = pneg %p752
        $region130: #{tpu_custom_call.1} parent=11 // pred_check_branch
          %1163 = sbr.rel (%p1161) target = $region132
        $region131: #{tpu_custom_call.1} parent=11 // pred_region
          %s1165 = ssub.s32 4096, 4096
          %1166 = vsyncadd [#allocation36], %s1165
          %s1167 = sshll.u32 [#allocation35], 4
          %s1168 = int_to_ptr.vmem [resolvable:$true] %s1167
          %1173 = dma.hbm_to_vmem [thread:$0]  %s61, 4096, %s1168, [#allocation36], 128, 128, 8
        $region132: #{tpu_custom_call.1} parent=11 // pred_fallthru
          _
        // Predicated region
        $region133: #{tpu_custom_call.1} parent=11 // pred_check
          %p1174 = pneg %p773
        $region134: #{tpu_custom_call.1} parent=11 // pred_check_branch
          %1176 = sbr.rel (%p1174) target = $region136
        $region135: #{tpu_custom_call.1} parent=11 // pred_region
          _
        $region136: #{tpu_custom_call.1} parent=11 // pred_fallthru
          _
        // Predicated region
        $region137: #{tpu_custom_call.1} parent=11 // pred_check
          %p1177 = pneg %p794
        $region138: #{tpu_custom_call.1} parent=11 // pred_check_branch
          %1179 = sbr.rel (%p1177) target = $region140
        $region139: #{tpu_custom_call.1} parent=11 // pred_region
          _
        $region140: #{tpu_custom_call.1} parent=11 // pred_fallthru
          _
        // Predicated region
        $region141: #{tpu_custom_call.1} parent=11 // pred_check
          %p1180 = pneg %p815
        $region142: #{tpu_custom_call.1} parent=11 // pred_check_branch
          %1182 = sbr.rel (%p1180) target = $region144
        $region143: #{tpu_custom_call.1} parent=11 // pred_region
          _
        $region144: #{tpu_custom_call.1} parent=11 // pred_fallthru
          _
        // Predicated region
        $region145: #{tpu_custom_call.1} parent=11 // pred_check
          %p1183 = pneg %p836
        $region146: #{tpu_custom_call.1} parent=11 // pred_check_branch
          %1185 = sbr.rel (%p1183) target = $region148
        $region147: #{tpu_custom_call.1} parent=11 // pred_region
          _
        $region148: #{tpu_custom_call.1} parent=11 // pred_fallthru
          _
        // Predicated region
        $region149: #{tpu_custom_call.1} parent=11 // pred_check
          %p1186 = pneg %p857
        $region150: #{tpu_custom_call.1} parent=11 // pred_check_branch
          %1188 = sbr.rel (%p1186) target = $region152
        $region151: #{tpu_custom_call.1} parent=11 // pred_region
          _
        $region152: #{tpu_custom_call.1} parent=11 // pred_fallthru
          _
      $region12: #{tpu_custom_call.1} parent=5 // pred_fallthru
        _
      %p1189 = scmp.lt.s32.totalorder %s96, 2
      // Predicated region
      $region153: #{tpu_custom_call.1} parent=5 // pred_check
        %p1190 = pneg %p1189
      $region154: #{tpu_custom_call.1} parent=5 // pred_check_branch
        %1192 = sbr.rel (%p1190) target = $region156
      $region155: #{tpu_custom_call.1} parent=5 // pred_region
        // Predicated region
        $region157: #{tpu_custom_call.1} parent=155 // pred_check
          %p1193 = pneg %p116
        $region158: #{tpu_custom_call.1} parent=155 // pred_check_branch
          %1195 = sbr.rel (%p1193) target = $region160
        $region159: #{tpu_custom_call.1} parent=155 // pred_region
          %s1196 = sand.u32 %s106, 1
          %s1197 = scalar_lea.sflag [#allocation3], %s1196
          %s1198 = sand.u32 %s106, 1
          %s1199 = smul.addr %s1198, 8
          %s1200 = scalar_lea.vmem [#allocation2], %s1199
          %s1202 = ssub.s32 128, 128
          %1203 = vsyncadd %s1197, %s1202
          %s1204 = smul.addr %s96, 128
          %s1205 = scalar_lea.hbm %s1, %s1204
          %s1207 = sshll.u32 %s1200, 4
          %s1208 = int_to_ptr.vmem [resolvable:$true] %s1207
          %1210 = dma.hbm_to_vmem [thread:$0]  %s1205, 128, %s1208, %s1197
        $region160: #{tpu_custom_call.1} parent=155 // pred_fallthru
          _
      $region156: #{tpu_custom_call.1} parent=5 // pred_fallthru
        _
      %p1211 = scmp.le.s32.totalorder 1, %s96
      %p1212 = scmp.lt.s32.totalorder %s96, 3
      %p1213 = pnand %p1211, %p1212
      %p1214 = pneg %p1213
      // Predicated region
      $region161: #{tpu_custom_call.1} parent=5 // pred_check
        _
      $region162: #{tpu_custom_call.1} parent=5 // pred_check_branch
        %1216 = sbr.rel (%p1213) target = $region164
      $region163: #{tpu_custom_call.1} parent=5 // pred_region
        %s1217 = ssub.s32 %s96, 1
        %s1218 = sand.u32 %s109, 1
        %s1219 = scalar_lea.sflag [#allocation3], %s1218
        %s1220 = sand.u32 %s109, 1
        %s1221 = smul.addr %s1220, 8
        %s1222 = scalar_lea.vmem [#allocation2], %s1221
        // Predicated region
        $region165: #{tpu_custom_call.1} parent=163 // pred_check
          %p1223 = pneg %p122
        $region166: #{tpu_custom_call.1} parent=163 // pred_check_branch
          %1225 = sbr.rel (%p1223) target = $region168
        $region167: #{tpu_custom_call.1} parent=163 // pred_region
          %1226 = dma.done %s1219, 128
        $region168: #{tpu_custom_call.1} parent=163 // pred_fallthru
          _
        // Predicated region
        $region169: #{tpu_custom_call.1} parent=163 // pred_check
          %p1227 = pneg %p143
        $region170: #{tpu_custom_call.1} parent=163 // pred_check_branch
          %1229 = sbr.rel (%p1227) target = $region172
        $region171: #{tpu_custom_call.1} parent=163 // pred_region
          %1230 = dma.done [#allocation6], 128
        $region172: #{tpu_custom_call.1} parent=163 // pred_fallthru
          _
        // Predicated region
        $region173: #{tpu_custom_call.1} parent=163 // pred_check
          %p1231 = pneg %p164
        $region174: #{tpu_custom_call.1} parent=163 // pred_check_branch
          %1233 = sbr.rel (%p1231) target = $region176
        $region175: #{tpu_custom_call.1} parent=163 // pred_region
          %1234 = dma.done [#allocation6], 256
        $region176: #{tpu_custom_call.1} parent=163 // pred_fallthru
          _
        // Predicated region
        $region177: #{tpu_custom_call.1} parent=163 // pred_check
          %p1235 = pneg %p185
        $region178: #{tpu_custom_call.1} parent=163 // pred_check_branch
          %1237 = sbr.rel (%p1235) target = $region180
        $region179: #{tpu_custom_call.1} parent=163 // pred_region
          %1238 = dma.done [#allocation9], 16
        $region180: #{tpu_custom_call.1} parent=163 // pred_fallthru
          _
        // Predicated region
        $region181: #{tpu_custom_call.1} parent=163 // pred_check
          %p1239 = pneg %p206
        $region182: #{tpu_custom_call.1} parent=163 // pred_check_branch
          %1241 = sbr.rel (%p1239) target = $region184
        $region183: #{tpu_custom_call.1} parent=163 // pred_region
          %1242 = dma.done [#allocation9], 16
        $region184: #{tpu_custom_call.1} parent=163 // pred_fallthru
          _
        // Predicated region
        $region185: #{tpu_custom_call.1} parent=163 // pred_check
          %p1243 = pneg %p227
        $region186: #{tpu_custom_call.1} parent=163 // pred_check_branch
          %1245 = sbr.rel (%p1243) target = $region188
        $region187: #{tpu_custom_call.1} parent=163 // pred_region
          %1246 = dma.done [#allocation12], 16
        $region188: #{tpu_custom_call.1} parent=163 // pred_fallthru
          _
        // Predicated region
        $region189: #{tpu_custom_call.1} parent=163 // pred_check
          %p1247 = pneg %p269
        $region190: #{tpu_custom_call.1} parent=163 // pred_check_branch
          %1249 = sbr.rel (%p1247) target = $region192
        $region191: #{tpu_custom_call.1} parent=163 // pred_region
          %1250 = dma.done [#allocation12], 16
        $region192: #{tpu_custom_call.1} parent=163 // pred_fallthru
          _
        // Predicated region
        $region193: #{tpu_custom_call.1} parent=163 // pred_check
          %p1251 = pneg %p290
        $region194: #{tpu_custom_call.1} parent=163 // pred_check_branch
          %1253 = sbr.rel (%p1251) target = $region196
        $region195: #{tpu_custom_call.1} parent=163 // pred_region
          %1254 = dma.done [#allocation15], 16
        $region196: #{tpu_custom_call.1} parent=163 // pred_fallthru
          _
        // Predicated region
        $region197: #{tpu_custom_call.1} parent=163 // pred_check
          %p1255 = pneg %p311
        $region198: #{tpu_custom_call.1} parent=163 // pred_check_branch
          %1257 = sbr.rel (%p1255) target = $region200
        $region199: #{tpu_custom_call.1} parent=163 // pred_region
          %1258 = dma.done [#allocation15], 16
        $region200: #{tpu_custom_call.1} parent=163 // pred_fallthru
          _
        // Predicated region
        $region201: #{tpu_custom_call.1} parent=163 // pred_check
          %p1259 = pneg %p332
        $region202: #{tpu_custom_call.1} parent=163 // pred_check_branch
          %1261 = sbr.rel (%p1259) target = $region204
        $region203: #{tpu_custom_call.1} parent=163 // pred_region
          %1262 = dma.done [#allocation18], 2048
        $region204: #{tpu_custom_call.1} parent=163 // pred_fallthru
          _
        // Predicated region
        $region205: #{tpu_custom_call.1} parent=163 // pred_check
          %p1263 = pneg %p353
        $region206: #{tpu_custom_call.1} parent=163 // pred_check_branch
          %1265 = sbr.rel (%p1263) target = $region208
        $region207: #{tpu_custom_call.1} parent=163 // pred_region
          %1266 = dma.done [#allocation18], 16
        $region208: #{tpu_custom_call.1} parent=163 // pred_fallthru
          _
        // Predicated region
        $region209: #{tpu_custom_call.1} parent=163 // pred_check
          %p1267 = pneg %p374
        $region210: #{tpu_custom_call.1} parent=163 // pred_check_branch
          %1269 = sbr.rel (%p1267) target = $region212
        $region211: #{tpu_custom_call.1} parent=163 // pred_region
          %1270 = dma.done [#allocation21], 16
        $region212: #{tpu_custom_call.1} parent=163 // pred_fallthru
          _
        // Predicated region
        $region213: #{tpu_custom_call.1} parent=163 // pred_check
          %p1271 = pneg %p395
        $region214: #{tpu_custom_call.1} parent=163 // pred_check_branch
          %1273 = sbr.rel (%p1271) target = $region216
        $region215: #{tpu_custom_call.1} parent=163 // pred_region
          %1274 = dma.done [#allocation21], 16
        $region216: #{tpu_custom_call.1} parent=163 // pred_fallthru
          _
        // Predicated region
        $region217: #{tpu_custom_call.1} parent=163 // pred_check
          %p1275 = pneg %p416
        $region218: #{tpu_custom_call.1} parent=163 // pred_check_branch
          %1277 = sbr.rel (%p1275) target = $region220
        $region219: #{tpu_custom_call.1} parent=163 // pred_region
          %1278 = dma.done [#allocation24], 24576
        $region220: #{tpu_custom_call.1} parent=163 // pred_fallthru
          _
        // Predicated region
        $region221: #{tpu_custom_call.1} parent=163 // pred_check
          %p1279 = pneg %p458
        $region222: #{tpu_custom_call.1} parent=163 // pred_check_branch
          %1281 = sbr.rel (%p1279) target = $region224
        $region223: #{tpu_custom_call.1} parent=163 // pred_region
          %1282 = dma.done [#allocation24], 8192
        $region224: #{tpu_custom_call.1} parent=163 // pred_fallthru
          _
        // Predicated region
        $region225: #{tpu_custom_call.1} parent=163 // pred_check
          %p1283 = pneg %p521
        $region226: #{tpu_custom_call.1} parent=163 // pred_check_branch
          %1285 = sbr.rel (%p1283) target = $region228
        $region227: #{tpu_custom_call.1} parent=163 // pred_region
          %1286 = dma.done [#allocation27], 64
        $region228: #{tpu_custom_call.1} parent=163 // pred_fallthru
          _
        // Predicated region
        $region229: #{tpu_custom_call.1} parent=163 // pred_check
          %p1287 = pneg %p542
        $region230: #{tpu_custom_call.1} parent=163 // pred_check_branch
          %1289 = sbr.rel (%p1287) target = $region232
        $region231: #{tpu_custom_call.1} parent=163 // pred_region
          %1290 = dma.done [#allocation27], 32768
        $region232: #{tpu_custom_call.1} parent=163 // pred_fallthru
          _
        // Predicated region
        $region233: #{tpu_custom_call.1} parent=163 // pred_check
          %p1291 = pneg %p584
        $region234: #{tpu_custom_call.1} parent=163 // pred_check_branch
          %1293 = sbr.rel (%p1291) target = $region236
        $region235: #{tpu_custom_call.1} parent=163 // pred_region
          %1294 = dma.done [#allocation30], 32768
        $region236: #{tpu_custom_call.1} parent=163 // pred_fallthru
          _
        // Predicated region
        $region237: #{tpu_custom_call.1} parent=163 // pred_check
          %p1295 = pneg %p668
        $region238: #{tpu_custom_call.1} parent=163 // pred_check_branch
          %1297 = sbr.rel (%p1295) target = $region240
        $region239: #{tpu_custom_call.1} parent=163 // pred_region
          %1298 = dma.done [#allocation30], 4096
        $region240: #{tpu_custom_call.1} parent=163 // pred_fallthru
          _
        // Predicated region
        $region241: #{tpu_custom_call.1} parent=163 // pred_check
          %p1299 = pneg %p689
        $region242: #{tpu_custom_call.1} parent=163 // pred_check_branch
          %1301 = sbr.rel (%p1299) target = $region244
        $region243: #{tpu_custom_call.1} parent=163 // pred_region
          %1302 = dma.done [#allocation33], 32
        $region244: #{tpu_custom_call.1} parent=163 // pred_fallthru
          _
        // Predicated region
        $region245: #{tpu_custom_call.1} parent=163 // pred_check
          %p1303 = pneg %p731
        $region246: #{tpu_custom_call.1} parent=163 // pred_check_branch
          %1305 = sbr.rel (%p1303) target = $region248
        $region247: #{tpu_custom_call.1} parent=163 // pred_region
          %1306 = dma.done [#allocation33], 32
        $region248: #{tpu_custom_call.1} parent=163 // pred_fallthru
          _
        // Predicated region
        $region249: #{tpu_custom_call.1} parent=163 // pred_check
          %p1307 = pneg %p752
        $region250: #{tpu_custom_call.1} parent=163 // pred_check_branch
          %1309 = sbr.rel (%p1307) target = $region252
        $region251: #{tpu_custom_call.1} parent=163 // pred_region
          %1310 = dma.done [#allocation36], 4096
        $region252: #{tpu_custom_call.1} parent=163 // pred_fallthru
          _
        %s1311 = sand.u32 %s109, 1
        %s1312 = scalar_lea.sflag [#allocation3], %s1311
        %s1313 = sand.u32 %s109, 1
        %s1314 = smul.addr %s1313, 8
        %s1315 = scalar_lea.vmem [#allocation2], %s1314
        %p1316 = pneg %p122
        %p1317 = pneg %p119
        %p1318 = pneg %p143
        %p1319 = pneg %p140
        %p1320 = pneg %p164
        %p1321 = pneg %p161
        %p1322 = pneg %p185
        %p1323 = pneg %p182
        %p1324 = pneg %p206
        %p1325 = pneg %p203
        %p1326 = pneg %p227
        %p1327 = pneg %p224
        %p1328 = pneg %p248
        %p1329 = pneg %p245
        %p1330 = pneg %p269
        %p1331 = pneg %p266
        %p1332 = pneg %p290
        %p1333 = pneg %p287
        %p1334 = pneg %p311
        %p1335 = pneg %p308
        %p1336 = pneg %p332
        %p1337 = pneg %p329
        %p1338 = pneg %p353
        %p1339 = pneg %p350
        %p1340 = pneg %p374
        %p1341 = pneg %p371
        %p1342 = pneg %p395
        %p1343 = pneg %p392
        %p1344 = pneg %p416
        %p1345 = pneg %p413
        %p1346 = pneg %p437
        %p1347 = pneg %p434
        %p1348 = pneg %p458
        %p1349 = pneg %p455
        %p1350 = pneg %p479
        %p1351 = pneg %p476
        %p1352 = pneg %p500
        %p1353 = pneg %p497
        %p1354 = pneg %p521
        %p1355 = pneg %p518
        %p1356 = pneg %p542
        %p1357 = pneg %p539
        %p1358 = pneg %p563
        %p1359 = pneg %p560
        %p1360 = pneg %p584
        %p1361 = pneg %p581
        %p1362 = pneg %p605
        %p1363 = pneg %p602
        %p1364 = pneg %p626
        %p1365 = pneg %p623
        %p1366 = pneg %p647
        %p1367 = pneg %p644
        %p1368 = pneg %p668
        %p1369 = pneg %p665
        %p1370 = pneg %p689
        %p1371 = pneg %p686
        %p1372 = pneg %p710
        %p1373 = pneg %p707
        %p1374 = pneg %p731
        %p1375 = pneg %p728
        %p1376 = pneg %p752
        %p1377 = pneg %p749
        %p1378 = pneg %p773
        %p1379 = pneg %p770
        %p1380 = pneg %p794
        %p1381 = pneg %p791
        %p1382 = pneg %p815
        %p1383 = pneg %p812
        %p1384 = pneg %p836
        %p1385 = pneg %p833
        %p1386 = pneg %p857
        %p1387 = pneg %p854
        %p1388 = pneg %p883
        %p1389 = pneg %p880
        %s1390 = sand.u32 %s870, 1
        %s1391 = scalar_lea.sflag [#allocation4], %s1390
        %s1392 = sand.u32 %s870, 1
        %s1393 = scalar_lea.vmem [#allocation37], %s1392
        %v1394 = vld [vmem:[%s1222] sm:$0xff]
        %v1395 = vld [vmem:[#allocation7] sm:$0xff]
        %v1396 = vld [vmem:[#allocation7 + $0x8] sm:$0xff]
        %v1397 = vld [vmem:[#allocation8] sm:$0x1]
        %v1399 = vlaneseq
        %v1400 = vshrl.u32 %v1399, 7
        %v1401 = vsub.s32 0, %v1400
        %v1402 = vrot.slane %v1397, %v1401
        %vm1404 = vcmask 130048
        %v1406 = vsel %vm1404, %v1394, 0
        %1408 = vmatprep.subr.mxu0 0.0
        %1409 = vmatpush1.msra.mxu0 0.0
        %1410 = vmatprep.subr.mxu0 0.0
        %1411 = vmatpush1.msra.mxu0 0.0
        %1412 = vmatprep.subr.mxu0 0.0
        %1413 = vmatpush1.msra.mxu0 0.0
        %1414 = vmatprep.subr.mxu0 0.0
        %1415 = vmatpush1.msra.mxu0 0.0
        %1416 = vmatprep.subr.mxu0 0.0
        %1417 = vmatpush1.msra.mxu0 0.0
        %1418 = vmatprep.subr.mxu0 0.0
        %1419 = vmatpush1.msra.mxu0 0.0
        %1420 = vmatprep.subr.mxu0 0.0
        %1421 = vmatpush1.msra.mxu0 0.0
        %1422 = vmatprep.subr.mxu0 0.0
        %1423 = vmatpush1.msra.mxu0 0.0
        %1424 = vmatprep.subr.mxu0 0.0
        %1425 = vmatpush1.msra.mxu0 0.0
        %1426 = vmatprep.subr.mxu0 0.0
        %1427 = vmatpush1.msra.mxu0 0.0
        %1428 = vmatprep.subr.mxu0 0.0
        %1429 = vmatpush1.msra.mxu0 0.0
        %1430 = vmatprep.subr.mxu0 0.0
        %1431 = vmatpush1.msra.mxu0 0.0
        %1432 = vmatprep.subr.mxu0 0.0
        %1433 = vmatpush1.msra.mxu0 0.0
        %1434 = vmatprep.subr.mxu0 0.0
        %1435 = vmatpush1.msra.mxu0 0.0
        %1436 = vmatprep.subr.mxu0 0.0
        %1437 = vmatpush1.msra.mxu0 %v1396
        %1438 = vmatprep.subr.mxu0 0.0
        %1439 = vmatpush1.msra.mxu0 %v1395
        %1440 = vmatprep.subr.mxu0 0.0
        %1441 = vmatpush2.msra.mxu0 0.0
        %1442 = vmatprep.subr.mxu0 0.0
        %1443 = vmatpush2.msra.mxu0 0.0
        %1444 = vmatprep.subr.mxu0 0.0
        %1445 = vmatpush2.msra.mxu0 0.0
        %1446 = vmatprep.subr.mxu0 0.0
        %1447 = vmatpush2.msra.mxu0 0.0
        %1448 = vmatprep.subr.mxu0 0.0
        %1449 = vmatpush2.msra.mxu0 0.0
        %1450 = vmatprep.subr.mxu0 0.0
        %1451 = vmatpush2.msra.mxu0 0.0
        %1452 = vmatprep.subr.mxu0 0.0
        %1453 = vmatpush2.msra.mxu0 0.0
        %1454 = vmatprep.subr.mxu0 0.0
        %1455 = vmatpush2.msra.mxu0 0.0
        %1456 = vmatprep.subr.mxu0 0.0
        %1457 = vmatpush2.msra.mxu0 0.0
        %1458 = vmatprep.subr.mxu0 0.0
        %1459 = vmatpush2.msra.mxu0 0.0
        %1460 = vmatprep.subr.mxu0 0.0
        %1461 = vmatpush2.msra.mxu0 0.0
        %1462 = vmatprep.subr.mxu0 0.0
        %1463 = vmatpush2.msra.mxu0 0.0
        %1464 = vmatprep.subr.mxu0 0.0
        %1465 = vmatpush2.msra.mxu0 0.0
        %1466 = vmatprep.subr.mxu0 0.0
        %1467 = vmatpush2.msra.mxu0 0.0
        %1468 = vmatprep.subr.mxu0 0.0
        %1469 = vmatpush2.msra.mxu0 0.0
        %1470 = vmatprep.subr.mxu0 0.0
        %1471 = vmatpush2.msra.mxu0 0.0
        %1472 = vmatprep.mubr.f32.mxu0 0.0
        %1473 = vmatmul.mubr.f32.gmra.mxu0 %v1406
        %v1474 = vpop.f32.mrf.mxu0
        %v1475 = vadd.f32 %v1402, %v1474
        %v1476 = vpop.f32.mrf.mxu0
        %1477 = vdwg.mxu0
        %v1478 = vld [vmem:[#allocation10] sm:$0x1]
        %v1479 = vld [vmem:[#allocation11] sm:$0x1]
        %1480 = vadd.xlane.f32.xlu0 %v1475
        %v1481 = vpop.xlane.xlu0 %1480
        %v1482 = vrcp.pop 128.0
        %v1483 = vmul.f32 %v1481, %v1482
        %v1484 = vsub.f32 %v1475, %v1483
        %v1485 = vmul.f32 %v1484, %v1484
        %1486 = vadd.xlane.f32.xlu0 %v1485
        %v1487 = vpop.xlane.xlu0 %1486
        %v1488 = vmul.f32 %v1487, %v1482
        %v1489 = vadd.f32 %v1488, 1e-05
        %v1490 = vrsqrt.pop %v1489
        %v1491 = vmul.f32 %v1484, %v1490
        %v1493 = vlaneseq
        %v1494 = vshrl.u32 %v1493, 7
        %v1495 = vsub.s32 0, %v1494
        %v1496 = vrot.slane %v1478, %v1495
        %v1498 = vmul.f32 %v1491, %v1496
        %v1500 = vlaneseq
        %v1501 = vshrl.u32 %v1500, 7
        %v1502 = vsub.s32 0, %v1501
        %v1503 = vrot.slane %v1479, %v1502
        %v1505 = vadd.f32 %v1498, %v1503
        %v1506 = vrot.slane %v1505, 4
        %v1507 = vadd.f32 %v1505, %v1506
        %v1508 = vrot.slane %v1507, 2
        %v1509 = vadd.f32 %v1507, %v1508
        %v1510 = vrot.slane %v1509, 1
        %v1511 = vadd.f32 %v1509, %v1510
        %v1512 = vrcp.pop 8.0
        %v1513 = vmul.f32 %v1511, %v1512
        %v1514 = vld [vmem:[%s13] sm:$0xff]
        %v1515 = vld [vmem:[%s13 + $0x8] sm:$0xff]
        %v1516 = vld [vmem:[%s13 + $0x10] sm:$0xff]
        %v1517 = vld [vmem:[%s13 + $0x18] sm:$0xff]
        %v1518 = vld [vmem:[%s13 + $0x20] sm:$0xff]
        %v1519 = vld [vmem:[%s13 + $0x28] sm:$0xff]
        %v1520 = vld [vmem:[%s13 + $0x30] sm:$0xff]
        %v1521 = vld [vmem:[%s13 + $0x38] sm:$0xff]
        %v1522 = vld [vmem:[%s13 + $0x40] sm:$0xff]
        %v1523 = vld [vmem:[%s13 + $0x48] sm:$0xff]
        %v1524 = vld [vmem:[%s13 + $0x50] sm:$0xff]
        %v1525 = vld [vmem:[%s13 + $0x58] sm:$0xff]
        %v1526 = vld [vmem:[%s13 + $0x60] sm:$0xff]
        %v1527 = vld [vmem:[%s13 + $0x68] sm:$0xff]
        %v1528 = vld [vmem:[%s13 + $0x70] sm:$0xff]
        %v1529 = vld [vmem:[%s13 + $0x78] sm:$0xff]
        %v1530 = vld [vmem:[#allocation13] sm:$0x1]
        %1531 = vmatprep.subr.mxu0 0.0
        %1532 = vmatpush1.msra.mxu0 %v1529
        %1533 = vmatprep.subr.mxu0 0.0
        %1534 = vmatpush1.msra.mxu0 %v1528
        %1535 = vmatprep.subr.mxu0 0.0
        %1536 = vmatpush1.msra.mxu0 %v1527
        %1537 = vmatprep.subr.mxu0 0.0
        %1538 = vmatpush1.msra.mxu0 %v1526
        %1539 = vmatprep.subr.mxu0 0.0
        %1540 = vmatpush1.msra.mxu0 %v1525
        %1541 = vmatprep.subr.mxu0 0.0
        %1542 = vmatpush1.msra.mxu0 %v1524
        %1543 = vmatprep.subr.mxu0 0.0
        %1544 = vmatpush1.msra.mxu0 %v1523
        %1545 = vmatprep.subr.mxu0 0.0
        %1546 = vmatpush1.msra.mxu0 %v1522
        %1547 = vmatprep.subr.mxu0 0.0
        %1548 = vmatpush1.msra.mxu0 %v1521
        %1549 = vmatprep.subr.mxu0 0.0
        %1550 = vmatpush1.msra.mxu0 %v1520
        %1551 = vmatprep.subr.mxu0 0.0
        %1552 = vmatpush1.msra.mxu0 %v1519
        %1553 = vmatprep.subr.mxu0 0.0
        %1554 = vmatpush1.msra.mxu0 %v1518
        %1555 = vmatprep.subr.mxu0 0.0
        %1556 = vmatpush1.msra.mxu0 %v1517
        %1557 = vmatprep.subr.mxu0 0.0
        %1558 = vmatpush1.msra.mxu0 %v1516
        %1559 = vmatprep.subr.mxu0 0.0
        %1560 = vmatpush1.msra.mxu0 %v1515
        %1561 = vmatprep.subr.mxu0 0.0
        %1562 = vmatpush1.msra.mxu0 %v1514
        %1563 = vmatprep.subr.mxu0 0.0
        %1564 = vmatpush2.msra.mxu0 0.0
        %1565 = vmatprep.subr.mxu0 0.0
        %1566 = vmatpush2.msra.mxu0 0.0
        %1567 = vmatprep.subr.mxu0 0.0
        %1568 = vmatpush2.msra.mxu0 0.0
        %1569 = vmatprep.subr.mxu0 0.0
        %1570 = vmatpush2.msra.mxu0 0.0
        %1571 = vmatprep.subr.mxu0 0.0
        %1572 = vmatpush2.msra.mxu0 0.0
        %1573 = vmatprep.subr.mxu0 0.0
        %1574 = vmatpush2.msra.mxu0 0.0
        %1575 = vmatprep.subr.mxu0 0.0
        %1576 = vmatpush2.msra.mxu0 0.0
        %1577 = vmatprep.subr.mxu0 0.0
        %1578 = vmatpush2.msra.mxu0 0.0
        %1579 = vmatprep.subr.mxu0 0.0
        %1580 = vmatpush2.msra.mxu0 0.0
        %1581 = vmatprep.subr.mxu0 0.0
        %1582 = vmatpush2.msra.mxu0 0.0
        %1583 = vmatprep.subr.mxu0 0.0
        %1584 = vmatpush2.msra.mxu0 0.0
        %1585 = vmatprep.subr.mxu0 0.0
        %1586 = vmatpush2.msra.mxu0 0.0
        %1587 = vmatprep.subr.mxu0 0.0
        %1588 = vmatpush2.msra.mxu0 0.0
        %1589 = vmatprep.subr.mxu0 0.0
        %1590 = vmatpush2.msra.mxu0 0.0
        %1591 = vmatprep.subr.mxu0 0.0
        %1592 = vmatpush2.msra.mxu0 0.0
        %1593 = vmatprep.subr.mxu0 0.0
        %1594 = vmatpush2.msra.mxu0 0.0
        %1595 = vmatprep.mubr.f32.mxu0 0.0
        %1596 = vmatmul.mubr.f32.gmra.mxu0 %v1513
        %v1597 = vpop.f32.mrf.mxu0
        %v1598 = vadd.f32 %v1530, %v1597
        %v1599 = vpop.f32.mrf.mxu0
        %1600 = vdwg.mxu0
        %v1601 = vld [vmem:[#allocation14] sm:$0x1]
        %v1602 = vld [vmem:[#allocation16] sm:$0x1]
        %vm1603 = vcmask 1040384
        %v1604 = vsel %vm1603, %v1598, 0.0
        %1605 = vadd.xlane.f32.xlu0 %v1604
        %v1606 = vpop.xlane.xlu0 %1605
        %v1607 = vmul.f32 %v1606, %v1482
        %v1608 = vsub.f32 %v1598, %v1607
        %v1609 = vmul.f32 %v1608, %v1608
        %v1610 = vsel %vm1603, %v1609, 0.0
        %1611 = vadd.xlane.f32.xlu0 %v1610
        %v1612 = vpop.xlane.xlu0 %1611
        %v1613 = vmul.f32 %v1612, %v1482
        %v1614 = vadd.f32 %v1613, 1e-05
        %v1615 = vrsqrt.pop %v1614
        %v1616 = vmul.f32 %v1608, %v1615
        %v1617 = vmul.f32 %v1616, %v1601
        %v1618 = vadd.f32 %v1617, %v1602
        %v1619 = vmax.f32 %v1618, 0.0
        %v1620 = vmul.f32 %v1619, 0.1
        %v1621 = vlaneseq
        %v1622 = vshrl.u32 %v1621, 7
        %v1623 = vsub.s32 0, %v1622
        %v1624 = vrot.slane %v1620, %v1623
        %v1625 = vadd.f32 %v1505, %v1624
        %v1626 = vld [vmem:[#allocation5] sm:$0xff]
        %v1627 = vadd.f32 %v1625, %v1626
        %v1628 = vld [vmem:[#allocation17] sm:$0xff]
        %v1629 = vld [vmem:[#allocation17 + $0x8] sm:$0xff]
        %v1630 = vld [vmem:[#allocation17 + $0x10] sm:$0xff]
        %v1631 = vld [vmem:[#allocation17 + $0x18] sm:$0xff]
        %v1632 = vld [vmem:[#allocation17 + $0x20] sm:$0xff]
        %v1633 = vld [vmem:[#allocation17 + $0x28] sm:$0xff]
        %v1634 = vld [vmem:[#allocation17 + $0x30] sm:$0xff]
        %v1635 = vld [vmem:[#allocation17 + $0x38] sm:$0xff]
        %v1636 = vld [vmem:[#allocation17 + $0x40] sm:$0xff]
        %v1637 = vld [vmem:[#allocation17 + $0x48] sm:$0xff]
        %v1638 = vld [vmem:[#allocation17 + $0x50] sm:$0xff]
        %v1639 = vld [vmem:[#allocation17 + $0x58] sm:$0xff]
        %v1640 = vld [vmem:[#allocation17 + $0x60] sm:$0xff]
        %v1641 = vld [vmem:[#allocation17 + $0x68] sm:$0xff]
        %v1642 = vld [vmem:[#allocation17 + $0x70] sm:$0xff]
        %v1643 = vld [vmem:[#allocation17 + $0x78] sm:$0xff]
        %v1644 = vld [vmem:[#allocation19] sm:$0x1]
        %v1646 = vlaneseq
        %v1647 = vshrl.u32 %v1646, 7
        %v1648 = vsub.s32 0, %v1647
        %v1649 = vrot.slane %v1644, %v1648
        %1651 = vmatprep.subr.mxu0 0.0
        %1652 = vmatpush1.msra.mxu0 %v1643
        %1653 = vmatprep.subr.mxu0 0.0
        %1654 = vmatpush1.msra.mxu0 %v1642
        %1655 = vmatprep.subr.mxu0 0.0
        %1656 = vmatpush1.msra.mxu0 %v1641
        %1657 = vmatprep.subr.mxu0 0.0
        %1658 = vmatpush1.msra.mxu0 %v1640
        %1659 = vmatprep.subr.mxu0 0.0
        %1660 = vmatpush1.msra.mxu0 %v1639
        %1661 = vmatprep.subr.mxu0 0.0
        %1662 = vmatpush1.msra.mxu0 %v1638
        %1663 = vmatprep.subr.mxu0 0.0
        %1664 = vmatpush1.msra.mxu0 %v1637
        %1665 = vmatprep.subr.mxu0 0.0
        %1666 = vmatpush1.msra.mxu0 %v1636
        %1667 = vmatprep.subr.mxu0 0.0
        %1668 = vmatpush1.msra.mxu0 %v1635
        %1669 = vmatprep.subr.mxu0 0.0
        %1670 = vmatpush1.msra.mxu0 %v1634
        %1671 = vmatprep.subr.mxu0 0.0
        %1672 = vmatpush1.msra.mxu0 %v1633
        %1673 = vmatprep.subr.mxu0 0.0
        %1674 = vmatpush1.msra.mxu0 %v1632
        %1675 = vmatprep.subr.mxu0 0.0
        %1676 = vmatpush1.msra.mxu0 %v1631
        %1677 = vmatprep.subr.mxu0 0.0
        %1678 = vmatpush1.msra.mxu0 %v1630
        %1679 = vmatprep.subr.mxu0 0.0
        %1680 = vmatpush1.msra.mxu0 %v1629
        %1681 = vmatprep.subr.mxu0 0.0
        %1682 = vmatpush1.msra.mxu0 %v1628
        %1683 = vmatprep.subr.mxu0 0.0
        %1684 = vmatpush2.msra.mxu0 0.0
        %1685 = vmatprep.subr.mxu0 0.0
        %1686 = vmatpush2.msra.mxu0 0.0
        %1687 = vmatprep.subr.mxu0 0.0
        %1688 = vmatpush2.msra.mxu0 0.0
        %1689 = vmatprep.subr.mxu0 0.0
        %1690 = vmatpush2.msra.mxu0 0.0
        %1691 = vmatprep.subr.mxu0 0.0
        %1692 = vmatpush2.msra.mxu0 0.0
        %1693 = vmatprep.subr.mxu0 0.0
        %1694 = vmatpush2.msra.mxu0 0.0
        %1695 = vmatprep.subr.mxu0 0.0
        %1696 = vmatpush2.msra.mxu0 0.0
        %1697 = vmatprep.subr.mxu0 0.0
        %1698 = vmatpush2.msra.mxu0 0.0
        %1699 = vmatprep.subr.mxu0 0.0
        %1700 = vmatpush2.msra.mxu0 0.0
        %1701 = vmatprep.subr.mxu0 0.0
        %1702 = vmatpush2.msra.mxu0 0.0
        %1703 = vmatprep.subr.mxu0 0.0
        %1704 = vmatpush2.msra.mxu0 0.0
        %1705 = vmatprep.subr.mxu0 0.0
        %1706 = vmatpush2.msra.mxu0 0.0
        %1707 = vmatprep.subr.mxu0 0.0
        %1708 = vmatpush2.msra.mxu0 0.0
        %1709 = vmatprep.subr.mxu0 0.0
        %1710 = vmatpush2.msra.mxu0 0.0
        %1711 = vmatprep.subr.mxu0 0.0
        %1712 = vmatpush2.msra.mxu0 0.0
        %1713 = vmatprep.subr.mxu0 0.0
        %1714 = vmatpush2.msra.mxu0 0.0
        %1715 = vmatprep.mubr.f32.mxu0 0.0
        %1716 = vmatmul.mubr.f32.gmra.mxu0 %v1627
        %v1717 = vpop.f32.mrf.mxu0
        %v1718 = vadd.f32 %v1649, %v1717
        %v1719 = vpop.f32.mrf.mxu0
        %1720 = vdwg.mxu0
        %v1721 = vld [vmem:[#allocation20] sm:$0x1]
        %v1722 = vld [vmem:[#allocation22] sm:$0x1]
        %1723 = vadd.xlane.f32.xlu0 %v1718
        %v1724 = vpop.xlane.xlu0 %1723
        %v1725 = vmul.f32 %v1724, %v1482
        %v1726 = vsub.f32 %v1718, %v1725
        %v1727 = vmul.f32 %v1726, %v1726
        %1728 = vadd.xlane.f32.xlu0 %v1727
        %v1729 = vpop.xlane.xlu0 %1728
        %v1730 = vmul.f32 %v1729, %v1482
        %v1731 = vadd.f32 %v1730, 1e-05
        %v1732 = vrsqrt.pop %v1731
        %v1733 = vmul.f32 %v1726, %v1732
        %v1735 = vlaneseq
        %v1736 = vshrl.u32 %v1735, 7
        %v1737 = vsub.s32 0, %v1736
        %v1738 = vrot.slane %v1721, %v1737
        %v1740 = vmul.f32 %v1733, %v1738
        %v1742 = vlaneseq
        %v1743 = vshrl.u32 %v1742, 7
        %v1744 = vsub.s32 0, %v1743
        %v1745 = vrot.slane %v1722, %v1744
        %v1747 = vadd.f32 %v1740, %v1745
        %v1748 = vmul.f32 %v1747, 0.5
        %v1749 = vmul.f32 %v1747, 0.70710677
        %v1750 = vand.u32 2147483647, %v1749
        %v1751 = vmul.f32 %v1750, 0.3275911
        %v1752 = vadd.f32 %v1751, 1.0
        %v1753 = vrcp.pop %v1752
        %v1754 = vmul.f32 1.0, %v1753
        %v1755 = vmul.f32 %v1754, 1.0614054
        %v1756 = vadd.f32 %v1755, -1.4531521
        %v1757 = vmul.f32 %v1756, %v1754
        %v1758 = vadd.f32 %v1757, 1.4214138
        %v1759 = vmul.f32 %v1758, %v1754
        %v1760 = vadd.f32 %v1759, -0.28449672
        %v1761 = vmul.f32 %v1760, %v1754
        %v1762 = vadd.f32 %v1761, 0.2548296
        %v1763 = vmul.f32 %v1762, %v1754
        %v1764 = vsub.f32 0.0, %v1750
        %v1765 = vmul.f32 %v1764, %v1750
        %v1766 = vmul.f32 %v1765, 1.442695
        %v1767 = vpow.pop %v1766
        %v1768 = vmul.f32 %v1763, %v1767
        %v1769 = vsub.f32 1.0, %v1768
        %vm1770 = vcmp.ge.f32.partialorder %v1749, 0.0
        %v1771 = vsub.f32 0.0, %v1769
        %v1772 = vsel %vm1770, %v1769, %v1771
        %v1773 = vadd.f32 %v1772, 1.0
        %v1774 = vmul.f32 %v1748, %v1773
        loop: start=0, step=1, limit=4
        $region253: #{tpu_custom_call.1} parent=163 // loop_pre_header
          _
        $region254: #{tpu_custom_call.1} parent=163 // loop_header
          %s1776 = sphi 0, %s1780
          %p1777 = scmp.ge.s32.totalorder %s1776, 4
          %v1781 = vphi %v1774, %v3958
        $region255: #{tpu_custom_call.1} parent=163 // loop_header_branch
          %1779 = sbr.rel (%p1777) target = $region259
        $region256: #{tpu_custom_call.1} parent=163 // loop_body
          %s1782 = smul.u32 %s1776, 48
          %s1783 = smul.addr %s1782, 8
          %s1784 = scalar_lea.vmem [#allocation23], %s1783
          %v1785 = vld [vmem:[%s1784] sm:$0xff]
          %v1786 = vld [vmem:[%s1784 + $0x8] sm:$0xff]
          %v1787 = vld [vmem:[%s1784 + $0x10] sm:$0xff]
          %v1788 = vld [vmem:[%s1784 + $0x18] sm:$0xff]
          %v1789 = vld [vmem:[%s1784 + $0x20] sm:$0xff]
          %v1790 = vld [vmem:[%s1784 + $0x28] sm:$0xff]
          %v1791 = vld [vmem:[%s1784 + $0x30] sm:$0xff]
          %v1792 = vld [vmem:[%s1784 + $0x38] sm:$0xff]
          %v1793 = vld [vmem:[%s1784 + $0x40] sm:$0xff]
          %v1794 = vld [vmem:[%s1784 + $0x48] sm:$0xff]
          %v1795 = vld [vmem:[%s1784 + $0x50] sm:$0xff]
          %v1796 = vld [vmem:[%s1784 + $0x58] sm:$0xff]
          %v1797 = vld [vmem:[%s1784 + $0x60] sm:$0xff]
          %v1798 = vld [vmem:[%s1784 + $0x68] sm:$0xff]
          %v1799 = vld [vmem:[%s1784 + $0x70] sm:$0xff]
          %v1800 = vld [vmem:[%s1784 + $0x78] sm:$0xff]
          %v1801 = vld [vmem:[%s1784 + $0x80] sm:$0xff]
          %v1802 = vld [vmem:[%s1784 + $0x88] sm:$0xff]
          %v1803 = vld [vmem:[%s1784 + $0x90] sm:$0xff]
          %v1804 = vld [vmem:[%s1784 + $0x98] sm:$0xff]
          %v1805 = vld [vmem:[%s1784 + $0xa0] sm:$0xff]
          %v1806 = vld [vmem:[%s1784 + $0xa8] sm:$0xff]
          %v1807 = vld [vmem:[%s1784 + $0xb0] sm:$0xff]
          %v1808 = vld [vmem:[%s1784 + $0xb8] sm:$0xff]
          %v1809 = vld [vmem:[%s1784 + $0xc0] sm:$0xff]
          %v1810 = vld [vmem:[%s1784 + $0xc8] sm:$0xff]
          %v1811 = vld [vmem:[%s1784 + $0xd0] sm:$0xff]
          %v1812 = vld [vmem:[%s1784 + $0xd8] sm:$0xff]
          %v1813 = vld [vmem:[%s1784 + $0xe0] sm:$0xff]
          %v1814 = vld [vmem:[%s1784 + $0xe8] sm:$0xff]
          %v1815 = vld [vmem:[%s1784 + $0xf0] sm:$0xff]
          %v1816 = vld [vmem:[%s1784 + $0xf8] sm:$0xff]
          %v1817 = vld [vmem:[%s1784 + $0x100] sm:$0xff]
          %v1818 = vld [vmem:[%s1784 + $0x108] sm:$0xff]
          %v1819 = vld [vmem:[%s1784 + $0x110] sm:$0xff]
          %v1820 = vld [vmem:[%s1784 + $0x118] sm:$0xff]
          %v1821 = vld [vmem:[%s1784 + $0x120] sm:$0xff]
          %v1822 = vld [vmem:[%s1784 + $0x128] sm:$0xff]
          %v1823 = vld [vmem:[%s1784 + $0x130] sm:$0xff]
          %v1824 = vld [vmem:[%s1784 + $0x138] sm:$0xff]
          %v1825 = vld [vmem:[%s1784 + $0x140] sm:$0xff]
          %v1826 = vld [vmem:[%s1784 + $0x148] sm:$0xff]
          %v1827 = vld [vmem:[%s1784 + $0x150] sm:$0xff]
          %v1828 = vld [vmem:[%s1784 + $0x158] sm:$0xff]
          %v1829 = vld [vmem:[%s1784 + $0x160] sm:$0xff]
          %v1830 = vld [vmem:[%s1784 + $0x168] sm:$0xff]
          %v1831 = vld [vmem:[%s1784 + $0x170] sm:$0xff]
          %v1832 = vld [vmem:[%s1784 + $0x178] sm:$0xff]
          %s1833 = smul.u32 %s1776, 3
          %s1834 = scalar_lea.vmem %s31, %s1833
          %v1835 = vld [vmem:[%s1834] sm:$0x7]
          %v1837 = vlaneseq
          %v1838 = vshrl.u32 %v1837, 7
          %v1839 = vsub.s32 0, %v1838
          %v1840 = vrot.slane %v1835, %v1839
          %v1841 = vlaneseq
          %v1842 = vshrl.u32 %v1841, 7
          %v1843 = vsub.s32 1, %v1842
          %v1844 = vrot.slane %v1835, %v1843
          %v1845 = vlaneseq
          %v1846 = vshrl.u32 %v1845, 7
          %v1847 = vsub.s32 2, %v1846
          %v1848 = vrot.slane %v1835, %v1847
          %1852 = vmatprep.subr.mxu0 %v1831
          %1853 = vmatpush1.msra.mxu0 %v1830
          %1854 = vmatprep.subr.mxu0 %v1828
          %1855 = vmatpush1.msra.mxu0 %v1827
          %1856 = vmatprep.subr.mxu0 %v1825
          %1857 = vmatpush1.msra.mxu0 %v1824
          %1858 = vmatprep.subr.mxu0 %v1822
          %1859 = vmatpush1.msra.mxu0 %v1821
          %1860 = vmatprep.subr.mxu0 %v1819
          %1861 = vmatpush1.msra.mxu0 %v1818
          %1862 = vmatprep.subr.mxu0 %v1816
          %1863 = vmatpush1.msra.mxu0 %v1815
          %1864 = vmatprep.subr.mxu0 %v1813
          %1865 = vmatpush1.msra.mxu0 %v1812
          %1866 = vmatprep.subr.mxu0 %v1810
          %1867 = vmatpush1.msra.mxu0 %v1809
          %1868 = vmatprep.subr.mxu0 %v1807
          %1869 = vmatpush1.msra.mxu0 %v1806
          %1870 = vmatprep.subr.mxu0 %v1804
          %1871 = vmatpush1.msra.mxu0 %v1803
          %1872 = vmatprep.subr.mxu0 %v1801
          %1873 = vmatpush1.msra.mxu0 %v1800
          %1874 = vmatprep.subr.mxu0 %v1798
          %1875 = vmatpush1.msra.mxu0 %v1797
          %1876 = vmatprep.subr.mxu0 %v1795
          %1877 = vmatpush1.msra.mxu0 %v1794
          %1878 = vmatprep.subr.mxu0 %v1792
          %1879 = vmatpush1.msra.mxu0 %v1791
          %1880 = vmatprep.subr.mxu0 %v1789
          %1881 = vmatpush1.msra.mxu0 %v1788
          %1882 = vmatprep.subr.mxu0 %v1786
          %1883 = vmatpush1.msra.mxu0 %v1785
          %1884 = vmatprep.subr.mxu0 0.0
          %1885 = vmatpush2.msra.mxu0 0.0
          %1886 = vmatprep.subr.mxu0 0.0
          %1887 = vmatpush2.msra.mxu0 0.0
          %1888 = vmatprep.subr.mxu0 0.0
          %1889 = vmatpush2.msra.mxu0 0.0
          %1890 = vmatprep.subr.mxu0 0.0
          %1891 = vmatpush2.msra.mxu0 0.0
          %1892 = vmatprep.subr.mxu0 0.0
          %1893 = vmatpush2.msra.mxu0 0.0
          %1894 = vmatprep.subr.mxu0 0.0
          %1895 = vmatpush2.msra.mxu0 0.0
          %1896 = vmatprep.subr.mxu0 0.0
          %1897 = vmatpush2.msra.mxu0 0.0
          %1898 = vmatprep.subr.mxu0 0.0
          %1899 = vmatpush2.msra.mxu0 0.0
          %1900 = vmatprep.subr.mxu0 0.0
          %1901 = vmatpush2.msra.mxu0 0.0
          %1902 = vmatprep.subr.mxu0 0.0
          %1903 = vmatpush2.msra.mxu0 0.0
          %1904 = vmatprep.subr.mxu0 0.0
          %1905 = vmatpush2.msra.mxu0 0.0
          %1906 = vmatprep.subr.mxu0 0.0
          %1907 = vmatpush2.msra.mxu0 0.0
          %1908 = vmatprep.subr.mxu0 0.0
          %1909 = vmatpush2.msra.mxu0 0.0
          %1910 = vmatprep.subr.mxu0 0.0
          %1911 = vmatpush2.msra.mxu0 0.0
          %1912 = vmatprep.subr.mxu0 0.0
          %1913 = vmatpush2.msra.mxu0 0.0
          %1914 = vmatprep.subr.mxu0 0.0
          %1915 = vmatpush2.msra.mxu0 0.0
          %1916 = vmatprep.mubr.f32.mxu0 0.0
          %1917 = vmatmul.mubr.f32.gmra.mxu0 %v1781
          %v1918 = vpop.f32.mrf.mxu0
          %v1919 = vadd.f32 %v1840, %v1918
          %v1920 = vpop.f32.mrf.mxu0
          %v1921 = vadd.f32 %v1844, %v1920
          %1922 = vdwg.mxu0
          %1923 = vmatprep.subr.mxu0 0.0
          %1924 = vmatpush1.msra.mxu0 %v1832
          %1925 = vmatprep.subr.mxu0 0.0
          %1926 = vmatpush1.msra.mxu0 %v1829
          %1927 = vmatprep.subr.mxu0 0.0
          %1928 = vmatpush1.msra.mxu0 %v1826
          %1929 = vmatprep.subr.mxu0 0.0
          %1930 = vmatpush1.msra.mxu0 %v1823
          %1931 = vmatprep.subr.mxu0 0.0
          %1932 = vmatpush1.msra.mxu0 %v1820
          %1933 = vmatprep.subr.mxu0 0.0
          %1934 = vmatpush1.msra.mxu0 %v1817
          %1935 = vmatprep.subr.mxu0 0.0
          %1936 = vmatpush1.msra.mxu0 %v1814
          %1937 = vmatprep.subr.mxu0 0.0
          %1938 = vmatpush1.msra.mxu0 %v1811
          %1939 = vmatprep.subr.mxu0 0.0
          %1940 = vmatpush1.msra.mxu0 %v1808
          %1941 = vmatprep.subr.mxu0 0.0
          %1942 = vmatpush1.msra.mxu0 %v1805
          %1943 = vmatprep.subr.mxu0 0.0
          %1944 = vmatpush1.msra.mxu0 %v1802
          %1945 = vmatprep.subr.mxu0 0.0
          %1946 = vmatpush1.msra.mxu0 %v1799
          %1947 = vmatprep.subr.mxu0 0.0
          %1948 = vmatpush1.msra.mxu0 %v1796
          %1949 = vmatprep.subr.mxu0 0.0
          %1950 = vmatpush1.msra.mxu0 %v1793
          %1951 = vmatprep.subr.mxu0 0.0
          %1952 = vmatpush1.msra.mxu0 %v1790
          %1953 = vmatprep.subr.mxu0 0.0
          %1954 = vmatpush1.msra.mxu0 %v1787
          %1955 = vmatprep.subr.mxu0 0.0
          %1956 = vmatpush2.msra.mxu0 0.0
          %1957 = vmatprep.subr.mxu0 0.0
          %1958 = vmatpush2.msra.mxu0 0.0
          %1959 = vmatprep.subr.mxu0 0.0
          %1960 = vmatpush2.msra.mxu0 0.0
          %1961 = vmatprep.subr.mxu0 0.0
          %1962 = vmatpush2.msra.mxu0 0.0
          %1963 = vmatprep.subr.mxu0 0.0
          %1964 = vmatpush2.msra.mxu0 0.0
          %1965 = vmatprep.subr.mxu0 0.0
          %1966 = vmatpush2.msra.mxu0 0.0
          %1967 = vmatprep.subr.mxu0 0.0
          %1968 = vmatpush2.msra.mxu0 0.0
          %1969 = vmatprep.subr.mxu0 0.0
          %1970 = vmatpush2.msra.mxu0 0.0
          %1971 = vmatprep.subr.mxu0 0.0
          %1972 = vmatpush2.msra.mxu0 0.0
          %1973 = vmatprep.subr.mxu0 0.0
          %1974 = vmatpush2.msra.mxu0 0.0
          %1975 = vmatprep.subr.mxu0 0.0
          %1976 = vmatpush2.msra.mxu0 0.0
          %1977 = vmatprep.subr.mxu0 0.0
          %1978 = vmatpush2.msra.mxu0 0.0
          %1979 = vmatprep.subr.mxu0 0.0
          %1980 = vmatpush2.msra.mxu0 0.0
          %1981 = vmatprep.subr.mxu0 0.0
          %1982 = vmatpush2.msra.mxu0 0.0
          %1983 = vmatprep.subr.mxu0 0.0
          %1984 = vmatpush2.msra.mxu0 0.0
          %1985 = vmatprep.subr.mxu0 0.0
          %1986 = vmatpush2.msra.mxu0 0.0
          %1987 = vmatprep.mubr.f32.mxu0 0.0
          %1988 = vmatmul.mubr.f32.gmra.mxu0 %v1781
          %v1989 = vpop.f32.mrf.mxu0
          %v1990 = vadd.f32 %v1848, %v1989
          %v1991 = vpop.f32.mrf.mxu0
          %1992 = vdwg.mxu0
          %v1993 = vmul.f32 %v1919, 0.25
          %1995 = vrot.lane.b32.xlu0 %v1993, 112
          %v1996 = vpop.permute.xlu0 %1995
          %1997 = vrot.lane.b32.xlu0 %v1993, 96
          %v1998 = vpop.permute.xlu0 %1997
          %1999 = vrot.lane.b32.xlu0 %v1993, 80
          %v2000 = vpop.permute.xlu0 %1999
          %2001 = vrot.lane.b32.xlu0 %v1993, 64
          %v2002 = vpop.permute.xlu0 %2001
          %2003 = vrot.lane.b32.xlu0 %v1993, 48
          %v2004 = vpop.permute.xlu0 %2003
          %2005 = vrot.lane.b32.xlu0 %v1993, 32
          %v2006 = vpop.permute.xlu0 %2005
          %2007 = vrot.lane.b32.xlu0 %v1993, 16
          %v2008 = vpop.permute.xlu0 %2007
          %2010 = vrot.lane.b32.xlu0 %v1921, 112
          %v2011 = vpop.permute.xlu0 %2010
          %2012 = vrot.lane.b32.xlu0 %v1921, 96
          %v2013 = vpop.permute.xlu0 %2012
          %2014 = vrot.lane.b32.xlu0 %v1921, 80
          %v2015 = vpop.permute.xlu0 %2014
          %2016 = vrot.lane.b32.xlu0 %v1921, 64
          %v2017 = vpop.permute.xlu0 %2016
          %2018 = vrot.lane.b32.xlu0 %v1921, 48
          %v2019 = vpop.permute.xlu0 %2018
          %2020 = vrot.lane.b32.xlu0 %v1921, 32
          %v2021 = vpop.permute.xlu0 %2020
          %2022 = vrot.lane.b32.xlu0 %v1921, 16
          %v2023 = vpop.permute.xlu0 %2022
          %2025 = vrot.lane.b32.xlu0 %v1990, 112
          %v2026 = vpop.permute.xlu0 %2025
          %2028 = vrot.lane.b32.xlu0 %v1990, 96
          %v2029 = vpop.permute.xlu0 %2028
          %2031 = vrot.lane.b32.xlu0 %v1990, 80
          %v2032 = vpop.permute.xlu0 %2031
          %2034 = vrot.lane.b32.xlu0 %v1990, 64
          %v2035 = vpop.permute.xlu0 %2034
          %2037 = vrot.lane.b32.xlu0 %v1990, 48
          %v2038 = vpop.permute.xlu0 %2037
          %2040 = vrot.lane.b32.xlu0 %v1990, 32
          %v2041 = vpop.permute.xlu0 %2040
          %2043 = vrot.lane.b32.xlu0 %v1990, 16
          %v2044 = vpop.permute.xlu0 %2043
          %v2046 = vsel %vm1404, %v1993, 0
          %v2048 = vsel %vm1404, %v1921, 0
          %2050 = vmatprep.subr.mxu0 0.0
          %2051 = vmatpush1.xpose.msra.mxu0 0.0
          %2052 = vmatprep.subr.mxu0 0.0
          %2053 = vmatpush1.xpose.msra.mxu0 0.0
          %2054 = vmatprep.subr.mxu0 0.0
          %2055 = vmatpush1.xpose.msra.mxu0 0.0
          %2056 = vmatprep.subr.mxu0 0.0
          %2057 = vmatpush1.xpose.msra.mxu0 0.0
          %2058 = vmatprep.subr.mxu0 0.0
          %2059 = vmatpush1.xpose.msra.mxu0 0.0
          %2060 = vmatprep.subr.mxu0 0.0
          %2061 = vmatpush1.xpose.msra.mxu0 0.0
          %2062 = vmatprep.subr.mxu0 0.0
          %2063 = vmatpush1.xpose.msra.mxu0 0.0
          %2064 = vmatprep.subr.mxu0 0.0
          %2065 = vmatpush1.xpose.msra.mxu0 0.0
          %2066 = vmatprep.subr.mxu0 0.0
          %2067 = vmatpush1.xpose.msra.mxu0 0.0
          %2068 = vmatprep.subr.mxu0 0.0
          %2069 = vmatpush1.xpose.msra.mxu0 0.0
          %2070 = vmatprep.subr.mxu0 0.0
          %2071 = vmatpush1.xpose.msra.mxu0 0.0
          %2072 = vmatprep.subr.mxu0 0.0
          %2073 = vmatpush1.xpose.msra.mxu0 0.0
          %2074 = vmatprep.subr.mxu0 0.0
          %2075 = vmatpush1.xpose.msra.mxu0 0.0
          %2076 = vmatprep.subr.mxu0 0.0
          %2077 = vmatpush1.xpose.msra.mxu0 0.0
          %2078 = vmatprep.subr.mxu0 0.0
          %2079 = vmatpush1.xpose.msra.mxu0 0.0
          %2080 = vmatprep.subr.mxu0 0.0
          %2081 = vmatpush1.xpose.msra.mxu0 %v2048
          %2082 = vmatprep.subr.mxu0 0.0
          %2083 = vmatpush2.xpose.msra.mxu0 0.0
          %2084 = vmatprep.subr.mxu0 0.0
          %2085 = vmatpush2.xpose.msra.mxu0 0.0
          %2086 = vmatprep.subr.mxu0 0.0
          %2087 = vmatpush2.xpose.msra.mxu0 0.0
          %2088 = vmatprep.subr.mxu0 0.0
          %2089 = vmatpush2.xpose.msra.mxu0 0.0
          %2090 = vmatprep.subr.mxu0 0.0
          %2091 = vmatpush2.xpose.msra.mxu0 0.0
          %2092 = vmatprep.subr.mxu0 0.0
          %2093 = vmatpush2.xpose.msra.mxu0 0.0
          %2094 = vmatprep.subr.mxu0 0.0
          %2095 = vmatpush2.xpose.msra.mxu0 0.0
          %2096 = vmatprep.subr.mxu0 0.0
          %2097 = vmatpush2.xpose.msra.mxu0 0.0
          %2098 = vmatprep.subr.mxu0 0.0
          %2099 = vmatpush2.xpose.msra.mxu0 0.0
          %2100 = vmatprep.subr.mxu0 0.0
          %2101 = vmatpush2.xpose.msra.mxu0 0.0
          %2102 = vmatprep.subr.mxu0 0.0
          %2103 = vmatpush2.xpose.msra.mxu0 0.0
          %2104 = vmatprep.subr.mxu0 0.0
          %2105 = vmatpush2.xpose.msra.mxu0 0.0
          %2106 = vmatprep.subr.mxu0 0.0
          %2107 = vmatpush2.xpose.msra.mxu0 0.0
          %2108 = vmatprep.subr.mxu0 0.0
          %2109 = vmatpush2.xpose.msra.mxu0 0.0
          %2110 = vmatprep.subr.mxu0 0.0
          %2111 = vmatpush2.xpose.msra.mxu0 0.0
          %2112 = vmatprep.subr.mxu0 0.0
          %2113 = vmatpush2.xpose.msra.mxu0 0.0
          %2114 = vmatprep.mubr.f32.mxu0 0.0
          %2115 = vmatmul.mubr.f32.gmra.mxu0 %v2046
          %v2116 = vpop.f32.mrf.mxu0
          %v2117 = vadd.f32 0.0, %v2116
          %v2118 = vpop.f32.mrf.mxu0
          %2119 = vdwg.mxu0
          %v2120 = vsel %vm1404, %v1996, 0
          %v2122 = vsel %vm1404, %v2011, 0
          %2124 = vmatprep.subr.mxu0 0.0
          %2125 = vmatpush1.xpose.msra.mxu0 0.0
          %2126 = vmatprep.subr.mxu0 0.0
          %2127 = vmatpush1.xpose.msra.mxu0 0.0
          %2128 = vmatprep.subr.mxu0 0.0
          %2129 = vmatpush1.xpose.msra.mxu0 0.0
          %2130 = vmatprep.subr.mxu0 0.0
          %2131 = vmatpush1.xpose.msra.mxu0 0.0
          %2132 = vmatprep.subr.mxu0 0.0
          %2133 = vmatpush1.xpose.msra.mxu0 0.0
          %2134 = vmatprep.subr.mxu0 0.0
          %2135 = vmatpush1.xpose.msra.mxu0 0.0
          %2136 = vmatprep.subr.mxu0 0.0
          %2137 = vmatpush1.xpose.msra.mxu0 0.0
          %2138 = vmatprep.subr.mxu0 0.0
          %2139 = vmatpush1.xpose.msra.mxu0 0.0
          %2140 = vmatprep.subr.mxu0 0.0
          %2141 = vmatpush1.xpose.msra.mxu0 0.0
          %2142 = vmatprep.subr.mxu0 0.0
          %2143 = vmatpush1.xpose.msra.mxu0 0.0
          %2144 = vmatprep.subr.mxu0 0.0
          %2145 = vmatpush1.xpose.msra.mxu0 0.0
          %2146 = vmatprep.subr.mxu0 0.0
          %2147 = vmatpush1.xpose.msra.mxu0 0.0
          %2148 = vmatprep.subr.mxu0 0.0
          %2149 = vmatpush1.xpose.msra.mxu0 0.0
          %2150 = vmatprep.subr.mxu0 0.0
          %2151 = vmatpush1.xpose.msra.mxu0 0.0
          %2152 = vmatprep.subr.mxu0 0.0
          %2153 = vmatpush1.xpose.msra.mxu0 0.0
          %2154 = vmatprep.subr.mxu0 0.0
          %2155 = vmatpush1.xpose.msra.mxu0 %v2122
          %2156 = vmatprep.subr.mxu0 0.0
          %2157 = vmatpush2.xpose.msra.mxu0 0.0
          %2158 = vmatprep.subr.mxu0 0.0
          %2159 = vmatpush2.xpose.msra.mxu0 0.0
          %2160 = vmatprep.subr.mxu0 0.0
          %2161 = vmatpush2.xpose.msra.mxu0 0.0
          %2162 = vmatprep.subr.mxu0 0.0
          %2163 = vmatpush2.xpose.msra.mxu0 0.0
          %2164 = vmatprep.subr.mxu0 0.0
          %2165 = vmatpush2.xpose.msra.mxu0 0.0
          %2166 = vmatprep.subr.mxu0 0.0
          %2167 = vmatpush2.xpose.msra.mxu0 0.0
          %2168 = vmatprep.subr.mxu0 0.0
          %2169 = vmatpush2.xpose.msra.mxu0 0.0
          %2170 = vmatprep.subr.mxu0 0.0
          %2171 = vmatpush2.xpose.msra.mxu0 0.0
          %2172 = vmatprep.subr.mxu0 0.0
          %2173 = vmatpush2.xpose.msra.mxu0 0.0
          %2174 = vmatprep.subr.mxu0 0.0
          %2175 = vmatpush2.xpose.msra.mxu0 0.0
          %2176 = vmatprep.subr.mxu0 0.0
          %2177 = vmatpush2.xpose.msra.mxu0 0.0
          %2178 = vmatprep.subr.mxu0 0.0
          %2179 = vmatpush2.xpose.msra.mxu0 0.0
          %2180 = vmatprep.subr.mxu0 0.0
          %2181 = vmatpush2.xpose.msra.mxu0 0.0
          %2182 = vmatprep.subr.mxu0 0.0
          %2183 = vmatpush2.xpose.msra.mxu0 0.0
          %2184 = vmatprep.subr.mxu0 0.0
          %2185 = vmatpush2.xpose.msra.mxu0 0.0
          %2186 = vmatprep.subr.mxu0 0.0
          %2187 = vmatpush2.xpose.msra.mxu0 0.0
          %2188 = vmatprep.mubr.f32.mxu0 0.0
          %2189 = vmatmul.mubr.f32.gmra.mxu0 %v2120
          %v2190 = vpop.f32.mrf.mxu0
          %v2191 = vadd.f32 0.0, %v2190
          %v2192 = vpop.f32.mrf.mxu0
          %2193 = vdwg.mxu0
          %v2194 = vsel %vm1404, %v1998, 0
          %v2196 = vsel %vm1404, %v2013, 0
          %2198 = vmatprep.subr.mxu0 0.0
          %2199 = vmatpush1.xpose.msra.mxu0 0.0
          %2200 = vmatprep.subr.mxu0 0.0
          %2201 = vmatpush1.xpose.msra.mxu0 0.0
          %2202 = vmatprep.subr.mxu0 0.0
          %2203 = vmatpush1.xpose.msra.mxu0 0.0
          %2204 = vmatprep.subr.mxu0 0.0
          %2205 = vmatpush1.xpose.msra.mxu0 0.0
          %2206 = vmatprep.subr.mxu0 0.0
          %2207 = vmatpush1.xpose.msra.mxu0 0.0
          %2208 = vmatprep.subr.mxu0 0.0
          %2209 = vmatpush1.xpose.msra.mxu0 0.0
          %2210 = vmatprep.subr.mxu0 0.0
          %2211 = vmatpush1.xpose.msra.mxu0 0.0
          %2212 = vmatprep.subr.mxu0 0.0
          %2213 = vmatpush1.xpose.msra.mxu0 0.0
          %2214 = vmatprep.subr.mxu0 0.0
          %2215 = vmatpush1.xpose.msra.mxu0 0.0
          %2216 = vmatprep.subr.mxu0 0.0
          %2217 = vmatpush1.xpose.msra.mxu0 0.0
          %2218 = vmatprep.subr.mxu0 0.0
          %2219 = vmatpush1.xpose.msra.mxu0 0.0
          %2220 = vmatprep.subr.mxu0 0.0
          %2221 = vmatpush1.xpose.msra.mxu0 0.0
          %2222 = vmatprep.subr.mxu0 0.0
          %2223 = vmatpush1.xpose.msra.mxu0 0.0
          %2224 = vmatprep.subr.mxu0 0.0
          %2225 = vmatpush1.xpose.msra.mxu0 0.0
          %2226 = vmatprep.subr.mxu0 0.0
          %2227 = vmatpush1.xpose.msra.mxu0 0.0
          %2228 = vmatprep.subr.mxu0 0.0
          %2229 = vmatpush1.xpose.msra.mxu0 %v2196
          %2230 = vmatprep.subr.mxu0 0.0
          %2231 = vmatpush2.xpose.msra.mxu0 0.0
          %2232 = vmatprep.subr.mxu0 0.0
          %2233 = vmatpush2.xpose.msra.mxu0 0.0
          %2234 = vmatprep.subr.mxu0 0.0
          %2235 = vmatpush2.xpose.msra.mxu0 0.0
          %2236 = vmatprep.subr.mxu0 0.0
          %2237 = vmatpush2.xpose.msra.mxu0 0.0
          %2238 = vmatprep.subr.mxu0 0.0
          %2239 = vmatpush2.xpose.msra.mxu0 0.0
          %2240 = vmatprep.subr.mxu0 0.0
          %2241 = vmatpush2.xpose.msra.mxu0 0.0
          %2242 = vmatprep.subr.mxu0 0.0
          %2243 = vmatpush2.xpose.msra.mxu0 0.0
          %2244 = vmatprep.subr.mxu0 0.0
          %2245 = vmatpush2.xpose.msra.mxu0 0.0
          %2246 = vmatprep.subr.mxu0 0.0
          %2247 = vmatpush2.xpose.msra.mxu0 0.0
          %2248 = vmatprep.subr.mxu0 0.0
          %2249 = vmatpush2.xpose.msra.mxu0 0.0
          %2250 = vmatprep.subr.mxu0 0.0
          %2251 = vmatpush2.xpose.msra.mxu0 0.0
          %2252 = vmatprep.subr.mxu0 0.0
          %2253 = vmatpush2.xpose.msra.mxu0 0.0
          %2254 = vmatprep.subr.mxu0 0.0
          %2255 = vmatpush2.xpose.msra.mxu0 0.0
          %2256 = vmatprep.subr.mxu0 0.0
          %2257 = vmatpush2.xpose.msra.mxu0 0.0
          %2258 = vmatprep.subr.mxu0 0.0
          %2259 = vmatpush2.xpose.msra.mxu0 0.0
          %2260 = vmatprep.subr.mxu0 0.0
          %2261 = vmatpush2.xpose.msra.mxu0 0.0
          %2262 = vmatprep.mubr.f32.mxu0 0.0
          %2263 = vmatmul.mubr.f32.gmra.mxu0 %v2194
          %v2264 = vpop.f32.mrf.mxu0
          %v2265 = vadd.f32 0.0, %v2264
          %v2266 = vpop.f32.mrf.mxu0
          %2267 = vdwg.mxu0
          %v2268 = vsel %vm1404, %v2000, 0
          %v2270 = vsel %vm1404, %v2015, 0
          %2272 = vmatprep.subr.mxu0 0.0
          %2273 = vmatpush1.xpose.msra.mxu0 0.0
          %2274 = vmatprep.subr.mxu0 0.0
          %2275 = vmatpush1.xpose.msra.mxu0 0.0
          %2276 = vmatprep.subr.mxu0 0.0
          %2277 = vmatpush1.xpose.msra.mxu0 0.0
          %2278 = vmatprep.subr.mxu0 0.0
          %2279 = vmatpush1.xpose.msra.mxu0 0.0
          %2280 = vmatprep.subr.mxu0 0.0
          %2281 = vmatpush1.xpose.msra.mxu0 0.0
          %2282 = vmatprep.subr.mxu0 0.0
          %2283 = vmatpush1.xpose.msra.mxu0 0.0
          %2284 = vmatprep.subr.mxu0 0.0
          %2285 = vmatpush1.xpose.msra.mxu0 0.0
          %2286 = vmatprep.subr.mxu0 0.0
          %2287 = vmatpush1.xpose.msra.mxu0 0.0
          %2288 = vmatprep.subr.mxu0 0.0
          %2289 = vmatpush1.xpose.msra.mxu0 0.0
          %2290 = vmatprep.subr.mxu0 0.0
          %2291 = vmatpush1.xpose.msra.mxu0 0.0
          %2292 = vmatprep.subr.mxu0 0.0
          %2293 = vmatpush1.xpose.msra.mxu0 0.0
          %2294 = vmatprep.subr.mxu0 0.0
          %2295 = vmatpush1.xpose.msra.mxu0 0.0
          %2296 = vmatprep.subr.mxu0 0.0
          %2297 = vmatpush1.xpose.msra.mxu0 0.0
          %2298 = vmatprep.subr.mxu0 0.0
          %2299 = vmatpush1.xpose.msra.mxu0 0.0
          %2300 = vmatprep.subr.mxu0 0.0
          %2301 = vmatpush1.xpose.msra.mxu0 0.0
          %2302 = vmatprep.subr.mxu0 0.0
          %2303 = vmatpush1.xpose.msra.mxu0 %v2270
          %2304 = vmatprep.subr.mxu0 0.0
          %2305 = vmatpush2.xpose.msra.mxu0 0.0
          %2306 = vmatprep.subr.mxu0 0.0
          %2307 = vmatpush2.xpose.msra.mxu0 0.0
          %2308 = vmatprep.subr.mxu0 0.0
          %2309 = vmatpush2.xpose.msra.mxu0 0.0
          %2310 = vmatprep.subr.mxu0 0.0
          %2311 = vmatpush2.xpose.msra.mxu0 0.0
          %2312 = vmatprep.subr.mxu0 0.0
          %2313 = vmatpush2.xpose.msra.mxu0 0.0
          %2314 = vmatprep.subr.mxu0 0.0
          %2315 = vmatpush2.xpose.msra.mxu0 0.0
          %2316 = vmatprep.subr.mxu0 0.0
          %2317 = vmatpush2.xpose.msra.mxu0 0.0
          %2318 = vmatprep.subr.mxu0 0.0
          %2319 = vmatpush2.xpose.msra.mxu0 0.0
          %2320 = vmatprep.subr.mxu0 0.0
          %2321 = vmatpush2.xpose.msra.mxu0 0.0
          %2322 = vmatprep.subr.mxu0 0.0
          %2323 = vmatpush2.xpose.msra.mxu0 0.0
          %2324 = vmatprep.subr.mxu0 0.0
          %2325 = vmatpush2.xpose.msra.mxu0 0.0
          %2326 = vmatprep.subr.mxu0 0.0
          %2327 = vmatpush2.xpose.msra.mxu0 0.0
          %2328 = vmatprep.subr.mxu0 0.0
          %2329 = vmatpush2.xpose.msra.mxu0 0.0
          %2330 = vmatprep.subr.mxu0 0.0
          %2331 = vmatpush2.xpose.msra.mxu0 0.0
          %2332 = vmatprep.subr.mxu0 0.0
          %2333 = vmatpush2.xpose.msra.mxu0 0.0
          %2334 = vmatprep.subr.mxu0 0.0
          %2335 = vmatpush2.xpose.msra.mxu0 0.0
          %2336 = vmatprep.mubr.f32.mxu0 0.0
          %2337 = vmatmul.mubr.f32.gmra.mxu0 %v2268
          %v2338 = vpop.f32.mrf.mxu0
          %v2339 = vadd.f32 0.0, %v2338
          %v2340 = vpop.f32.mrf.mxu0
          %2341 = vdwg.mxu0
          %v2342 = vsel %vm1404, %v2002, 0
          %v2344 = vsel %vm1404, %v2017, 0
          %2346 = vmatprep.subr.mxu0 0.0
          %2347 = vmatpush1.xpose.msra.mxu0 0.0
          %2348 = vmatprep.subr.mxu0 0.0
          %2349 = vmatpush1.xpose.msra.mxu0 0.0
          %2350 = vmatprep.subr.mxu0 0.0
          %2351 = vmatpush1.xpose.msra.mxu0 0.0
          %2352 = vmatprep.subr.mxu0 0.0
          %2353 = vmatpush1.xpose.msra.mxu0 0.0
          %2354 = vmatprep.subr.mxu0 0.0
          %2355 = vmatpush1.xpose.msra.mxu0 0.0
          %2356 = vmatprep.subr.mxu0 0.0
          %2357 = vmatpush1.xpose.msra.mxu0 0.0
          %2358 = vmatprep.subr.mxu0 0.0
          %2359 = vmatpush1.xpose.msra.mxu0 0.0
          %2360 = vmatprep.subr.mxu0 0.0
          %2361 = vmatpush1.xpose.msra.mxu0 0.0
          %2362 = vmatprep.subr.mxu0 0.0
          %2363 = vmatpush1.xpose.msra.mxu0 0.0
          %2364 = vmatprep.subr.mxu0 0.0
          %2365 = vmatpush1.xpose.msra.mxu0 0.0
          %2366 = vmatprep.subr.mxu0 0.0
          %2367 = vmatpush1.xpose.msra.mxu0 0.0
          %2368 = vmatprep.subr.mxu0 0.0
          %2369 = vmatpush1.xpose.msra.mxu0 0.0
          %2370 = vmatprep.subr.mxu0 0.0
          %2371 = vmatpush1.xpose.msra.mxu0 0.0
          %2372 = vmatprep.subr.mxu0 0.0
          %2373 = vmatpush1.xpose.msra.mxu0 0.0
          %2374 = vmatprep.subr.mxu0 0.0
          %2375 = vmatpush1.xpose.msra.mxu0 0.0
          %2376 = vmatprep.subr.mxu0 0.0
          %2377 = vmatpush1.xpose.msra.mxu0 %v2344
          %2378 = vmatprep.subr.mxu0 0.0
          %2379 = vmatpush2.xpose.msra.mxu0 0.0
          %2380 = vmatprep.subr.mxu0 0.0
          %2381 = vmatpush2.xpose.msra.mxu0 0.0
          %2382 = vmatprep.subr.mxu0 0.0
          %2383 = vmatpush2.xpose.msra.mxu0 0.0
          %2384 = vmatprep.subr.mxu0 0.0
          %2385 = vmatpush2.xpose.msra.mxu0 0.0
          %2386 = vmatprep.subr.mxu0 0.0
          %2387 = vmatpush2.xpose.msra.mxu0 0.0
          %2388 = vmatprep.subr.mxu0 0.0
          %2389 = vmatpush2.xpose.msra.mxu0 0.0
          %2390 = vmatprep.subr.mxu0 0.0
          %2391 = vmatpush2.xpose.msra.mxu0 0.0
          %2392 = vmatprep.subr.mxu0 0.0
          %2393 = vmatpush2.xpose.msra.mxu0 0.0
          %2394 = vmatprep.subr.mxu0 0.0
          %2395 = vmatpush2.xpose.msra.mxu0 0.0
          %2396 = vmatprep.subr.mxu0 0.0
          %2397 = vmatpush2.xpose.msra.mxu0 0.0
          %2398 = vmatprep.subr.mxu0 0.0
          %2399 = vmatpush2.xpose.msra.mxu0 0.0
          %2400 = vmatprep.subr.mxu0 0.0
          %2401 = vmatpush2.xpose.msra.mxu0 0.0
          %2402 = vmatprep.subr.mxu0 0.0
          %2403 = vmatpush2.xpose.msra.mxu0 0.0
          %2404 = vmatprep.subr.mxu0 0.0
          %2405 = vmatpush2.xpose.msra.mxu0 0.0
          %2406 = vmatprep.subr.mxu0 0.0
          %2407 = vmatpush2.xpose.msra.mxu0 0.0
          %2408 = vmatprep.subr.mxu0 0.0
          %2409 = vmatpush2.xpose.msra.mxu0 0.0
          %2410 = vmatprep.mubr.f32.mxu0 0.0
          %2411 = vmatmul.mubr.f32.gmra.mxu0 %v2342
          %v2412 = vpop.f32.mrf.mxu0
          %v2413 = vadd.f32 0.0, %v2412
          %v2414 = vpop.f32.mrf.mxu0
          %2415 = vdwg.mxu0
          %v2416 = vsel %vm1404, %v2004, 0
          %v2418 = vsel %vm1404, %v2019, 0
          %2420 = vmatprep.subr.mxu0 0.0
          %2421 = vmatpush1.xpose.msra.mxu0 0.0
          %2422 = vmatprep.subr.mxu0 0.0
          %2423 = vmatpush1.xpose.msra.mxu0 0.0
          %2424 = vmatprep.subr.mxu0 0.0
          %2425 = vmatpush1.xpose.msra.mxu0 0.0
          %2426 = vmatprep.subr.mxu0 0.0
          %2427 = vmatpush1.xpose.msra.mxu0 0.0
          %2428 = vmatprep.subr.mxu0 0.0
          %2429 = vmatpush1.xpose.msra.mxu0 0.0
          %2430 = vmatprep.subr.mxu0 0.0
          %2431 = vmatpush1.xpose.msra.mxu0 0.0
          %2432 = vmatprep.subr.mxu0 0.0
          %2433 = vmatpush1.xpose.msra.mxu0 0.0
          %2434 = vmatprep.subr.mxu0 0.0
          %2435 = vmatpush1.xpose.msra.mxu0 0.0
          %2436 = vmatprep.subr.mxu0 0.0
          %2437 = vmatpush1.xpose.msra.mxu0 0.0
          %2438 = vmatprep.subr.mxu0 0.0
          %2439 = vmatpush1.xpose.msra.mxu0 0.0
          %2440 = vmatprep.subr.mxu0 0.0
          %2441 = vmatpush1.xpose.msra.mxu0 0.0
          %2442 = vmatprep.subr.mxu0 0.0
          %2443 = vmatpush1.xpose.msra.mxu0 0.0
          %2444 = vmatprep.subr.mxu0 0.0
          %2445 = vmatpush1.xpose.msra.mxu0 0.0
          %2446 = vmatprep.subr.mxu0 0.0
          %2447 = vmatpush1.xpose.msra.mxu0 0.0
          %2448 = vmatprep.subr.mxu0 0.0
          %2449 = vmatpush1.xpose.msra.mxu0 0.0
          %2450 = vmatprep.subr.mxu0 0.0
          %2451 = vmatpush1.xpose.msra.mxu0 %v2418
          %2452 = vmatprep.subr.mxu0 0.0
          %2453 = vmatpush2.xpose.msra.mxu0 0.0
          %2454 = vmatprep.subr.mxu0 0.0
          %2455 = vmatpush2.xpose.msra.mxu0 0.0
          %2456 = vmatprep.subr.mxu0 0.0
          %2457 = vmatpush2.xpose.msra.mxu0 0.0
          %2458 = vmatprep.subr.mxu0 0.0
          %2459 = vmatpush2.xpose.msra.mxu0 0.0
          %2460 = vmatprep.subr.mxu0 0.0
          %2461 = vmatpush2.xpose.msra.mxu0 0.0
          %2462 = vmatprep.subr.mxu0 0.0
          %2463 = vmatpush2.xpose.msra.mxu0 0.0
          %2464 = vmatprep.subr.mxu0 0.0
          %2465 = vmatpush2.xpose.msra.mxu0 0.0
          %2466 = vmatprep.subr.mxu0 0.0
          %2467 = vmatpush2.xpose.msra.mxu0 0.0
          %2468 = vmatprep.subr.mxu0 0.0
          %2469 = vmatpush2.xpose.msra.mxu0 0.0
          %2470 = vmatprep.subr.mxu0 0.0
          %2471 = vmatpush2.xpose.msra.mxu0 0.0
          %2472 = vmatprep.subr.mxu0 0.0
          %2473 = vmatpush2.xpose.msra.mxu0 0.0
          %2474 = vmatprep.subr.mxu0 0.0
          %2475 = vmatpush2.xpose.msra.mxu0 0.0
          %2476 = vmatprep.subr.mxu0 0.0
          %2477 = vmatpush2.xpose.msra.mxu0 0.0
          %2478 = vmatprep.subr.mxu0 0.0
          %2479 = vmatpush2.xpose.msra.mxu0 0.0
          %2480 = vmatprep.subr.mxu0 0.0
          %2481 = vmatpush2.xpose.msra.mxu0 0.0
          %2482 = vmatprep.subr.mxu0 0.0
          %2483 = vmatpush2.xpose.msra.mxu0 0.0
          %2484 = vmatprep.mubr.f32.mxu0 0.0
          %2485 = vmatmul.mubr.f32.gmra.mxu0 %v2416
          %v2486 = vpop.f32.mrf.mxu0
          %v2487 = vadd.f32 0.0, %v2486
          %v2488 = vpop.f32.mrf.mxu0
          %2489 = vdwg.mxu0
          %v2490 = vsel %vm1404, %v2006, 0
          %v2492 = vsel %vm1404, %v2021, 0
          %2494 = vmatprep.subr.mxu0 0.0
          %2495 = vmatpush1.xpose.msra.mxu0 0.0
          %2496 = vmatprep.subr.mxu0 0.0
          %2497 = vmatpush1.xpose.msra.mxu0 0.0
          %2498 = vmatprep.subr.mxu0 0.0
          %2499 = vmatpush1.xpose.msra.mxu0 0.0
          %2500 = vmatprep.subr.mxu0 0.0
          %2501 = vmatpush1.xpose.msra.mxu0 0.0
          %2502 = vmatprep.subr.mxu0 0.0
          %2503 = vmatpush1.xpose.msra.mxu0 0.0
          %2504 = vmatprep.subr.mxu0 0.0
          %2505 = vmatpush1.xpose.msra.mxu0 0.0
          %2506 = vmatprep.subr.mxu0 0.0
          %2507 = vmatpush1.xpose.msra.mxu0 0.0
          %2508 = vmatprep.subr.mxu0 0.0
          %2509 = vmatpush1.xpose.msra.mxu0 0.0
          %2510 = vmatprep.subr.mxu0 0.0
          %2511 = vmatpush1.xpose.msra.mxu0 0.0
          %2512 = vmatprep.subr.mxu0 0.0
          %2513 = vmatpush1.xpose.msra.mxu0 0.0
          %2514 = vmatprep.subr.mxu0 0.0
          %2515 = vmatpush1.xpose.msra.mxu0 0.0
          %2516 = vmatprep.subr.mxu0 0.0
          %2517 = vmatpush1.xpose.msra.mxu0 0.0
          %2518 = vmatprep.subr.mxu0 0.0
          %2519 = vmatpush1.xpose.msra.mxu0 0.0
          %2520 = vmatprep.subr.mxu0 0.0
          %2521 = vmatpush1.xpose.msra.mxu0 0.0
          %2522 = vmatprep.subr.mxu0 0.0
          %2523 = vmatpush1.xpose.msra.mxu0 0.0
          %2524 = vmatprep.subr.mxu0 0.0
          %2525 = vmatpush1.xpose.msra.mxu0 %v2492
          %2526 = vmatprep.subr.mxu0 0.0
          %2527 = vmatpush2.xpose.msra.mxu0 0.0
          %2528 = vmatprep.subr.mxu0 0.0
          %2529 = vmatpush2.xpose.msra.mxu0 0.0
          %2530 = vmatprep.subr.mxu0 0.0
          %2531 = vmatpush2.xpose.msra.mxu0 0.0
          %2532 = vmatprep.subr.mxu0 0.0
          %2533 = vmatpush2.xpose.msra.mxu0 0.0
          %2534 = vmatprep.subr.mxu0 0.0
          %2535 = vmatpush2.xpose.msra.mxu0 0.0
          %2536 = vmatprep.subr.mxu0 0.0
          %2537 = vmatpush2.xpose.msra.mxu0 0.0
          %2538 = vmatprep.subr.mxu0 0.0
          %2539 = vmatpush2.xpose.msra.mxu0 0.0
          %2540 = vmatprep.subr.mxu0 0.0
          %2541 = vmatpush2.xpose.msra.mxu0 0.0
          %2542 = vmatprep.subr.mxu0 0.0
          %2543 = vmatpush2.xpose.msra.mxu0 0.0
          %2544 = vmatprep.subr.mxu0 0.0
          %2545 = vmatpush2.xpose.msra.mxu0 0.0
          %2546 = vmatprep.subr.mxu0 0.0
          %2547 = vmatpush2.xpose.msra.mxu0 0.0
          %2548 = vmatprep.subr.mxu0 0.0
          %2549 = vmatpush2.xpose.msra.mxu0 0.0
          %2550 = vmatprep.subr.mxu0 0.0
          %2551 = vmatpush2.xpose.msra.mxu0 0.0
          %2552 = vmatprep.subr.mxu0 0.0
          %2553 = vmatpush2.xpose.msra.mxu0 0.0
          %2554 = vmatprep.subr.mxu0 0.0
          %2555 = vmatpush2.xpose.msra.mxu0 0.0
          %2556 = vmatprep.subr.mxu0 0.0
          %2557 = vmatpush2.xpose.msra.mxu0 0.0
          %2558 = vmatprep.mubr.f32.mxu0 0.0
          %2559 = vmatmul.mubr.f32.gmra.mxu0 %v2490
          %v2560 = vpop.f32.mrf.mxu0
          %v2561 = vadd.f32 0.0, %v2560
          %v2562 = vpop.f32.mrf.mxu0
          %2563 = vdwg.mxu0
          %v2564 = vsel %vm1404, %v2008, 0
          %v2566 = vsel %vm1404, %v2023, 0
          %2568 = vmatprep.subr.mxu0 0.0
          %2569 = vmatpush1.xpose.msra.mxu0 0.0
          %2570 = vmatprep.subr.mxu0 0.0
          %2571 = vmatpush1.xpose.msra.mxu0 0.0
          %2572 = vmatprep.subr.mxu0 0.0
          %2573 = vmatpush1.xpose.msra.mxu0 0.0
          %2574 = vmatprep.subr.mxu0 0.0
          %2575 = vmatpush1.xpose.msra.mxu0 0.0
          %2576 = vmatprep.subr.mxu0 0.0
          %2577 = vmatpush1.xpose.msra.mxu0 0.0
          %2578 = vmatprep.subr.mxu0 0.0
          %2579 = vmatpush1.xpose.msra.mxu0 0.0
          %2580 = vmatprep.subr.mxu0 0.0
          %2581 = vmatpush1.xpose.msra.mxu0 0.0
          %2582 = vmatprep.subr.mxu0 0.0
          %2583 = vmatpush1.xpose.msra.mxu0 0.0
          %2584 = vmatprep.subr.mxu0 0.0
          %2585 = vmatpush1.xpose.msra.mxu0 0.0
          %2586 = vmatprep.subr.mxu0 0.0
          %2587 = vmatpush1.xpose.msra.mxu0 0.0
          %2588 = vmatprep.subr.mxu0 0.0
          %2589 = vmatpush1.xpose.msra.mxu0 0.0
          %2590 = vmatprep.subr.mxu0 0.0
          %2591 = vmatpush1.xpose.msra.mxu0 0.0
          %2592 = vmatprep.subr.mxu0 0.0
          %2593 = vmatpush1.xpose.msra.mxu0 0.0
          %2594 = vmatprep.subr.mxu0 0.0
          %2595 = vmatpush1.xpose.msra.mxu0 0.0
          %2596 = vmatprep.subr.mxu0 0.0
          %2597 = vmatpush1.xpose.msra.mxu0 0.0
          %2598 = vmatprep.subr.mxu0 0.0
          %2599 = vmatpush1.xpose.msra.mxu0 %v2566
          %2600 = vmatprep.subr.mxu0 0.0
          %2601 = vmatpush2.xpose.msra.mxu0 0.0
          %2602 = vmatprep.subr.mxu0 0.0
          %2603 = vmatpush2.xpose.msra.mxu0 0.0
          %2604 = vmatprep.subr.mxu0 0.0
          %2605 = vmatpush2.xpose.msra.mxu0 0.0
          %2606 = vmatprep.subr.mxu0 0.0
          %2607 = vmatpush2.xpose.msra.mxu0 0.0
          %2608 = vmatprep.subr.mxu0 0.0
          %2609 = vmatpush2.xpose.msra.mxu0 0.0
          %2610 = vmatprep.subr.mxu0 0.0
          %2611 = vmatpush2.xpose.msra.mxu0 0.0
          %2612 = vmatprep.subr.mxu0 0.0
          %2613 = vmatpush2.xpose.msra.mxu0 0.0
          %2614 = vmatprep.subr.mxu0 0.0
          %2615 = vmatpush2.xpose.msra.mxu0 0.0
          %2616 = vmatprep.subr.mxu0 0.0
          %2617 = vmatpush2.xpose.msra.mxu0 0.0
          %2618 = vmatprep.subr.mxu0 0.0
          %2619 = vmatpush2.xpose.msra.mxu0 0.0
          %2620 = vmatprep.subr.mxu0 0.0
          %2621 = vmatpush2.xpose.msra.mxu0 0.0
          %2622 = vmatprep.subr.mxu0 0.0
          %2623 = vmatpush2.xpose.msra.mxu0 0.0
          %2624 = vmatprep.subr.mxu0 0.0
          %2625 = vmatpush2.xpose.msra.mxu0 0.0
          %2626 = vmatprep.subr.mxu0 0.0
          %2627 = vmatpush2.xpose.msra.mxu0 0.0
          %2628 = vmatprep.subr.mxu0 0.0
          %2629 = vmatpush2.xpose.msra.mxu0 0.0
          %2630 = vmatprep.subr.mxu0 0.0
          %2631 = vmatpush2.xpose.msra.mxu0 0.0
          %2632 = vmatprep.mubr.f32.mxu0 0.0
          %2633 = vmatmul.mubr.f32.gmra.mxu0 %v2564
          %v2634 = vpop.f32.mrf.mxu0
          %v2635 = vadd.f32 0.0, %v2634
          %v2636 = vpop.f32.mrf.mxu0
          %2637 = vdwg.mxu0
          %vm2638 = vcmask 64512
          %v2639 = vsel %vm2638, %v2117, -inf
          %2640 = vmax.xlane.f32.xlu0 %v2639
          %v2641 = vpop.xlane.xlu0 %2640
          %v2642 = vsel %vm2638, %v2191, -inf
          %2643 = vmax.xlane.f32.xlu0 %v2642
          %v2644 = vpop.xlane.xlu0 %2643
          %v2645 = vsel %vm2638, %v2265, -inf
          %2646 = vmax.xlane.f32.xlu0 %v2645
          %v2647 = vpop.xlane.xlu0 %2646
          %v2648 = vsel %vm2638, %v2339, -inf
          %2649 = vmax.xlane.f32.xlu0 %v2648
          %v2650 = vpop.xlane.xlu0 %2649
          %v2651 = vsel %vm2638, %v2413, -inf
          %2652 = vmax.xlane.f32.xlu0 %v2651
          %v2653 = vpop.xlane.xlu0 %2652
          %v2654 = vsel %vm2638, %v2487, -inf
          %2655 = vmax.xlane.f32.xlu0 %v2654
          %v2656 = vpop.xlane.xlu0 %2655
          %v2657 = vsel %vm2638, %v2561, -inf
          %2658 = vmax.xlane.f32.xlu0 %v2657
          %v2659 = vpop.xlane.xlu0 %2658
          %v2660 = vsel %vm2638, %v2635, -inf
          %2661 = vmax.xlane.f32.xlu0 %v2660
          %v2662 = vpop.xlane.xlu0 %2661
          %v2663 = vsub.f32 %v2117, %v2641
          %v2664 = vsub.f32 %v2191, %v2644
          %v2665 = vsub.f32 %v2265, %v2647
          %v2666 = vsub.f32 %v2339, %v2650
          %v2667 = vsub.f32 %v2413, %v2653
          %v2668 = vsub.f32 %v2487, %v2656
          %v2669 = vsub.f32 %v2561, %v2659
          %v2670 = vsub.f32 %v2635, %v2662
          %v2671 = vmul.f32 %v2663, 1.442695
          %v2672 = vpow.pop %v2671
          %v2673 = vmul.f32 %v2664, 1.442695
          %v2674 = vpow.pop %v2673
          %v2675 = vmul.f32 %v2665, 1.442695
          %v2676 = vpow.pop %v2675
          %v2677 = vmul.f32 %v2666, 1.442695
          %v2678 = vpow.pop %v2677
          %v2679 = vmul.f32 %v2667, 1.442695
          %v2680 = vpow.pop %v2679
          %v2681 = vmul.f32 %v2668, 1.442695
          %v2682 = vpow.pop %v2681
          %v2683 = vmul.f32 %v2669, 1.442695
          %v2684 = vpow.pop %v2683
          %v2685 = vmul.f32 %v2670, 1.442695
          %v2686 = vpow.pop %v2685
          %v2687 = vsel %vm2638, %v2672, 0.0
          %2688 = vadd.xlane.f32.xlu0 %v2687
          %v2689 = vpop.xlane.xlu0 %2688
          %v2690 = vsel %vm2638, %v2674, 0.0
          %2691 = vadd.xlane.f32.xlu0 %v2690
          %v2692 = vpop.xlane.xlu0 %2691
          %v2693 = vsel %vm2638, %v2676, 0.0
          %2694 = vadd.xlane.f32.xlu0 %v2693
          %v2695 = vpop.xlane.xlu0 %2694
          %v2696 = vsel %vm2638, %v2678, 0.0
          %2697 = vadd.xlane.f32.xlu0 %v2696
          %v2698 = vpop.xlane.xlu0 %2697
          %v2699 = vsel %vm2638, %v2680, 0.0
          %2700 = vadd.xlane.f32.xlu0 %v2699
          %v2701 = vpop.xlane.xlu0 %2700
          %v2702 = vsel %vm2638, %v2682, 0.0
          %2703 = vadd.xlane.f32.xlu0 %v2702
          %v2704 = vpop.xlane.xlu0 %2703
          %v2705 = vsel %vm2638, %v2684, 0.0
          %2706 = vadd.xlane.f32.xlu0 %v2705
          %v2707 = vpop.xlane.xlu0 %2706
          %v2708 = vsel %vm2638, %v2686, 0.0
          %2709 = vadd.xlane.f32.xlu0 %v2708
          %v2710 = vpop.xlane.xlu0 %2709
          %v2711 = vrcp.pop %v2689
          %v2712 = vmul.f32 %v2672, %v2711
          %v2713 = vrcp.pop %v2692
          %v2714 = vmul.f32 %v2674, %v2713
          %v2715 = vrcp.pop %v2695
          %v2716 = vmul.f32 %v2676, %v2715
          %v2717 = vrcp.pop %v2698
          %v2718 = vmul.f32 %v2678, %v2717
          %v2719 = vrcp.pop %v2701
          %v2720 = vmul.f32 %v2680, %v2719
          %v2721 = vrcp.pop %v2704
          %v2722 = vmul.f32 %v2682, %v2721
          %v2723 = vrcp.pop %v2707
          %v2724 = vmul.f32 %v2684, %v2723
          %v2725 = vrcp.pop %v2710
          %v2726 = vmul.f32 %v2686, %v2725
          %v2728 = vsel %vm2638, %v2712, 0
          %2730 = vmatprep.subr.mxu0 0.0
          %2731 = vmatpush1.msra.mxu0 0.0
          %2732 = vmatprep.subr.mxu0 0.0
          %2733 = vmatpush1.msra.mxu0 0.0
          %2734 = vmatprep.subr.mxu0 0.0
          %2735 = vmatpush1.msra.mxu0 0.0
          %2736 = vmatprep.subr.mxu0 0.0
          %2737 = vmatpush1.msra.mxu0 0.0
          %2738 = vmatprep.subr.mxu0 0.0
          %2739 = vmatpush1.msra.mxu0 0.0
          %2740 = vmatprep.subr.mxu0 0.0
          %2741 = vmatpush1.msra.mxu0 0.0
          %2742 = vmatprep.subr.mxu0 0.0
          %2743 = vmatpush1.msra.mxu0 0.0
          %2744 = vmatprep.subr.mxu0 0.0
          %2745 = vmatpush1.msra.mxu0 0.0
          %2746 = vmatprep.subr.mxu0 0.0
          %2747 = vmatpush1.msra.mxu0 0.0
          %2748 = vmatprep.subr.mxu0 0.0
          %2749 = vmatpush1.msra.mxu0 0.0
          %2750 = vmatprep.subr.mxu0 0.0
          %2751 = vmatpush1.msra.mxu0 0.0
          %2752 = vmatprep.subr.mxu0 0.0
          %2753 = vmatpush1.msra.mxu0 0.0
          %2754 = vmatprep.subr.mxu0 0.0
          %2755 = vmatpush1.msra.mxu0 0.0
          %2756 = vmatprep.subr.mxu0 0.0
          %2757 = vmatpush1.msra.mxu0 0.0
          %2758 = vmatprep.subr.mxu0 0.0
          %2759 = vmatpush1.msra.mxu0 0.0
          %2760 = vmatprep.subr.mxu0 0.0
          %2761 = vmatpush1.msra.mxu0 %v1990
          %2762 = vmatprep.subr.mxu0 0.0
          %2763 = vmatpush2.msra.mxu0 0.0
          %2764 = vmatprep.subr.mxu0 0.0
          %2765 = vmatpush2.msra.mxu0 0.0
          %2766 = vmatprep.subr.mxu0 0.0
          %2767 = vmatpush2.msra.mxu0 0.0
          %2768 = vmatprep.subr.mxu0 0.0
          %2769 = vmatpush2.msra.mxu0 0.0
          %2770 = vmatprep.subr.mxu0 0.0
          %2771 = vmatpush2.msra.mxu0 0.0
          %2772 = vmatprep.subr.mxu0 0.0
          %2773 = vmatpush2.msra.mxu0 0.0
          %2774 = vmatprep.subr.mxu0 0.0
          %2775 = vmatpush2.msra.mxu0 0.0
          %2776 = vmatprep.subr.mxu0 0.0
          %2777 = vmatpush2.msra.mxu0 0.0
          %2778 = vmatprep.subr.mxu0 0.0
          %2779 = vmatpush2.msra.mxu0 0.0
          %2780 = vmatprep.subr.mxu0 0.0
          %2781 = vmatpush2.msra.mxu0 0.0
          %2782 = vmatprep.subr.mxu0 0.0
          %2783 = vmatpush2.msra.mxu0 0.0
          %2784 = vmatprep.subr.mxu0 0.0
          %2785 = vmatpush2.msra.mxu0 0.0
          %2786 = vmatprep.subr.mxu0 0.0
          %2787 = vmatpush2.msra.mxu0 0.0
          %2788 = vmatprep.subr.mxu0 0.0
          %2789 = vmatpush2.msra.mxu0 0.0
          %2790 = vmatprep.subr.mxu0 0.0
          %2791 = vmatpush2.msra.mxu0 0.0
          %2792 = vmatprep.subr.mxu0 0.0
          %2793 = vmatpush2.msra.mxu0 0.0
          %2794 = vmatprep.mubr.f32.mxu0 0.0
          %2795 = vmatmul.mubr.f32.gmra.mxu0 %v2728
          %v2796 = vpop.f32.mrf.mxu0
          %v2797 = vadd.f32 0.0, %v2796
          %v2798 = vpop.f32.mrf.mxu0
          %2799 = vdwg.mxu0
          %v2801 = vsel %vm2638, %v2714, 0
          %2803 = vmatprep.subr.mxu0 0.0
          %2804 = vmatpush1.msra.mxu0 0.0
          %2805 = vmatprep.subr.mxu0 0.0
          %2806 = vmatpush1.msra.mxu0 0.0
          %2807 = vmatprep.subr.mxu0 0.0
          %2808 = vmatpush1.msra.mxu0 0.0
          %2809 = vmatprep.subr.mxu0 0.0
          %2810 = vmatpush1.msra.mxu0 0.0
          %2811 = vmatprep.subr.mxu0 0.0
          %2812 = vmatpush1.msra.mxu0 0.0
          %2813 = vmatprep.subr.mxu0 0.0
          %2814 = vmatpush1.msra.mxu0 0.0
          %2815 = vmatprep.subr.mxu0 0.0
          %2816 = vmatpush1.msra.mxu0 0.0
          %2817 = vmatprep.subr.mxu0 0.0
          %2818 = vmatpush1.msra.mxu0 0.0
          %2819 = vmatprep.subr.mxu0 0.0
          %2820 = vmatpush1.msra.mxu0 0.0
          %2821 = vmatprep.subr.mxu0 0.0
          %2822 = vmatpush1.msra.mxu0 0.0
          %2823 = vmatprep.subr.mxu0 0.0
          %2824 = vmatpush1.msra.mxu0 0.0
          %2825 = vmatprep.subr.mxu0 0.0
          %2826 = vmatpush1.msra.mxu0 0.0
          %2827 = vmatprep.subr.mxu0 0.0
          %2828 = vmatpush1.msra.mxu0 0.0
          %2829 = vmatprep.subr.mxu0 0.0
          %2830 = vmatpush1.msra.mxu0 0.0
          %2831 = vmatprep.subr.mxu0 0.0
          %2832 = vmatpush1.msra.mxu0 0.0
          %2833 = vmatprep.subr.mxu0 0.0
          %2834 = vmatpush1.msra.mxu0 %v2026
          %2835 = vmatprep.subr.mxu0 0.0
          %2836 = vmatpush2.msra.mxu0 0.0
          %2837 = vmatprep.subr.mxu0 0.0
          %2838 = vmatpush2.msra.mxu0 0.0
          %2839 = vmatprep.subr.mxu0 0.0
          %2840 = vmatpush2.msra.mxu0 0.0
          %2841 = vmatprep.subr.mxu0 0.0
          %2842 = vmatpush2.msra.mxu0 0.0
          %2843 = vmatprep.subr.mxu0 0.0
          %2844 = vmatpush2.msra.mxu0 0.0
          %2845 = vmatprep.subr.mxu0 0.0
          %2846 = vmatpush2.msra.mxu0 0.0
          %2847 = vmatprep.subr.mxu0 0.0
          %2848 = vmatpush2.msra.mxu0 0.0
          %2849 = vmatprep.subr.mxu0 0.0
          %2850 = vmatpush2.msra.mxu0 0.0
          %2851 = vmatprep.subr.mxu0 0.0
          %2852 = vmatpush2.msra.mxu0 0.0
          %2853 = vmatprep.subr.mxu0 0.0
          %2854 = vmatpush2.msra.mxu0 0.0
          %2855 = vmatprep.subr.mxu0 0.0
          %2856 = vmatpush2.msra.mxu0 0.0
          %2857 = vmatprep.subr.mxu0 0.0
          %2858 = vmatpush2.msra.mxu0 0.0
          %2859 = vmatprep.subr.mxu0 0.0
          %2860 = vmatpush2.msra.mxu0 0.0
          %2861 = vmatprep.subr.mxu0 0.0
          %2862 = vmatpush2.msra.mxu0 0.0
          %2863 = vmatprep.subr.mxu0 0.0
          %2864 = vmatpush2.msra.mxu0 0.0
          %2865 = vmatprep.subr.mxu0 0.0
          %2866 = vmatpush2.msra.mxu0 0.0
          %2867 = vmatprep.mubr.f32.mxu0 0.0
          %2868 = vmatmul.mubr.f32.gmra.mxu0 %v2801
          %v2869 = vpop.f32.mrf.mxu0
          %v2870 = vadd.f32 0.0, %v2869
          %v2871 = vpop.f32.mrf.mxu0
          %2872 = vdwg.mxu0
          %v2874 = vsel %vm2638, %v2716, 0
          %2876 = vmatprep.subr.mxu0 0.0
          %2877 = vmatpush1.msra.mxu0 0.0
          %2878 = vmatprep.subr.mxu0 0.0
          %2879 = vmatpush1.msra.mxu0 0.0
          %2880 = vmatprep.subr.mxu0 0.0
          %2881 = vmatpush1.msra.mxu0 0.0
          %2882 = vmatprep.subr.mxu0 0.0
          %2883 = vmatpush1.msra.mxu0 0.0
          %2884 = vmatprep.subr.mxu0 0.0
          %2885 = vmatpush1.msra.mxu0 0.0
          %2886 = vmatprep.subr.mxu0 0.0
          %2887 = vmatpush1.msra.mxu0 0.0
          %2888 = vmatprep.subr.mxu0 0.0
          %2889 = vmatpush1.msra.mxu0 0.0
          %2890 = vmatprep.subr.mxu0 0.0
          %2891 = vmatpush1.msra.mxu0 0.0
          %2892 = vmatprep.subr.mxu0 0.0
          %2893 = vmatpush1.msra.mxu0 0.0
          %2894 = vmatprep.subr.mxu0 0.0
          %2895 = vmatpush1.msra.mxu0 0.0
          %2896 = vmatprep.subr.mxu0 0.0
          %2897 = vmatpush1.msra.mxu0 0.0
          %2898 = vmatprep.subr.mxu0 0.0
          %2899 = vmatpush1.msra.mxu0 0.0
          %2900 = vmatprep.subr.mxu0 0.0
          %2901 = vmatpush1.msra.mxu0 0.0
          %2902 = vmatprep.subr.mxu0 0.0
          %2903 = vmatpush1.msra.mxu0 0.0
          %2904 = vmatprep.subr.mxu0 0.0
          %2905 = vmatpush1.msra.mxu0 0.0
          %2906 = vmatprep.subr.mxu0 0.0
          %2907 = vmatpush1.msra.mxu0 %v2029
          %2908 = vmatprep.subr.mxu0 0.0
          %2909 = vmatpush2.msra.mxu0 0.0
          %2910 = vmatprep.subr.mxu0 0.0
          %2911 = vmatpush2.msra.mxu0 0.0
          %2912 = vmatprep.subr.mxu0 0.0
          %2913 = vmatpush2.msra.mxu0 0.0
          %2914 = vmatprep.subr.mxu0 0.0
          %2915 = vmatpush2.msra.mxu0 0.0
          %2916 = vmatprep.subr.mxu0 0.0
          %2917 = vmatpush2.msra.mxu0 0.0
          %2918 = vmatprep.subr.mxu0 0.0
          %2919 = vmatpush2.msra.mxu0 0.0
          %2920 = vmatprep.subr.mxu0 0.0
          %2921 = vmatpush2.msra.mxu0 0.0
          %2922 = vmatprep.subr.mxu0 0.0
          %2923 = vmatpush2.msra.mxu0 0.0
          %2924 = vmatprep.subr.mxu0 0.0
          %2925 = vmatpush2.msra.mxu0 0.0
          %2926 = vmatprep.subr.mxu0 0.0
          %2927 = vmatpush2.msra.mxu0 0.0
          %2928 = vmatprep.subr.mxu0 0.0
          %2929 = vmatpush2.msra.mxu0 0.0
          %2930 = vmatprep.subr.mxu0 0.0
          %2931 = vmatpush2.msra.mxu0 0.0
          %2932 = vmatprep.subr.mxu0 0.0
          %2933 = vmatpush2.msra.mxu0 0.0
          %2934 = vmatprep.subr.mxu0 0.0
          %2935 = vmatpush2.msra.mxu0 0.0
          %2936 = vmatprep.subr.mxu0 0.0
          %2937 = vmatpush2.msra.mxu0 0.0
          %2938 = vmatprep.subr.mxu0 0.0
          %2939 = vmatpush2.msra.mxu0 0.0
          %2940 = vmatprep.mubr.f32.mxu0 0.0
          %2941 = vmatmul.mubr.f32.gmra.mxu0 %v2874
          %v2942 = vpop.f32.mrf.mxu0
          %v2943 = vadd.f32 0.0, %v2942
          %v2944 = vpop.f32.mrf.mxu0
          %2945 = vdwg.mxu0
          %v2947 = vsel %vm2638, %v2718, 0
          %2949 = vmatprep.subr.mxu0 0.0
          %2950 = vmatpush1.msra.mxu0 0.0
          %2951 = vmatprep.subr.mxu0 0.0
          %2952 = vmatpush1.msra.mxu0 0.0
          %2953 = vmatprep.subr.mxu0 0.0
          %2954 = vmatpush1.msra.mxu0 0.0
          %2955 = vmatprep.subr.mxu0 0.0
          %2956 = vmatpush1.msra.mxu0 0.0
          %2957 = vmatprep.subr.mxu0 0.0
          %2958 = vmatpush1.msra.mxu0 0.0
          %2959 = vmatprep.subr.mxu0 0.0
          %2960 = vmatpush1.msra.mxu0 0.0
          %2961 = vmatprep.subr.mxu0 0.0
          %2962 = vmatpush1.msra.mxu0 0.0
          %2963 = vmatprep.subr.mxu0 0.0
          %2964 = vmatpush1.msra.mxu0 0.0
          %2965 = vmatprep.subr.mxu0 0.0
          %2966 = vmatpush1.msra.mxu0 0.0
          %2967 = vmatprep.subr.mxu0 0.0
          %2968 = vmatpush1.msra.mxu0 0.0
          %2969 = vmatprep.subr.mxu0 0.0
          %2970 = vmatpush1.msra.mxu0 0.0
          %2971 = vmatprep.subr.mxu0 0.0
          %2972 = vmatpush1.msra.mxu0 0.0
          %2973 = vmatprep.subr.mxu0 0.0
          %2974 = vmatpush1.msra.mxu0 0.0
          %2975 = vmatprep.subr.mxu0 0.0
          %2976 = vmatpush1.msra.mxu0 0.0
          %2977 = vmatprep.subr.mxu0 0.0
          %2978 = vmatpush1.msra.mxu0 0.0
          %2979 = vmatprep.subr.mxu0 0.0
          %2980 = vmatpush1.msra.mxu0 %v2032
          %2981 = vmatprep.subr.mxu0 0.0
          %2982 = vmatpush2.msra.mxu0 0.0
          %2983 = vmatprep.subr.mxu0 0.0
          %2984 = vmatpush2.msra.mxu0 0.0
          %2985 = vmatprep.subr.mxu0 0.0
          %2986 = vmatpush2.msra.mxu0 0.0
          %2987 = vmatprep.subr.mxu0 0.0
          %2988 = vmatpush2.msra.mxu0 0.0
          %2989 = vmatprep.subr.mxu0 0.0
          %2990 = vmatpush2.msra.mxu0 0.0
          %2991 = vmatprep.subr.mxu0 0.0
          %2992 = vmatpush2.msra.mxu0 0.0
          %2993 = vmatprep.subr.mxu0 0.0
          %2994 = vmatpush2.msra.mxu0 0.0
          %2995 = vmatprep.subr.mxu0 0.0
          %2996 = vmatpush2.msra.mxu0 0.0
          %2997 = vmatprep.subr.mxu0 0.0
          %2998 = vmatpush2.msra.mxu0 0.0
          %2999 = vmatprep.subr.mxu0 0.0
          %3000 = vmatpush2.msra.mxu0 0.0
          %3001 = vmatprep.subr.mxu0 0.0
          %3002 = vmatpush2.msra.mxu0 0.0
          %3003 = vmatprep.subr.mxu0 0.0
          %3004 = vmatpush2.msra.mxu0 0.0
          %3005 = vmatprep.subr.mxu0 0.0
          %3006 = vmatpush2.msra.mxu0 0.0
          %3007 = vmatprep.subr.mxu0 0.0
          %3008 = vmatpush2.msra.mxu0 0.0
          %3009 = vmatprep.subr.mxu0 0.0
          %3010 = vmatpush2.msra.mxu0 0.0
          %3011 = vmatprep.subr.mxu0 0.0
          %3012 = vmatpush2.msra.mxu0 0.0
          %3013 = vmatprep.mubr.f32.mxu0 0.0
          %3014 = vmatmul.mubr.f32.gmra.mxu0 %v2947
          %v3015 = vpop.f32.mrf.mxu0
          %v3016 = vadd.f32 0.0, %v3015
          %v3017 = vpop.f32.mrf.mxu0
          %3018 = vdwg.mxu0
          %v3020 = vsel %vm2638, %v2720, 0
          %3022 = vmatprep.subr.mxu0 0.0
          %3023 = vmatpush1.msra.mxu0 0.0
          %3024 = vmatprep.subr.mxu0 0.0
          %3025 = vmatpush1.msra.mxu0 0.0
          %3026 = vmatprep.subr.mxu0 0.0
          %3027 = vmatpush1.msra.mxu0 0.0
          %3028 = vmatprep.subr.mxu0 0.0
          %3029 = vmatpush1.msra.mxu0 0.0
          %3030 = vmatprep.subr.mxu0 0.0
          %3031 = vmatpush1.msra.mxu0 0.0
          %3032 = vmatprep.subr.mxu0 0.0
          %3033 = vmatpush1.msra.mxu0 0.0
          %3034 = vmatprep.subr.mxu0 0.0
          %3035 = vmatpush1.msra.mxu0 0.0
          %3036 = vmatprep.subr.mxu0 0.0
          %3037 = vmatpush1.msra.mxu0 0.0
          %3038 = vmatprep.subr.mxu0 0.0
          %3039 = vmatpush1.msra.mxu0 0.0
          %3040 = vmatprep.subr.mxu0 0.0
          %3041 = vmatpush1.msra.mxu0 0.0
          %3042 = vmatprep.subr.mxu0 0.0
          %3043 = vmatpush1.msra.mxu0 0.0
          %3044 = vmatprep.subr.mxu0 0.0
          %3045 = vmatpush1.msra.mxu0 0.0
          %3046 = vmatprep.subr.mxu0 0.0
          %3047 = vmatpush1.msra.mxu0 0.0
          %3048 = vmatprep.subr.mxu0 0.0
          %3049 = vmatpush1.msra.mxu0 0.0
          %3050 = vmatprep.subr.mxu0 0.0
          %3051 = vmatpush1.msra.mxu0 0.0
          %3052 = vmatprep.subr.mxu0 0.0
          %3053 = vmatpush1.msra.mxu0 %v2035
          %3054 = vmatprep.subr.mxu0 0.0
          %3055 = vmatpush2.msra.mxu0 0.0
          %3056 = vmatprep.subr.mxu0 0.0
          %3057 = vmatpush2.msra.mxu0 0.0
          %3058 = vmatprep.subr.mxu0 0.0
          %3059 = vmatpush2.msra.mxu0 0.0
          %3060 = vmatprep.subr.mxu0 0.0
          %3061 = vmatpush2.msra.mxu0 0.0
          %3062 = vmatprep.subr.mxu0 0.0
          %3063 = vmatpush2.msra.mxu0 0.0
          %3064 = vmatprep.subr.mxu0 0.0
          %3065 = vmatpush2.msra.mxu0 0.0
          %3066 = vmatprep.subr.mxu0 0.0
          %3067 = vmatpush2.msra.mxu0 0.0
          %3068 = vmatprep.subr.mxu0 0.0
          %3069 = vmatpush2.msra.mxu0 0.0
          %3070 = vmatprep.subr.mxu0 0.0
          %3071 = vmatpush2.msra.mxu0 0.0
          %3072 = vmatprep.subr.mxu0 0.0
          %3073 = vmatpush2.msra.mxu0 0.0
          %3074 = vmatprep.subr.mxu0 0.0
          %3075 = vmatpush2.msra.mxu0 0.0
          %3076 = vmatprep.subr.mxu0 0.0
          %3077 = vmatpush2.msra.mxu0 0.0
          %3078 = vmatprep.subr.mxu0 0.0
          %3079 = vmatpush2.msra.mxu0 0.0
          %3080 = vmatprep.subr.mxu0 0.0
          %3081 = vmatpush2.msra.mxu0 0.0
          %3082 = vmatprep.subr.mxu0 0.0
          %3083 = vmatpush2.msra.mxu0 0.0
          %3084 = vmatprep.subr.mxu0 0.0
          %3085 = vmatpush2.msra.mxu0 0.0
          %3086 = vmatprep.mubr.f32.mxu0 0.0
          %3087 = vmatmul.mubr.f32.gmra.mxu0 %v3020
          %v3088 = vpop.f32.mrf.mxu0
          %v3089 = vadd.f32 0.0, %v3088
          %v3090 = vpop.f32.mrf.mxu0
          %3091 = vdwg.mxu0
          %v3093 = vsel %vm2638, %v2722, 0
          %3095 = vmatprep.subr.mxu0 0.0
          %3096 = vmatpush1.msra.mxu0 0.0
          %3097 = vmatprep.subr.mxu0 0.0
          %3098 = vmatpush1.msra.mxu0 0.0
          %3099 = vmatprep.subr.mxu0 0.0
          %3100 = vmatpush1.msra.mxu0 0.0
          %3101 = vmatprep.subr.mxu0 0.0
          %3102 = vmatpush1.msra.mxu0 0.0
          %3103 = vmatprep.subr.mxu0 0.0
          %3104 = vmatpush1.msra.mxu0 0.0
          %3105 = vmatprep.subr.mxu0 0.0
          %3106 = vmatpush1.msra.mxu0 0.0
          %3107 = vmatprep.subr.mxu0 0.0
          %3108 = vmatpush1.msra.mxu0 0.0
          %3109 = vmatprep.subr.mxu0 0.0
          %3110 = vmatpush1.msra.mxu0 0.0
          %3111 = vmatprep.subr.mxu0 0.0
          %3112 = vmatpush1.msra.mxu0 0.0
          %3113 = vmatprep.subr.mxu0 0.0
          %3114 = vmatpush1.msra.mxu0 0.0
          %3115 = vmatprep.subr.mxu0 0.0
          %3116 = vmatpush1.msra.mxu0 0.0
          %3117 = vmatprep.subr.mxu0 0.0
          %3118 = vmatpush1.msra.mxu0 0.0
          %3119 = vmatprep.subr.mxu0 0.0
          %3120 = vmatpush1.msra.mxu0 0.0
          %3121 = vmatprep.subr.mxu0 0.0
          %3122 = vmatpush1.msra.mxu0 0.0
          %3123 = vmatprep.subr.mxu0 0.0
          %3124 = vmatpush1.msra.mxu0 0.0
          %3125 = vmatprep.subr.mxu0 0.0
          %3126 = vmatpush1.msra.mxu0 %v2038
          %3127 = vmatprep.subr.mxu0 0.0
          %3128 = vmatpush2.msra.mxu0 0.0
          %3129 = vmatprep.subr.mxu0 0.0
          %3130 = vmatpush2.msra.mxu0 0.0
          %3131 = vmatprep.subr.mxu0 0.0
          %3132 = vmatpush2.msra.mxu0 0.0
          %3133 = vmatprep.subr.mxu0 0.0
          %3134 = vmatpush2.msra.mxu0 0.0
          %3135 = vmatprep.subr.mxu0 0.0
          %3136 = vmatpush2.msra.mxu0 0.0
          %3137 = vmatprep.subr.mxu0 0.0
          %3138 = vmatpush2.msra.mxu0 0.0
          %3139 = vmatprep.subr.mxu0 0.0
          %3140 = vmatpush2.msra.mxu0 0.0
          %3141 = vmatprep.subr.mxu0 0.0
          %3142 = vmatpush2.msra.mxu0 0.0
          %3143 = vmatprep.subr.mxu0 0.0
          %3144 = vmatpush2.msra.mxu0 0.0
          %3145 = vmatprep.subr.mxu0 0.0
          %3146 = vmatpush2.msra.mxu0 0.0
          %3147 = vmatprep.subr.mxu0 0.0
          %3148 = vmatpush2.msra.mxu0 0.0
          %3149 = vmatprep.subr.mxu0 0.0
          %3150 = vmatpush2.msra.mxu0 0.0
          %3151 = vmatprep.subr.mxu0 0.0
          %3152 = vmatpush2.msra.mxu0 0.0
          %3153 = vmatprep.subr.mxu0 0.0
          %3154 = vmatpush2.msra.mxu0 0.0
          %3155 = vmatprep.subr.mxu0 0.0
          %3156 = vmatpush2.msra.mxu0 0.0
          %3157 = vmatprep.subr.mxu0 0.0
          %3158 = vmatpush2.msra.mxu0 0.0
          %3159 = vmatprep.mubr.f32.mxu0 0.0
          %3160 = vmatmul.mubr.f32.gmra.mxu0 %v3093
          %v3161 = vpop.f32.mrf.mxu0
          %v3162 = vadd.f32 0.0, %v3161
          %v3163 = vpop.f32.mrf.mxu0
          %3164 = vdwg.mxu0
          %v3166 = vsel %vm2638, %v2724, 0
          %3168 = vmatprep.subr.mxu0 0.0
          %3169 = vmatpush1.msra.mxu0 0.0
          %3170 = vmatprep.subr.mxu0 0.0
          %3171 = vmatpush1.msra.mxu0 0.0
          %3172 = vmatprep.subr.mxu0 0.0
          %3173 = vmatpush1.msra.mxu0 0.0
          %3174 = vmatprep.subr.mxu0 0.0
          %3175 = vmatpush1.msra.mxu0 0.0
          %3176 = vmatprep.subr.mxu0 0.0
          %3177 = vmatpush1.msra.mxu0 0.0
          %3178 = vmatprep.subr.mxu0 0.0
          %3179 = vmatpush1.msra.mxu0 0.0
          %3180 = vmatprep.subr.mxu0 0.0
          %3181 = vmatpush1.msra.mxu0 0.0
          %3182 = vmatprep.subr.mxu0 0.0
          %3183 = vmatpush1.msra.mxu0 0.0
          %3184 = vmatprep.subr.mxu0 0.0
          %3185 = vmatpush1.msra.mxu0 0.0
          %3186 = vmatprep.subr.mxu0 0.0
          %3187 = vmatpush1.msra.mxu0 0.0
          %3188 = vmatprep.subr.mxu0 0.0
          %3189 = vmatpush1.msra.mxu0 0.0
          %3190 = vmatprep.subr.mxu0 0.0
          %3191 = vmatpush1.msra.mxu0 0.0
          %3192 = vmatprep.subr.mxu0 0.0
          %3193 = vmatpush1.msra.mxu0 0.0
          %3194 = vmatprep.subr.mxu0 0.0
          %3195 = vmatpush1.msra.mxu0 0.0
          %3196 = vmatprep.subr.mxu0 0.0
          %3197 = vmatpush1.msra.mxu0 0.0
          %3198 = vmatprep.subr.mxu0 0.0
          %3199 = vmatpush1.msra.mxu0 %v2041
          %3200 = vmatprep.subr.mxu0 0.0
          %3201 = vmatpush2.msra.mxu0 0.0
          %3202 = vmatprep.subr.mxu0 0.0
          %3203 = vmatpush2.msra.mxu0 0.0
          %3204 = vmatprep.subr.mxu0 0.0
          %3205 = vmatpush2.msra.mxu0 0.0
          %3206 = vmatprep.subr.mxu0 0.0
          %3207 = vmatpush2.msra.mxu0 0.0
          %3208 = vmatprep.subr.mxu0 0.0
          %3209 = vmatpush2.msra.mxu0 0.0
          %3210 = vmatprep.subr.mxu0 0.0
          %3211 = vmatpush2.msra.mxu0 0.0
          %3212 = vmatprep.subr.mxu0 0.0
          %3213 = vmatpush2.msra.mxu0 0.0
          %3214 = vmatprep.subr.mxu0 0.0
          %3215 = vmatpush2.msra.mxu0 0.0
          %3216 = vmatprep.subr.mxu0 0.0
          %3217 = vmatpush2.msra.mxu0 0.0
          %3218 = vmatprep.subr.mxu0 0.0
          %3219 = vmatpush2.msra.mxu0 0.0
          %3220 = vmatprep.subr.mxu0 0.0
          %3221 = vmatpush2.msra.mxu0 0.0
          %3222 = vmatprep.subr.mxu0 0.0
          %3223 = vmatpush2.msra.mxu0 0.0
          %3224 = vmatprep.subr.mxu0 0.0
          %3225 = vmatpush2.msra.mxu0 0.0
          %3226 = vmatprep.subr.mxu0 0.0
          %3227 = vmatpush2.msra.mxu0 0.0
          %3228 = vmatprep.subr.mxu0 0.0
          %3229 = vmatpush2.msra.mxu0 0.0
          %3230 = vmatprep.subr.mxu0 0.0
          %3231 = vmatpush2.msra.mxu0 0.0
          %3232 = vmatprep.mubr.f32.mxu0 0.0
          %3233 = vmatmul.mubr.f32.gmra.mxu0 %v3166
          %v3234 = vpop.f32.mrf.mxu0
          %v3235 = vadd.f32 0.0, %v3234
          %v3236 = vpop.f32.mrf.mxu0
          %3237 = vdwg.mxu0
          %v3239 = vsel %vm2638, %v2726, 0
          %3241 = vmatprep.subr.mxu0 0.0
          %3242 = vmatpush1.msra.mxu0 0.0
          %3243 = vmatprep.subr.mxu0 0.0
          %3244 = vmatpush1.msra.mxu0 0.0
          %3245 = vmatprep.subr.mxu0 0.0
          %3246 = vmatpush1.msra.mxu0 0.0
          %3247 = vmatprep.subr.mxu0 0.0
          %3248 = vmatpush1.msra.mxu0 0.0
          %3249 = vmatprep.subr.mxu0 0.0
          %3250 = vmatpush1.msra.mxu0 0.0
          %3251 = vmatprep.subr.mxu0 0.0
          %3252 = vmatpush1.msra.mxu0 0.0
          %3253 = vmatprep.subr.mxu0 0.0
          %3254 = vmatpush1.msra.mxu0 0.0
          %3255 = vmatprep.subr.mxu0 0.0
          %3256 = vmatpush1.msra.mxu0 0.0
          %3257 = vmatprep.subr.mxu0 0.0
          %3258 = vmatpush1.msra.mxu0 0.0
          %3259 = vmatprep.subr.mxu0 0.0
          %3260 = vmatpush1.msra.mxu0 0.0
          %3261 = vmatprep.subr.mxu0 0.0
          %3262 = vmatpush1.msra.mxu0 0.0
          %3263 = vmatprep.subr.mxu0 0.0
          %3264 = vmatpush1.msra.mxu0 0.0
          %3265 = vmatprep.subr.mxu0 0.0
          %3266 = vmatpush1.msra.mxu0 0.0
          %3267 = vmatprep.subr.mxu0 0.0
          %3268 = vmatpush1.msra.mxu0 0.0
          %3269 = vmatprep.subr.mxu0 0.0
          %3270 = vmatpush1.msra.mxu0 0.0
          %3271 = vmatprep.subr.mxu0 0.0
          %3272 = vmatpush1.msra.mxu0 %v2044
          %3273 = vmatprep.subr.mxu0 0.0
          %3274 = vmatpush2.msra.mxu0 0.0
          %3275 = vmatprep.subr.mxu0 0.0
          %3276 = vmatpush2.msra.mxu0 0.0
          %3277 = vmatprep.subr.mxu0 0.0
          %3278 = vmatpush2.msra.mxu0 0.0
          %3279 = vmatprep.subr.mxu0 0.0
          %3280 = vmatpush2.msra.mxu0 0.0
          %3281 = vmatprep.subr.mxu0 0.0
          %3282 = vmatpush2.msra.mxu0 0.0
          %3283 = vmatprep.subr.mxu0 0.0
          %3284 = vmatpush2.msra.mxu0 0.0
          %3285 = vmatprep.subr.mxu0 0.0
          %3286 = vmatpush2.msra.mxu0 0.0
          %3287 = vmatprep.subr.mxu0 0.0
          %3288 = vmatpush2.msra.mxu0 0.0
          %3289 = vmatprep.subr.mxu0 0.0
          %3290 = vmatpush2.msra.mxu0 0.0
          %3291 = vmatprep.subr.mxu0 0.0
          %3292 = vmatpush2.msra.mxu0 0.0
          %3293 = vmatprep.subr.mxu0 0.0
          %3294 = vmatpush2.msra.mxu0 0.0
          %3295 = vmatprep.subr.mxu0 0.0
          %3296 = vmatpush2.msra.mxu0 0.0
          %3297 = vmatprep.subr.mxu0 0.0
          %3298 = vmatpush2.msra.mxu0 0.0
          %3299 = vmatprep.subr.mxu0 0.0
          %3300 = vmatpush2.msra.mxu0 0.0
          %3301 = vmatprep.subr.mxu0 0.0
          %3302 = vmatpush2.msra.mxu0 0.0
          %3303 = vmatprep.subr.mxu0 0.0
          %3304 = vmatpush2.msra.mxu0 0.0
          %3305 = vmatprep.mubr.f32.mxu0 0.0
          %3306 = vmatmul.mubr.f32.gmra.mxu0 %v3239
          %v3307 = vpop.f32.mrf.mxu0
          %v3308 = vadd.f32 0.0, %v3307
          %v3309 = vpop.f32.mrf.mxu0
          %3310 = vdwg.mxu0
          %3312 = vrot.lane.b32.xlu0 %v2870, 16
          %v3313 = vpop.permute.xlu0 %3312
          %3316 = vrot.lane.b32.xlu0 %v2943, 32
          %v3317 = vpop.permute.xlu0 %3316
          %3320 = vrot.lane.b32.xlu0 %v3016, 48
          %v3321 = vpop.permute.xlu0 %3320
          %3324 = vrot.lane.b32.xlu0 %v3089, 64
          %v3325 = vpop.permute.xlu0 %3324
          %3328 = vrot.lane.b32.xlu0 %v3162, 80
          %v3329 = vpop.permute.xlu0 %3328
          %3332 = vrot.lane.b32.xlu0 %v3235, 96
          %v3333 = vpop.permute.xlu0 %3332
          %3336 = vrot.lane.b32.xlu0 %v3308, 112
          %v3337 = vpop.permute.xlu0 %3336
          %v3339 = vsel %vm1404, %v2797, %v3313
          %vm3340 = vcmask 261120
          %v3341 = vsel %vm3340, %v3339, %v3317
          %vm3342 = vcmask 392192
          %v3343 = vsel %vm3342, %v3341, %v3321
          %vm3344 = vcmask 523264
          %v3345 = vsel %vm3344, %v3343, %v3325
          %vm3346 = vcmask 654336
          %v3347 = vsel %vm3346, %v3345, %v3329
          %vm3348 = vcmask 785408
          %v3349 = vsel %vm3348, %v3347, %v3333
          %vm3350 = vcmask 916480
          %v3351 = vsel %vm3350, %v3349, %v3337
          %s3352 = smul.u32 %s1776, 128
          %s3353 = scalar_lea.vmem [#allocation25], %s3352
          %v3354 = vld [vmem:[%s3353] sm:$0xff]
          %v3355 = vld [vmem:[%s3353 + $0x8] sm:$0xff]
          %v3356 = vld [vmem:[%s3353 + $0x10] sm:$0xff]
          %v3357 = vld [vmem:[%s3353 + $0x18] sm:$0xff]
          %v3358 = vld [vmem:[%s3353 + $0x20] sm:$0xff]
          %v3359 = vld [vmem:[%s3353 + $0x28] sm:$0xff]
          %v3360 = vld [vmem:[%s3353 + $0x30] sm:$0xff]
          %v3361 = vld [vmem:[%s3353 + $0x38] sm:$0xff]
          %v3362 = vld [vmem:[%s3353 + $0x40] sm:$0xff]
          %v3363 = vld [vmem:[%s3353 + $0x48] sm:$0xff]
          %v3364 = vld [vmem:[%s3353 + $0x50] sm:$0xff]
          %v3365 = vld [vmem:[%s3353 + $0x58] sm:$0xff]
          %v3366 = vld [vmem:[%s3353 + $0x60] sm:$0xff]
          %v3367 = vld [vmem:[%s3353 + $0x68] sm:$0xff]
          %v3368 = vld [vmem:[%s3353 + $0x70] sm:$0xff]
          %v3369 = vld [vmem:[%s3353 + $0x78] sm:$0xff]
          %s3370 = scalar_lea.vmem %s35, %s1776
          %v3371 = vld [vmem:[%s3370] sm:$0x1]
          %v3373 = vlaneseq
          %v3374 = vshrl.u32 %v3373, 7
          %v3375 = vsub.s32 0, %v3374
          %v3376 = vrot.slane %v3371, %v3375
          %3378 = vmatprep.subr.mxu0 0.0
          %3379 = vmatpush1.msra.mxu0 %v3369
          %3380 = vmatprep.subr.mxu0 0.0
          %3381 = vmatpush1.msra.mxu0 %v3368
          %3382 = vmatprep.subr.mxu0 0.0
          %3383 = vmatpush1.msra.mxu0 %v3367
          %3384 = vmatprep.subr.mxu0 0.0
          %3385 = vmatpush1.msra.mxu0 %v3366
          %3386 = vmatprep.subr.mxu0 0.0
          %3387 = vmatpush1.msra.mxu0 %v3365
          %3388 = vmatprep.subr.mxu0 0.0
          %3389 = vmatpush1.msra.mxu0 %v3364
          %3390 = vmatprep.subr.mxu0 0.0
          %3391 = vmatpush1.msra.mxu0 %v3363
          %3392 = vmatprep.subr.mxu0 0.0
          %3393 = vmatpush1.msra.mxu0 %v3362
          %3394 = vmatprep.subr.mxu0 0.0
          %3395 = vmatpush1.msra.mxu0 %v3361
          %3396 = vmatprep.subr.mxu0 0.0
          %3397 = vmatpush1.msra.mxu0 %v3360
          %3398 = vmatprep.subr.mxu0 0.0
          %3399 = vmatpush1.msra.mxu0 %v3359
          %3400 = vmatprep.subr.mxu0 0.0
          %3401 = vmatpush1.msra.mxu0 %v3358
          %3402 = vmatprep.subr.mxu0 0.0
          %3403 = vmatpush1.msra.mxu0 %v3357
          %3404 = vmatprep.subr.mxu0 0.0
          %3405 = vmatpush1.msra.mxu0 %v3356
          %3406 = vmatprep.subr.mxu0 0.0
          %3407 = vmatpush1.msra.mxu0 %v3355
          %3408 = vmatprep.subr.mxu0 0.0
          %3409 = vmatpush1.msra.mxu0 %v3354
          %3410 = vmatprep.subr.mxu0 0.0
          %3411 = vmatpush2.msra.mxu0 0.0
          %3412 = vmatprep.subr.mxu0 0.0
          %3413 = vmatpush2.msra.mxu0 0.0
          %3414 = vmatprep.subr.mxu0 0.0
          %3415 = vmatpush2.msra.mxu0 0.0
          %3416 = vmatprep.subr.mxu0 0.0
          %3417 = vmatpush2.msra.mxu0 0.0
          %3418 = vmatprep.subr.mxu0 0.0
          %3419 = vmatpush2.msra.mxu0 0.0
          %3420 = vmatprep.subr.mxu0 0.0
          %3421 = vmatpush2.msra.mxu0 0.0
          %3422 = vmatprep.subr.mxu0 0.0
          %3423 = vmatpush2.msra.mxu0 0.0
          %3424 = vmatprep.subr.mxu0 0.0
          %3425 = vmatpush2.msra.mxu0 0.0
          %3426 = vmatprep.subr.mxu0 0.0
          %3427 = vmatpush2.msra.mxu0 0.0
          %3428 = vmatprep.subr.mxu0 0.0
          %3429 = vmatpush2.msra.mxu0 0.0
          %3430 = vmatprep.subr.mxu0 0.0
          %3431 = vmatpush2.msra.mxu0 0.0
          %3432 = vmatprep.subr.mxu0 0.0
          %3433 = vmatpush2.msra.mxu0 0.0
          %3434 = vmatprep.subr.mxu0 0.0
          %3435 = vmatpush2.msra.mxu0 0.0
          %3436 = vmatprep.subr.mxu0 0.0
          %3437 = vmatpush2.msra.mxu0 0.0
          %3438 = vmatprep.subr.mxu0 0.0
          %3439 = vmatpush2.msra.mxu0 0.0
          %3440 = vmatprep.subr.mxu0 0.0
          %3441 = vmatpush2.msra.mxu0 0.0
          %3442 = vmatprep.mubr.f32.mxu0 0.0
          %3443 = vmatmul.mubr.f32.gmra.mxu0 %v3351
          %v3444 = vpop.f32.mrf.mxu0
          %v3445 = vadd.f32 %v3376, %v3444
          %v3446 = vpop.f32.mrf.mxu0
          %3447 = vdwg.mxu0
          %v3448 = vadd.f32 %v1781, %v3445
          %s3449 = scalar_lea.vmem %s37, %s1776
          %v3450 = vld [vmem:[%s3449] sm:$0x1]
          %s3451 = scalar_lea.vmem [#allocation26], %s1776
          %v3452 = vld [vmem:[%s3451] sm:$0x1]
          %3453 = vadd.xlane.f32.xlu0 %v3448
          %v3454 = vpop.xlane.xlu0 %3453
          %v3455 = vmul.f32 %v3454, %v1482
          %v3456 = vsub.f32 %v3448, %v3455
          %v3457 = vmul.f32 %v3456, %v3456
          %3458 = vadd.xlane.f32.xlu0 %v3457
          %v3459 = vpop.xlane.xlu0 %3458
          %v3460 = vmul.f32 %v3459, %v1482
          %v3461 = vadd.f32 %v3460, 1e-05
          %v3462 = vrsqrt.pop %v3461
          %v3463 = vmul.f32 %v3456, %v3462
          %v3465 = vlaneseq
          %v3466 = vshrl.u32 %v3465, 7
          %v3467 = vsub.s32 0, %v3466
          %v3468 = vrot.slane %v3450, %v3467
          %v3470 = vmul.f32 %v3463, %v3468
          %v3472 = vlaneseq
          %v3473 = vshrl.u32 %v3472, 7
          %v3474 = vsub.s32 0, %v3473
          %v3475 = vrot.slane %v3452, %v3474
          %v3477 = vadd.f32 %v3470, %v3475
          %s3478 = smul.u32 %s1776, 64
          %s3479 = smul.addr %s3478, 8
          %s3480 = scalar_lea.vmem [#allocation28], %s3479
          %v3481 = vld [vmem:[%s3480] sm:$0xff]
          %v3482 = vld [vmem:[%s3480 + $0x8] sm:$0xff]
          %v3483 = vld [vmem:[%s3480 + $0x10] sm:$0xff]
          %v3484 = vld [vmem:[%s3480 + $0x18] sm:$0xff]
          %v3485 = vld [vmem:[%s3480 + $0x20] sm:$0xff]
          %v3486 = vld [vmem:[%s3480 + $0x28] sm:$0xff]
          %v3487 = vld [vmem:[%s3480 + $0x30] sm:$0xff]
          %v3488 = vld [vmem:[%s3480 + $0x38] sm:$0xff]
          %v3489 = vld [vmem:[%s3480 + $0x40] sm:$0xff]
          %v3490 = vld [vmem:[%s3480 + $0x48] sm:$0xff]
          %v3491 = vld [vmem:[%s3480 + $0x50] sm:$0xff]
          %v3492 = vld [vmem:[%s3480 + $0x58] sm:$0xff]
          %v3493 = vld [vmem:[%s3480 + $0x60] sm:$0xff]
          %v3494 = vld [vmem:[%s3480 + $0x68] sm:$0xff]
          %v3495 = vld [vmem:[%s3480 + $0x70] sm:$0xff]
          %v3496 = vld [vmem:[%s3480 + $0x78] sm:$0xff]
          %v3497 = vld [vmem:[%s3480 + $0x80] sm:$0xff]
          %v3498 = vld [vmem:[%s3480 + $0x88] sm:$0xff]
          %v3499 = vld [vmem:[%s3480 + $0x90] sm:$0xff]
          %v3500 = vld [vmem:[%s3480 + $0x98] sm:$0xff]
          %v3501 = vld [vmem:[%s3480 + $0xa0] sm:$0xff]
          %v3502 = vld [vmem:[%s3480 + $0xa8] sm:$0xff]
          %v3503 = vld [vmem:[%s3480 + $0xb0] sm:$0xff]
          %v3504 = vld [vmem:[%s3480 + $0xb8] sm:$0xff]
          %v3505 = vld [vmem:[%s3480 + $0xc0] sm:$0xff]
          %v3506 = vld [vmem:[%s3480 + $0xc8] sm:$0xff]
          %v3507 = vld [vmem:[%s3480 + $0xd0] sm:$0xff]
          %v3508 = vld [vmem:[%s3480 + $0xd8] sm:$0xff]
          %v3509 = vld [vmem:[%s3480 + $0xe0] sm:$0xff]
          %v3510 = vld [vmem:[%s3480 + $0xe8] sm:$0xff]
          %v3511 = vld [vmem:[%s3480 + $0xf0] sm:$0xff]
          %v3512 = vld [vmem:[%s3480 + $0xf8] sm:$0xff]
          %v3513 = vld [vmem:[%s3480 + $0x100] sm:$0xff]
          %v3514 = vld [vmem:[%s3480 + $0x108] sm:$0xff]
          %v3515 = vld [vmem:[%s3480 + $0x110] sm:$0xff]
          %v3516 = vld [vmem:[%s3480 + $0x118] sm:$0xff]
          %v3517 = vld [vmem:[%s3480 + $0x120] sm:$0xff]
          %v3518 = vld [vmem:[%s3480 + $0x128] sm:$0xff]
          %v3519 = vld [vmem:[%s3480 + $0x130] sm:$0xff]
          %v3520 = vld [vmem:[%s3480 + $0x138] sm:$0xff]
          %v3521 = vld [vmem:[%s3480 + $0x140] sm:$0xff]
          %v3522 = vld [vmem:[%s3480 + $0x148] sm:$0xff]
          %v3523 = vld [vmem:[%s3480 + $0x150] sm:$0xff]
          %v3524 = vld [vmem:[%s3480 + $0x158] sm:$0xff]
          %v3525 = vld [vmem:[%s3480 + $0x160] sm:$0xff]
          %v3526 = vld [vmem:[%s3480 + $0x168] sm:$0xff]
          %v3527 = vld [vmem:[%s3480 + $0x170] sm:$0xff]
          %v3528 = vld [vmem:[%s3480 + $0x178] sm:$0xff]
          %v3529 = vld [vmem:[%s3480 + $0x180] sm:$0xff]
          %v3530 = vld [vmem:[%s3480 + $0x188] sm:$0xff]
          %v3531 = vld [vmem:[%s3480 + $0x190] sm:$0xff]
          %v3532 = vld [vmem:[%s3480 + $0x198] sm:$0xff]
          %v3533 = vld [vmem:[%s3480 + $0x1a0] sm:$0xff]
          %v3534 = vld [vmem:[%s3480 + $0x1a8] sm:$0xff]
          %v3535 = vld [vmem:[%s3480 + $0x1b0] sm:$0xff]
          %v3536 = vld [vmem:[%s3480 + $0x1b8] sm:$0xff]
          %v3537 = vld [vmem:[%s3480 + $0x1c0] sm:$0xff]
          %v3538 = vld [vmem:[%s3480 + $0x1c8] sm:$0xff]
          %v3539 = vld [vmem:[%s3480 + $0x1d0] sm:$0xff]
          %v3540 = vld [vmem:[%s3480 + $0x1d8] sm:$0xff]
          %v3541 = vld [vmem:[%s3480 + $0x1e0] sm:$0xff]
          %v3542 = vld [vmem:[%s3480 + $0x1e8] sm:$0xff]
          %v3543 = vld [vmem:[%s3480 + $0x1f0] sm:$0xff]
          %v3544 = vld [vmem:[%s3480 + $0x1f8] sm:$0xff]
          %s3545 = smul.u32 %s1776, 4
          %s3546 = scalar_lea.vmem %s43, %s3545
          %v3547 = vld [vmem:[%s3546] sm:$0xf]
          %v3549 = vlaneseq
          %v3550 = vshrl.u32 %v3549, 7
          %v3551 = vsub.s32 0, %v3550
          %v3552 = vrot.slane %v3547, %v3551
          %v3553 = vlaneseq
          %v3554 = vshrl.u32 %v3553, 7
          %v3555 = vsub.s32 1, %v3554
          %v3556 = vrot.slane %v3547, %v3555
          %v3557 = vlaneseq
          %v3558 = vshrl.u32 %v3557, 7
          %v3559 = vsub.s32 2, %v3558
          %v3560 = vrot.slane %v3547, %v3559
          %v3561 = vlaneseq
          %v3562 = vshrl.u32 %v3561, 7
          %v3563 = vsub.s32 3, %v3562
          %v3564 = vrot.slane %v3547, %v3563
          %3569 = vmatprep.subr.mxu0 %v3542
          %3570 = vmatpush1.msra.mxu0 %v3541
          %3571 = vmatprep.subr.mxu0 %v3538
          %3572 = vmatpush1.msra.mxu0 %v3537
          %3573 = vmatprep.subr.mxu0 %v3534
          %3574 = vmatpush1.msra.mxu0 %v3533
          %3575 = vmatprep.subr.mxu0 %v3530
          %3576 = vmatpush1.msra.mxu0 %v3529
          %3577 = vmatprep.subr.mxu0 %v3526
          %3578 = vmatpush1.msra.mxu0 %v3525
          %3579 = vmatprep.subr.mxu0 %v3522
          %3580 = vmatpush1.msra.mxu0 %v3521
          %3581 = vmatprep.subr.mxu0 %v3518
          %3582 = vmatpush1.msra.mxu0 %v3517
          %3583 = vmatprep.subr.mxu0 %v3514
          %3584 = vmatpush1.msra.mxu0 %v3513
          %3585 = vmatprep.subr.mxu0 %v3510
          %3586 = vmatpush1.msra.mxu0 %v3509
          %3587 = vmatprep.subr.mxu0 %v3506
          %3588 = vmatpush1.msra.mxu0 %v3505
          %3589 = vmatprep.subr.mxu0 %v3502
          %3590 = vmatpush1.msra.mxu0 %v3501
          %3591 = vmatprep.subr.mxu0 %v3498
          %3592 = vmatpush1.msra.mxu0 %v3497
          %3593 = vmatprep.subr.mxu0 %v3494
          %3594 = vmatpush1.msra.mxu0 %v3493
          %3595 = vmatprep.subr.mxu0 %v3490
          %3596 = vmatpush1.msra.mxu0 %v3489
          %3597 = vmatprep.subr.mxu0 %v3486
          %3598 = vmatpush1.msra.mxu0 %v3485
          %3599 = vmatprep.subr.mxu0 %v3482
          %3600 = vmatpush1.msra.mxu0 %v3481
          %3601 = vmatprep.subr.mxu0 0.0
          %3602 = vmatpush2.msra.mxu0 0.0
          %3603 = vmatprep.subr.mxu0 0.0
          %3604 = vmatpush2.msra.mxu0 0.0
          %3605 = vmatprep.subr.mxu0 0.0
          %3606 = vmatpush2.msra.mxu0 0.0
          %3607 = vmatprep.subr.mxu0 0.0
          %3608 = vmatpush2.msra.mxu0 0.0
          %3609 = vmatprep.subr.mxu0 0.0
          %3610 = vmatpush2.msra.mxu0 0.0
          %3611 = vmatprep.subr.mxu0 0.0
          %3612 = vmatpush2.msra.mxu0 0.0
          %3613 = vmatprep.subr.mxu0 0.0
          %3614 = vmatpush2.msra.mxu0 0.0
          %3615 = vmatprep.subr.mxu0 0.0
          %3616 = vmatpush2.msra.mxu0 0.0
          %3617 = vmatprep.subr.mxu0 0.0
          %3618 = vmatpush2.msra.mxu0 0.0
          %3619 = vmatprep.subr.mxu0 0.0
          %3620 = vmatpush2.msra.mxu0 0.0
          %3621 = vmatprep.subr.mxu0 0.0
          %3622 = vmatpush2.msra.mxu0 0.0
          %3623 = vmatprep.subr.mxu0 0.0
          %3624 = vmatpush2.msra.mxu0 0.0
          %3625 = vmatprep.subr.mxu0 0.0
          %3626 = vmatpush2.msra.mxu0 0.0
          %3627 = vmatprep.subr.mxu0 0.0
          %3628 = vmatpush2.msra.mxu0 0.0
          %3629 = vmatprep.subr.mxu0 0.0
          %3630 = vmatpush2.msra.mxu0 0.0
          %3631 = vmatprep.subr.mxu0 0.0
          %3632 = vmatpush2.msra.mxu0 0.0
          %3633 = vmatprep.mubr.f32.mxu0 0.0
          %3634 = vmatmul.mubr.f32.gmra.mxu0 %v3477
          %v3635 = vpop.f32.mrf.mxu0
          %v3636 = vadd.f32 %v3552, %v3635
          %v3637 = vpop.f32.mrf.mxu0
          %v3638 = vadd.f32 %v3556, %v3637
          %3639 = vdwg.mxu0
          %3640 = vmatprep.subr.mxu0 %v3544
          %3641 = vmatpush1.msra.mxu0 %v3543
          %3642 = vmatprep.subr.mxu0 %v3540
          %3643 = vmatpush1.msra.mxu0 %v3539
          %3644 = vmatprep.subr.mxu0 %v3536
          %3645 = vmatpush1.msra.mxu0 %v3535
          %3646 = vmatprep.subr.mxu0 %v3532
          %3647 = vmatpush1.msra.mxu0 %v3531
          %3648 = vmatprep.subr.mxu0 %v3528
          %3649 = vmatpush1.msra.mxu0 %v3527
          %3650 = vmatprep.subr.mxu0 %v3524
          %3651 = vmatpush1.msra.mxu0 %v3523
          %3652 = vmatprep.subr.mxu0 %v3520
          %3653 = vmatpush1.msra.mxu0 %v3519
          %3654 = vmatprep.subr.mxu0 %v3516
          %3655 = vmatpush1.msra.mxu0 %v3515
          %3656 = vmatprep.subr.mxu0 %v3512
          %3657 = vmatpush1.msra.mxu0 %v3511
          %3658 = vmatprep.subr.mxu0 %v3508
          %3659 = vmatpush1.msra.mxu0 %v3507
          %3660 = vmatprep.subr.mxu0 %v3504
          %3661 = vmatpush1.msra.mxu0 %v3503
          %3662 = vmatprep.subr.mxu0 %v3500
          %3663 = vmatpush1.msra.mxu0 %v3499
          %3664 = vmatprep.subr.mxu0 %v3496
          %3665 = vmatpush1.msra.mxu0 %v3495
          %3666 = vmatprep.subr.mxu0 %v3492
          %3667 = vmatpush1.msra.mxu0 %v3491
          %3668 = vmatprep.subr.mxu0 %v3488
          %3669 = vmatpush1.msra.mxu0 %v3487
          %3670 = vmatprep.subr.mxu0 %v3484
          %3671 = vmatpush1.msra.mxu0 %v3483
          %3672 = vmatprep.subr.mxu0 0.0
          %3673 = vmatpush2.msra.mxu0 0.0
          %3674 = vmatprep.subr.mxu0 0.0
          %3675 = vmatpush2.msra.mxu0 0.0
          %3676 = vmatprep.subr.mxu0 0.0
          %3677 = vmatpush2.msra.mxu0 0.0
          %3678 = vmatprep.subr.mxu0 0.0
          %3679 = vmatpush2.msra.mxu0 0.0
          %3680 = vmatprep.subr.mxu0 0.0
          %3681 = vmatpush2.msra.mxu0 0.0
          %3682 = vmatprep.subr.mxu0 0.0
          %3683 = vmatpush2.msra.mxu0 0.0
          %3684 = vmatprep.subr.mxu0 0.0
          %3685 = vmatpush2.msra.mxu0 0.0
          %3686 = vmatprep.subr.mxu0 0.0
          %3687 = vmatpush2.msra.mxu0 0.0
          %3688 = vmatprep.subr.mxu0 0.0
          %3689 = vmatpush2.msra.mxu0 0.0
          %3690 = vmatprep.subr.mxu0 0.0
          %3691 = vmatpush2.msra.mxu0 0.0
          %3692 = vmatprep.subr.mxu0 0.0
          %3693 = vmatpush2.msra.mxu0 0.0
          %3694 = vmatprep.subr.mxu0 0.0
          %3695 = vmatpush2.msra.mxu0 0.0
          %3696 = vmatprep.subr.mxu0 0.0
          %3697 = vmatpush2.msra.mxu0 0.0
          %3698 = vmatprep.subr.mxu0 0.0
          %3699 = vmatpush2.msra.mxu0 0.0
          %3700 = vmatprep.subr.mxu0 0.0
          %3701 = vmatpush2.msra.mxu0 0.0
          %3702 = vmatprep.subr.mxu0 0.0
          %3703 = vmatpush2.msra.mxu0 0.0
          %3704 = vmatprep.mubr.f32.mxu0 0.0
          %3705 = vmatmul.mubr.f32.gmra.mxu0 %v3477
          %v3706 = vpop.f32.mrf.mxu0
          %v3707 = vadd.f32 %v3560, %v3706
          %v3708 = vpop.f32.mrf.mxu0
          %v3709 = vadd.f32 %v3564, %v3708
          %3710 = vdwg.mxu0
          %v3711 = vmax.f32 %v3636, 0.0
          %v3712 = vmax.f32 %v3638, 0.0
          %v3713 = vmax.f32 %v3707, 0.0
          %v3714 = vmax.f32 %v3709, 0.0
          %s3715 = smul.u32 %s1776, 512
          %s3716 = scalar_lea.vmem [#allocation29], %s3715
          %v3717 = vld [vmem:[%s3716] sm:$0xff]
          %v3718 = vld [vmem:[%s3716 + $0x8] sm:$0xff]
          %v3719 = vld [vmem:[%s3716 + $0x10] sm:$0xff]
          %v3720 = vld [vmem:[%s3716 + $0x18] sm:$0xff]
          %v3721 = vld [vmem:[%s3716 + $0x20] sm:$0xff]
          %v3722 = vld [vmem:[%s3716 + $0x28] sm:$0xff]
          %v3723 = vld [vmem:[%s3716 + $0x30] sm:$0xff]
          %v3724 = vld [vmem:[%s3716 + $0x38] sm:$0xff]
          %v3725 = vld [vmem:[%s3716 + $0x40] sm:$0xff]
          %v3726 = vld [vmem:[%s3716 + $0x48] sm:$0xff]
          %v3727 = vld [vmem:[%s3716 + $0x50] sm:$0xff]
          %v3728 = vld [vmem:[%s3716 + $0x58] sm:$0xff]
          %v3729 = vld [vmem:[%s3716 + $0x60] sm:$0xff]
          %v3730 = vld [vmem:[%s3716 + $0x68] sm:$0xff]
          %v3731 = vld [vmem:[%s3716 + $0x70] sm:$0xff]
          %v3732 = vld [vmem:[%s3716 + $0x78] sm:$0xff]
          %v3733 = vld [vmem:[%s3716 + $0x80] sm:$0xff]
          %v3734 = vld [vmem:[%s3716 + $0x88] sm:$0xff]
          %v3735 = vld [vmem:[%s3716 + $0x90] sm:$0xff]
          %v3736 = vld [vmem:[%s3716 + $0x98] sm:$0xff]
          %v3737 = vld [vmem:[%s3716 + $0xa0] sm:$0xff]
          %v3738 = vld [vmem:[%s3716 + $0xa8] sm:$0xff]
          %v3739 = vld [vmem:[%s3716 + $0xb0] sm:$0xff]
          %v3740 = vld [vmem:[%s3716 + $0xb8] sm:$0xff]
          %v3741 = vld [vmem:[%s3716 + $0xc0] sm:$0xff]
          %v3742 = vld [vmem:[%s3716 + $0xc8] sm:$0xff]
          %v3743 = vld [vmem:[%s3716 + $0xd0] sm:$0xff]
          %v3744 = vld [vmem:[%s3716 + $0xd8] sm:$0xff]
          %v3745 = vld [vmem:[%s3716 + $0xe0] sm:$0xff]
          %v3746 = vld [vmem:[%s3716 + $0xe8] sm:$0xff]
          %v3747 = vld [vmem:[%s3716 + $0xf0] sm:$0xff]
          %v3748 = vld [vmem:[%s3716 + $0xf8] sm:$0xff]
          %v3749 = vld [vmem:[%s3716 + $0x100] sm:$0xff]
          %v3750 = vld [vmem:[%s3716 + $0x108] sm:$0xff]
          %v3751 = vld [vmem:[%s3716 + $0x110] sm:$0xff]
          %v3752 = vld [vmem:[%s3716 + $0x118] sm:$0xff]
          %v3753 = vld [vmem:[%s3716 + $0x120] sm:$0xff]
          %v3754 = vld [vmem:[%s3716 + $0x128] sm:$0xff]
          %v3755 = vld [vmem:[%s3716 + $0x130] sm:$0xff]
          %v3756 = vld [vmem:[%s3716 + $0x138] sm:$0xff]
          %v3757 = vld [vmem:[%s3716 + $0x140] sm:$0xff]
          %v3758 = vld [vmem:[%s3716 + $0x148] sm:$0xff]
          %v3759 = vld [vmem:[%s3716 + $0x150] sm:$0xff]
          %v3760 = vld [vmem:[%s3716 + $0x158] sm:$0xff]
          %v3761 = vld [vmem:[%s3716 + $0x160] sm:$0xff]
          %v3762 = vld [vmem:[%s3716 + $0x168] sm:$0xff]
          %v3763 = vld [vmem:[%s3716 + $0x170] sm:$0xff]
          %v3764 = vld [vmem:[%s3716 + $0x178] sm:$0xff]
          %v3765 = vld [vmem:[%s3716 + $0x180] sm:$0xff]
          %v3766 = vld [vmem:[%s3716 + $0x188] sm:$0xff]
          %v3767 = vld [vmem:[%s3716 + $0x190] sm:$0xff]
          %v3768 = vld [vmem:[%s3716 + $0x198] sm:$0xff]
          %v3769 = vld [vmem:[%s3716 + $0x1a0] sm:$0xff]
          %v3770 = vld [vmem:[%s3716 + $0x1a8] sm:$0xff]
          %v3771 = vld [vmem:[%s3716 + $0x1b0] sm:$0xff]
          %v3772 = vld [vmem:[%s3716 + $0x1b8] sm:$0xff]
          %v3773 = vld [vmem:[%s3716 + $0x1c0] sm:$0xff]
          %v3774 = vld [vmem:[%s3716 + $0x1c8] sm:$0xff]
          %v3775 = vld [vmem:[%s3716 + $0x1d0] sm:$0xff]
          %v3776 = vld [vmem:[%s3716 + $0x1d8] sm:$0xff]
          %v3777 = vld [vmem:[%s3716 + $0x1e0] sm:$0xff]
          %v3778 = vld [vmem:[%s3716 + $0x1e8] sm:$0xff]
          %v3779 = vld [vmem:[%s3716 + $0x1f0] sm:$0xff]
          %v3780 = vld [vmem:[%s3716 + $0x1f8] sm:$0xff]
          %s3781 = scalar_lea.vmem %s47, %s1776
          %v3782 = vld [vmem:[%s3781] sm:$0x1]
          %v3784 = vlaneseq
          %v3785 = vshrl.u32 %v3784, 7
          %v3786 = vsub.s32 0, %v3785
          %v3787 = vrot.slane %v3782, %v3786
          %3789 = vmatprep.subr.mxu0 0.0
          %3790 = vmatpush1.msra.mxu0 %v3732
          %3791 = vmatprep.subr.mxu0 0.0
          %3792 = vmatpush1.msra.mxu0 %v3731
          %3793 = vmatprep.subr.mxu0 0.0
          %3794 = vmatpush1.msra.mxu0 %v3730
          %3795 = vmatprep.subr.mxu0 0.0
          %3796 = vmatpush1.msra.mxu0 %v3729
          %3797 = vmatprep.subr.mxu0 0.0
          %3798 = vmatpush1.msra.mxu0 %v3728
          %3799 = vmatprep.subr.mxu0 0.0
          %3800 = vmatpush1.msra.mxu0 %v3727
          %3801 = vmatprep.subr.mxu0 0.0
          %3802 = vmatpush1.msra.mxu0 %v3726
          %3803 = vmatprep.subr.mxu0 0.0
          %3804 = vmatpush1.msra.mxu0 %v3725
          %3805 = vmatprep.subr.mxu0 0.0
          %3806 = vmatpush1.msra.mxu0 %v3724
          %3807 = vmatprep.subr.mxu0 0.0
          %3808 = vmatpush1.msra.mxu0 %v3723
          %3809 = vmatprep.subr.mxu0 0.0
          %3810 = vmatpush1.msra.mxu0 %v3722
          %3811 = vmatprep.subr.mxu0 0.0
          %3812 = vmatpush1.msra.mxu0 %v3721
          %3813 = vmatprep.subr.mxu0 0.0
          %3814 = vmatpush1.msra.mxu0 %v3720
          %3815 = vmatprep.subr.mxu0 0.0
          %3816 = vmatpush1.msra.mxu0 %v3719
          %3817 = vmatprep.subr.mxu0 0.0
          %3818 = vmatpush1.msra.mxu0 %v3718
          %3819 = vmatprep.subr.mxu0 0.0
          %3820 = vmatpush1.msra.mxu0 %v3717
          %3821 = vmatprep.subr.mxu0 0.0
          %3822 = vmatpush2.msra.mxu0 %v3748
          %3823 = vmatprep.subr.mxu0 0.0
          %3824 = vmatpush2.msra.mxu0 %v3747
          %3825 = vmatprep.subr.mxu0 0.0
          %3826 = vmatpush2.msra.mxu0 %v3746
          %3827 = vmatprep.subr.mxu0 0.0
          %3828 = vmatpush2.msra.mxu0 %v3745
          %3829 = vmatprep.subr.mxu0 0.0
          %3830 = vmatpush2.msra.mxu0 %v3744
          %3831 = vmatprep.subr.mxu0 0.0
          %3832 = vmatpush2.msra.mxu0 %v3743
          %3833 = vmatprep.subr.mxu0 0.0
          %3834 = vmatpush2.msra.mxu0 %v3742
          %3835 = vmatprep.subr.mxu0 0.0
          %3836 = vmatpush2.msra.mxu0 %v3741
          %3837 = vmatprep.subr.mxu0 0.0
          %3838 = vmatpush2.msra.mxu0 %v3740
          %3839 = vmatprep.subr.mxu0 0.0
          %3840 = vmatpush2.msra.mxu0 %v3739
          %3841 = vmatprep.subr.mxu0 0.0
          %3842 = vmatpush2.msra.mxu0 %v3738
          %3843 = vmatprep.subr.mxu0 0.0
          %3844 = vmatpush2.msra.mxu0 %v3737
          %3845 = vmatprep.subr.mxu0 0.0
          %3846 = vmatpush2.msra.mxu0 %v3736
          %3847 = vmatprep.subr.mxu0 0.0
          %3848 = vmatpush2.msra.mxu0 %v3735
          %3849 = vmatprep.subr.mxu0 0.0
          %3850 = vmatpush2.msra.mxu0 %v3734
          %3851 = vmatprep.subr.mxu0 0.0
          %3852 = vmatpush2.msra.mxu0 %v3733
          %3853 = vmatprep.mubr.f32.mxu0 %v3712
          %3854 = vmatmul.mubr.f32.gmra.mxu0 %v3711
          %v3855 = vpop.f32.mrf.mxu0
          %v3856 = vadd.f32 %v3787, %v3855
          %v3857 = vpop.f32.mrf.mxu0
          %3858 = vdwg.mxu0
          %3859 = vmatprep.subr.mxu0 0.0
          %3860 = vmatpush1.msra.mxu0 %v3764
          %3861 = vmatprep.subr.mxu0 0.0
          %3862 = vmatpush1.msra.mxu0 %v3763
          %3863 = vmatprep.subr.mxu0 0.0
          %3864 = vmatpush1.msra.mxu0 %v3762
          %3865 = vmatprep.subr.mxu0 0.0
          %3866 = vmatpush1.msra.mxu0 %v3761
          %3867 = vmatprep.subr.mxu0 0.0
          %3868 = vmatpush1.msra.mxu0 %v3760
          %3869 = vmatprep.subr.mxu0 0.0
          %3870 = vmatpush1.msra.mxu0 %v3759
          %3871 = vmatprep.subr.mxu0 0.0
          %3872 = vmatpush1.msra.mxu0 %v3758
          %3873 = vmatprep.subr.mxu0 0.0
          %3874 = vmatpush1.msra.mxu0 %v3757
          %3875 = vmatprep.subr.mxu0 0.0
          %3876 = vmatpush1.msra.mxu0 %v3756
          %3877 = vmatprep.subr.mxu0 0.0
          %3878 = vmatpush1.msra.mxu0 %v3755
          %3879 = vmatprep.subr.mxu0 0.0
          %3880 = vmatpush1.msra.mxu0 %v3754
          %3881 = vmatprep.subr.mxu0 0.0
          %3882 = vmatpush1.msra.mxu0 %v3753
          %3883 = vmatprep.subr.mxu0 0.0
          %3884 = vmatpush1.msra.mxu0 %v3752
          %3885 = vmatprep.subr.mxu0 0.0
          %3886 = vmatpush1.msra.mxu0 %v3751
          %3887 = vmatprep.subr.mxu0 0.0
          %3888 = vmatpush1.msra.mxu0 %v3750
          %3889 = vmatprep.subr.mxu0 0.0
          %3890 = vmatpush1.msra.mxu0 %v3749
          %3891 = vmatprep.subr.mxu0 0.0
          %3892 = vmatpush2.msra.mxu0 %v3780
          %3893 = vmatprep.subr.mxu0 0.0
          %3894 = vmatpush2.msra.mxu0 %v3779
          %3895 = vmatprep.subr.mxu0 0.0
          %3896 = vmatpush2.msra.mxu0 %v3778
          %3897 = vmatprep.subr.mxu0 0.0
          %3898 = vmatpush2.msra.mxu0 %v3777
          %3899 = vmatprep.subr.mxu0 0.0
          %3900 = vmatpush2.msra.mxu0 %v3776
          %3901 = vmatprep.subr.mxu0 0.0
          %3902 = vmatpush2.msra.mxu0 %v3775
          %3903 = vmatprep.subr.mxu0 0.0
          %3904 = vmatpush2.msra.mxu0 %v3774
          %3905 = vmatprep.subr.mxu0 0.0
          %3906 = vmatpush2.msra.mxu0 %v3773
          %3907 = vmatprep.subr.mxu0 0.0
          %3908 = vmatpush2.msra.mxu0 %v3772
          %3909 = vmatprep.subr.mxu0 0.0
          %3910 = vmatpush2.msra.mxu0 %v3771
          %3911 = vmatprep.subr.mxu0 0.0
          %3912 = vmatpush2.msra.mxu0 %v3770
          %3913 = vmatprep.subr.mxu0 0.0
          %3914 = vmatpush2.msra.mxu0 %v3769
          %3915 = vmatprep.subr.mxu0 0.0
          %3916 = vmatpush2.msra.mxu0 %v3768
          %3917 = vmatprep.subr.mxu0 0.0
          %3918 = vmatpush2.msra.mxu0 %v3767
          %3919 = vmatprep.subr.mxu0 0.0
          %3920 = vmatpush2.msra.mxu0 %v3766
          %3921 = vmatprep.subr.mxu0 0.0
          %3922 = vmatpush2.msra.mxu0 %v3765
          %3923 = vmatprep.mubr.f32.mxu0 %v3714
          %3924 = vmatmul.mubr.f32.gmra.mxu0 %v3713
          %v3925 = vpop.f32.mrf.mxu0
          %v3926 = vadd.f32 %v3856, %v3925
          %v3927 = vpop.f32.mrf.mxu0
          %3928 = vdwg.mxu0
          %v3929 = vadd.f32 %v3477, %v3926
          %s3930 = scalar_lea.vmem %s49, %s1776
          %v3931 = vld [vmem:[%s3930] sm:$0x1]
          %s3932 = scalar_lea.vmem %s51, %s1776
          %v3933 = vld [vmem:[%s3932] sm:$0x1]
          %3934 = vadd.xlane.f32.xlu0 %v3929
          %v3935 = vpop.xlane.xlu0 %3934
          %v3936 = vmul.f32 %v3935, %v1482
          %v3937 = vsub.f32 %v3929, %v3936
          %v3938 = vmul.f32 %v3937, %v3937
          %3939 = vadd.xlane.f32.xlu0 %v3938
          %v3940 = vpop.xlane.xlu0 %3939
          %v3941 = vmul.f32 %v3940, %v1482
          %v3942 = vadd.f32 %v3941, 1e-05
          %v3943 = vrsqrt.pop %v3942
          %v3944 = vmul.f32 %v3937, %v3943
          %v3946 = vlaneseq
          %v3947 = vshrl.u32 %v3946, 7
          %v3948 = vsub.s32 0, %v3947
          %v3949 = vrot.slane %v3931, %v3948
          %v3951 = vmul.f32 %v3944, %v3949
          %v3953 = vlaneseq
          %v3954 = vshrl.u32 %v3953, 7
          %v3955 = vsub.s32 0, %v3954
          %v3956 = vrot.slane %v3933, %v3955
          %v3958 = vadd.f32 %v3951, %v3956
        $region257: #{tpu_custom_call.1} parent=163 // loop_footer
          %s1780 = sadd.s32 1, %s1776
        $region258: #{tpu_custom_call.1} parent=163 // loop_footer_branch
          %1775 = sbr.rel target = $region254
        $region259: #{tpu_custom_call.1} parent=163 // loop_exit
          _
        %v3959 = vrot.slane %v1781, 4
        %v3960 = vadd.f32 %v1781, %v3959
        %v3961 = vrot.slane %v3960, 2
        %v3962 = vadd.f32 %v3960, %v3961
        %v3963 = vrot.slane %v3962, 1
        %v3964 = vadd.f32 %v3962, %v3963
        %v3965 = vmul.f32 %v3964, %v1512
        %v3966 = vmul.f32 %v1781, 0.5
        %v3967 = vadd.f32 %v3965, %v3966
        %v3968 = vld [vmem:[#allocation31] sm:$0xff]
        %v3969 = vld [vmem:[#allocation31 + $0x8] sm:$0xff]
        %v3970 = vld [vmem:[#allocation31 + $0x10] sm:$0xff]
        %v3971 = vld [vmem:[#allocation31 + $0x18] sm:$0xff]
        %v3972 = vld [vmem:[#allocation31 + $0x20] sm:$0xff]
        %v3973 = vld [vmem:[#allocation31 + $0x28] sm:$0xff]
        %v3974 = vld [vmem:[#allocation31 + $0x30] sm:$0xff]
        %v3975 = vld [vmem:[#allocation31 + $0x38] sm:$0xff]
        %v3976 = vld [vmem:[#allocation31 + $0x40] sm:$0xff]
        %v3977 = vld [vmem:[#allocation31 + $0x48] sm:$0xff]
        %v3978 = vld [vmem:[#allocation31 + $0x50] sm:$0xff]
        %v3979 = vld [vmem:[#allocation31 + $0x58] sm:$0xff]
        %v3980 = vld [vmem:[#allocation31 + $0x60] sm:$0xff]
        %v3981 = vld [vmem:[#allocation31 + $0x68] sm:$0xff]
        %v3982 = vld [vmem:[#allocation31 + $0x70] sm:$0xff]
        %v3983 = vld [vmem:[#allocation31 + $0x78] sm:$0xff]
        %v3984 = vld [vmem:[#allocation31 + $0x80] sm:$0xff]
        %v3985 = vld [vmem:[#allocation31 + $0x88] sm:$0xff]
        %v3986 = vld [vmem:[#allocation31 + $0x90] sm:$0xff]
        %v3987 = vld [vmem:[#allocation31 + $0x98] sm:$0xff]
        %v3988 = vld [vmem:[#allocation31 + $0xa0] sm:$0xff]
        %v3989 = vld [vmem:[#allocation31 + $0xa8] sm:$0xff]
        %v3990 = vld [vmem:[#allocation31 + $0xb0] sm:$0xff]
        %v3991 = vld [vmem:[#allocation31 + $0xb8] sm:$0xff]
        %v3992 = vld [vmem:[#allocation31 + $0xc0] sm:$0xff]
        %v3993 = vld [vmem:[#allocation31 + $0xc8] sm:$0xff]
        %v3994 = vld [vmem:[#allocation31 + $0xd0] sm:$0xff]
        %v3995 = vld [vmem:[#allocation31 + $0xd8] sm:$0xff]
        %v3996 = vld [vmem:[#allocation31 + $0xe0] sm:$0xff]
        %v3997 = vld [vmem:[#allocation31 + $0xe8] sm:$0xff]
        %v3998 = vld [vmem:[#allocation31 + $0xf0] sm:$0xff]
        %v3999 = vld [vmem:[#allocation31 + $0xf8] sm:$0xff]
        %v4000 = vld [vmem:[#allocation32] sm:$0x3]
        %v4002 = vrot.slane %v3967, 7
        %v4005 = vlaneseq
        %v4006 = vshrl.u32 %v4005, 7
        %v4007 = vsub.s32 0, %v4006
        %v4008 = vrot.slane %v4000, %v4007
        %v4009 = vlaneseq
        %v4010 = vshrl.u32 %v4009, 7
        %v4011 = vsub.s32 1, %v4010
        %v4012 = vrot.slane %v4000, %v4011
        %4015 = vmatprep.subr.mxu0 %v3999
        %4016 = vmatpush1.msra.mxu0 %v3998
        %4017 = vmatprep.subr.mxu0 %v3997
        %4018 = vmatpush1.msra.mxu0 %v3996
        %4019 = vmatprep.subr.mxu0 %v3995
        %4020 = vmatpush1.msra.mxu0 %v3994
        %4021 = vmatprep.subr.mxu0 %v3993
        %4022 = vmatpush1.msra.mxu0 %v3992
        %4023 = vmatprep.subr.mxu0 %v3991
        %4024 = vmatpush1.msra.mxu0 %v3990
        %4025 = vmatprep.subr.mxu0 %v3989
        %4026 = vmatpush1.msra.mxu0 %v3988
        %4027 = vmatprep.subr.mxu0 %v3987
        %4028 = vmatpush1.msra.mxu0 %v3986
        %4029 = vmatprep.subr.mxu0 %v3985
        %4030 = vmatpush1.msra.mxu0 %v3984
        %4031 = vmatprep.subr.mxu0 %v3983
        %4032 = vmatpush1.msra.mxu0 %v3982
        %4033 = vmatprep.subr.mxu0 %v3981
        %4034 = vmatpush1.msra.mxu0 %v3980
        %4035 = vmatprep.subr.mxu0 %v3979
        %4036 = vmatpush1.msra.mxu0 %v3978
        %4037 = vmatprep.subr.mxu0 %v3977
        %4038 = vmatpush1.msra.mxu0 %v3976
        %4039 = vmatprep.subr.mxu0 %v3975
        %4040 = vmatpush1.msra.mxu0 %v3974
        %4041 = vmatprep.subr.mxu0 %v3973
        %4042 = vmatpush1.msra.mxu0 %v3972
        %4043 = vmatprep.subr.mxu0 %v3971
        %4044 = vmatpush1.msra.mxu0 %v3970
        %4045 = vmatprep.subr.mxu0 %v3969
        %4046 = vmatpush1.msra.mxu0 %v3968
        %4047 = vmatprep.subr.mxu0 0.0
        %4048 = vmatpush2.msra.mxu0 0.0
        %4049 = vmatprep.subr.mxu0 0.0
        %4050 = vmatpush2.msra.mxu0 0.0
        %4051 = vmatprep.subr.mxu0 0.0
        %4052 = vmatpush2.msra.mxu0 0.0
        %4053 = vmatprep.subr.mxu0 0.0
        %4054 = vmatpush2.msra.mxu0 0.0
        %4055 = vmatprep.subr.mxu0 0.0
        %4056 = vmatpush2.msra.mxu0 0.0
        %4057 = vmatprep.subr.mxu0 0.0
        %4058 = vmatpush2.msra.mxu0 0.0
        %4059 = vmatprep.subr.mxu0 0.0
        %4060 = vmatpush2.msra.mxu0 0.0
        %4061 = vmatprep.subr.mxu0 0.0
        %4062 = vmatpush2.msra.mxu0 0.0
        %4063 = vmatprep.subr.mxu0 0.0
        %4064 = vmatpush2.msra.mxu0 0.0
        %4065 = vmatprep.subr.mxu0 0.0
        %4066 = vmatpush2.msra.mxu0 0.0
        %4067 = vmatprep.subr.mxu0 0.0
        %4068 = vmatpush2.msra.mxu0 0.0
        %4069 = vmatprep.subr.mxu0 0.0
        %4070 = vmatpush2.msra.mxu0 0.0
        %4071 = vmatprep.subr.mxu0 0.0
        %4072 = vmatpush2.msra.mxu0 0.0
        %4073 = vmatprep.subr.mxu0 0.0
        %4074 = vmatpush2.msra.mxu0 0.0
        %4075 = vmatprep.subr.mxu0 0.0
        %4076 = vmatpush2.msra.mxu0 0.0
        %4077 = vmatprep.subr.mxu0 0.0
        %4078 = vmatpush2.msra.mxu0 0.0
        %4079 = vmatprep.mubr.f32.mxu0 0.0
        %4080 = vmatmul.mubr.f32.gmra.mxu0 %v4002
        %v4081 = vpop.f32.mrf.mxu0
        %v4082 = vadd.f32 %v4008, %v4081
        %v4083 = vpop.f32.mrf.mxu0
        %v4084 = vadd.f32 %v4012, %v4083
        %4085 = vdwg.mxu0
        %v4086 = vld [vmem:[%s57] sm:$0x3]
        %v4087 = vld [vmem:[#allocation34] sm:$0x3]
        %v4088 = vsel %vm1603, %v4082, 0.0
        %v4089 = vsel %vm1603, %v4084, 0.0
        %v4090 = vadd.f32 %v4088, %v4089
        %4091 = vadd.xlane.f32.xlu0 %v4090
        %v4092 = vpop.xlane.xlu0 %4091
        %v4093 = vrcp.pop 256.0
        %v4094 = vmul.f32 %v4092, %v4093
        %v4095 = vsub.f32 %v4082, %v4094
        %v4096 = vsub.f32 %v4084, %v4094
        %v4097 = vmul.f32 %v4095, %v4095
        %v4098 = vmul.f32 %v4096, %v4096
        %v4099 = vsel %vm1603, %v4097, 0.0
        %v4100 = vsel %vm1603, %v4098, 0.0
        %v4101 = vadd.f32 %v4099, %v4100
        %4102 = vadd.xlane.f32.xlu0 %v4101
        %v4103 = vpop.xlane.xlu0 %4102
        %v4104 = vmul.f32 %v4103, %v4093
        %v4105 = vadd.f32 %v4104, 1e-05
        %v4106 = vrsqrt.pop %v4105
        %v4107 = vmul.f32 %v4095, %v4106
        %v4108 = vmul.f32 %v4096, %v4106
        %v4110 = vlaneseq
        %v4111 = vshrl.u32 %v4110, 7
        %v4112 = vsub.s32 0, %v4111
        %v4113 = vrot.slane %v4086, %v4112
        %v4114 = vlaneseq
        %v4115 = vshrl.u32 %v4114, 7
        %v4116 = vsub.s32 1, %v4115
        %v4117 = vrot.slane %v4086, %v4116
        %v4120 = vmul.f32 %v4107, %v4113
        %v4121 = vmul.f32 %v4108, %v4117
        %v4123 = vlaneseq
        %v4124 = vshrl.u32 %v4123, 7
        %v4125 = vsub.s32 0, %v4124
        %v4126 = vrot.slane %v4087, %v4125
        %v4127 = vlaneseq
        %v4128 = vshrl.u32 %v4127, 7
        %v4129 = vsub.s32 1, %v4128
        %v4130 = vrot.slane %v4087, %v4129
        %v4133 = vadd.f32 %v4120, %v4126
        %v4134 = vadd.f32 %v4121, %v4130
        %v4135 = vmax.f32 %v4133, 0.0
        %v4136 = vmax.f32 %v4134, 0.0
        %v4137 = vld [vmem:[#allocation35] sm:$0xff]
        %v4138 = vld [vmem:[#allocation35 + $0x8] sm:$0xff]
        %v4139 = vld [vmem:[#allocation35 + $0x10] sm:$0xff]
        %v4140 = vld [vmem:[#allocation35 + $0x18] sm:$0xff]
        %v4141 = vld [vmem:[#allocation35 + $0x20] sm:$0xff]
        %v4142 = vld [vmem:[#allocation35 + $0x28] sm:$0xff]
        %v4143 = vld [vmem:[#allocation35 + $0x30] sm:$0xff]
        %v4144 = vld [vmem:[#allocation35 + $0x38] sm:$0xff]
        %v4145 = vld [vmem:[#allocation35 + $0x40] sm:$0xff]
        %v4146 = vld [vmem:[#allocation35 + $0x48] sm:$0xff]
        %v4147 = vld [vmem:[#allocation35 + $0x50] sm:$0xff]
        %v4148 = vld [vmem:[#allocation35 + $0x58] sm:$0xff]
        %v4149 = vld [vmem:[#allocation35 + $0x60] sm:$0xff]
        %v4150 = vld [vmem:[#allocation35 + $0x68] sm:$0xff]
        %v4151 = vld [vmem:[#allocation35 + $0x70] sm:$0xff]
        %v4152 = vld [vmem:[#allocation35 + $0x78] sm:$0xff]
        %v4153 = vld [vmem:[#allocation35 + $0x80] sm:$0xff]
        %v4154 = vld [vmem:[#allocation35 + $0x88] sm:$0xff]
        %v4155 = vld [vmem:[#allocation35 + $0x90] sm:$0xff]
        %v4156 = vld [vmem:[#allocation35 + $0x98] sm:$0xff]
        %v4157 = vld [vmem:[#allocation35 + $0xa0] sm:$0xff]
        %v4158 = vld [vmem:[#allocation35 + $0xa8] sm:$0xff]
        %v4159 = vld [vmem:[#allocation35 + $0xb0] sm:$0xff]
        %v4160 = vld [vmem:[#allocation35 + $0xb8] sm:$0xff]
        %v4161 = vld [vmem:[#allocation35 + $0xc0] sm:$0xff]
        %v4162 = vld [vmem:[#allocation35 + $0xc8] sm:$0xff]
        %v4163 = vld [vmem:[#allocation35 + $0xd0] sm:$0xff]
        %v4164 = vld [vmem:[#allocation35 + $0xd8] sm:$0xff]
        %v4165 = vld [vmem:[#allocation35 + $0xe0] sm:$0xff]
        %v4166 = vld [vmem:[#allocation35 + $0xe8] sm:$0xff]
        %v4167 = vld [vmem:[#allocation35 + $0xf0] sm:$0xff]
        %v4168 = vld [vmem:[#allocation35 + $0xf8] sm:$0xff]
        %v4169 = vld [vmem:[%s63] sm:$0x1]
        %4170 = vmatprep.subr.mxu0 0.0
        %4171 = vmatpush1.msra.mxu0 %v4152
        %4172 = vmatprep.subr.mxu0 0.0
        %4173 = vmatpush1.msra.mxu0 %v4151
        %4174 = vmatprep.subr.mxu0 0.0
        %4175 = vmatpush1.msra.mxu0 %v4150
        %4176 = vmatprep.subr.mxu0 0.0
        %4177 = vmatpush1.msra.mxu0 %v4149
        %4178 = vmatprep.subr.mxu0 0.0
        %4179 = vmatpush1.msra.mxu0 %v4148
        %4180 = vmatprep.subr.mxu0 0.0
        %4181 = vmatpush1.msra.mxu0 %v4147
        %4182 = vmatprep.subr.mxu0 0.0
        %4183 = vmatpush1.msra.mxu0 %v4146
        %4184 = vmatprep.subr.mxu0 0.0
        %4185 = vmatpush1.msra.mxu0 %v4145
        %4186 = vmatprep.subr.mxu0 0.0
        %4187 = vmatpush1.msra.mxu0 %v4144
        %4188 = vmatprep.subr.mxu0 0.0
        %4189 = vmatpush1.msra.mxu0 %v4143
        %4190 = vmatprep.subr.mxu0 0.0
        %4191 = vmatpush1.msra.mxu0 %v4142
        %4192 = vmatprep.subr.mxu0 0.0
        %4193 = vmatpush1.msra.mxu0 %v4141
        %4194 = vmatprep.subr.mxu0 0.0
        %4195 = vmatpush1.msra.mxu0 %v4140
        %4196 = vmatprep.subr.mxu0 0.0
        %4197 = vmatpush1.msra.mxu0 %v4139
        %4198 = vmatprep.subr.mxu0 0.0
        %4199 = vmatpush1.msra.mxu0 %v4138
        %4200 = vmatprep.subr.mxu0 0.0
        %4201 = vmatpush1.msra.mxu0 %v4137
        %4202 = vmatprep.subr.mxu0 0.0
        %4203 = vmatpush2.msra.mxu0 %v4168
        %4204 = vmatprep.subr.mxu0 0.0
        %4205 = vmatpush2.msra.mxu0 %v4167
        %4206 = vmatprep.subr.mxu0 0.0
        %4207 = vmatpush2.msra.mxu0 %v4166
        %4208 = vmatprep.subr.mxu0 0.0
        %4209 = vmatpush2.msra.mxu0 %v4165
        %4210 = vmatprep.subr.mxu0 0.0
        %4211 = vmatpush2.msra.mxu0 %v4164
        %4212 = vmatprep.subr.mxu0 0.0
        %4213 = vmatpush2.msra.mxu0 %v4163
        %4214 = vmatprep.subr.mxu0 0.0
        %4215 = vmatpush2.msra.mxu0 %v4162
        %4216 = vmatprep.subr.mxu0 0.0
        %4217 = vmatpush2.msra.mxu0 %v4161
        %4218 = vmatprep.subr.mxu0 0.0
        %4219 = vmatpush2.msra.mxu0 %v4160
        %4220 = vmatprep.subr.mxu0 0.0
        %4221 = vmatpush2.msra.mxu0 %v4159
        %4222 = vmatprep.subr.mxu0 0.0
        %4223 = vmatpush2.msra.mxu0 %v4158
        %4224 = vmatprep.subr.mxu0 0.0
        %4225 = vmatpush2.msra.mxu0 %v4157
        %4226 = vmatprep.subr.mxu0 0.0
        %4227 = vmatpush2.msra.mxu0 %v4156
        %4228 = vmatprep.subr.mxu0 0.0
        %4229 = vmatpush2.msra.mxu0 %v4155
        %4230 = vmatprep.subr.mxu0 0.0
        %4231 = vmatpush2.msra.mxu0 %v4154
        %4232 = vmatprep.subr.mxu0 0.0
        %4233 = vmatpush2.msra.mxu0 %v4153
        %4234 = vmatprep.mubr.f32.mxu0 %v4136
        %4235 = vmatmul.mubr.f32.gmra.mxu0 %v4135
        %v4236 = vpop.f32.mrf.mxu0
        %v4237 = vadd.f32 %v4169, %v4236
        %v4238 = vpop.f32.mrf.mxu0
        %4239 = vdwg.mxu0
        %v4240 = vld [vmem:[%s65] sm:$0x1]
        %v4241 = vld [vmem:[%s67] sm:$0x1]
        %v4242 = vsel %vm1603, %v4237, 0.0
        %4243 = vadd.xlane.f32.xlu0 %v4242
        %v4244 = vpop.xlane.xlu0 %4243
        %v4245 = vmul.f32 %v4244, %v1482
        %v4246 = vsub.f32 %v4237, %v4245
        %v4247 = vmul.f32 %v4246, %v4246
        %v4248 = vsel %vm1603, %v4247, 0.0
        %4249 = vadd.xlane.f32.xlu0 %v4248
        %v4250 = vpop.xlane.xlu0 %4249
        %v4251 = vmul.f32 %v4250, %v1482
        %v4252 = vadd.f32 %v4251, 1e-05
        %v4253 = vrsqrt.pop %v4252
        %v4254 = vmul.f32 %v4246, %v4253
        %v4255 = vmul.f32 %v4254, %v4240
        %v4256 = vadd.f32 %v4255, %v4241
        %v4257 = vmax.f32 %v4256, 0.0
        %v4258 = vld [vmem:[%s69] sm:$0xff]
        %v4259 = vld [vmem:[%s69 + $0x8] sm:$0xff]
        %v4260 = vld [vmem:[%s69 + $0x10] sm:$0xff]
        %v4261 = vld [vmem:[%s69 + $0x18] sm:$0xff]
        %v4262 = vld [vmem:[%s69 + $0x20] sm:$0xff]
        %v4263 = vld [vmem:[%s69 + $0x28] sm:$0xff]
        %v4264 = vld [vmem:[%s69 + $0x30] sm:$0xff]
        %v4265 = vld [vmem:[%s69 + $0x38] sm:$0xff]
        %v4266 = vld [vmem:[%s69 + $0x40] sm:$0xff]
        %v4267 = vld [vmem:[%s69 + $0x48] sm:$0xff]
        %v4268 = vld [vmem:[%s69 + $0x50] sm:$0xff]
        %v4269 = vld [vmem:[%s69 + $0x58] sm:$0xff]
        %v4270 = vld [vmem:[%s69 + $0x60] sm:$0xff]
        %v4271 = vld [vmem:[%s69 + $0x68] sm:$0xff]
        %v4272 = vld [vmem:[%s69 + $0x70] sm:$0xff]
        %v4273 = vld [vmem:[%s69 + $0x78] sm:$0xff]
        %v4274 = vld [vmem:[%s71] sm:$0x1]
        %4275 = vmatprep.subr.mxu0 0.0
        %4276 = vmatpush1.msra.mxu0 %v4273
        %4277 = vmatprep.subr.mxu0 0.0
        %4278 = vmatpush1.msra.mxu0 %v4272
        %4279 = vmatprep.subr.mxu0 0.0
        %4280 = vmatpush1.msra.mxu0 %v4271
        %4281 = vmatprep.subr.mxu0 0.0
        %4282 = vmatpush1.msra.mxu0 %v4270
        %4283 = vmatprep.subr.mxu0 0.0
        %4284 = vmatpush1.msra.mxu0 %v4269
        %4285 = vmatprep.subr.mxu0 0.0
        %4286 = vmatpush1.msra.mxu0 %v4268
        %4287 = vmatprep.subr.mxu0 0.0
        %4288 = vmatpush1.msra.mxu0 %v4267
        %4289 = vmatprep.subr.mxu0 0.0
        %4290 = vmatpush1.msra.mxu0 %v4266
        %4291 = vmatprep.subr.mxu0 0.0
        %4292 = vmatpush1.msra.mxu0 %v4265
        %4293 = vmatprep.subr.mxu0 0.0
        %4294 = vmatpush1.msra.mxu0 %v4264
        %4295 = vmatprep.subr.mxu0 0.0
        %4296 = vmatpush1.msra.mxu0 %v4263
        %4297 = vmatprep.subr.mxu0 0.0
        %4298 = vmatpush1.msra.mxu0 %v4262
        %4299 = vmatprep.subr.mxu0 0.0
        %4300 = vmatpush1.msra.mxu0 %v4261
        %4301 = vmatprep.subr.mxu0 0.0
        %4302 = vmatpush1.msra.mxu0 %v4260
        %4303 = vmatprep.subr.mxu0 0.0
        %4304 = vmatpush1.msra.mxu0 %v4259
        %4305 = vmatprep.subr.mxu0 0.0
        %4306 = vmatpush1.msra.mxu0 %v4258
        %4307 = vmatprep.subr.mxu0 0.0
        %4308 = vmatpush2.msra.mxu0 0.0
        %4309 = vmatprep.subr.mxu0 0.0
        %4310 = vmatpush2.msra.mxu0 0.0
        %4311 = vmatprep.subr.mxu0 0.0
        %4312 = vmatpush2.msra.mxu0 0.0
        %4313 = vmatprep.subr.mxu0 0.0
        %4314 = vmatpush2.msra.mxu0 0.0
        %4315 = vmatprep.subr.mxu0 0.0
        %4316 = vmatpush2.msra.mxu0 0.0
        %4317 = vmatprep.subr.mxu0 0.0
        %4318 = vmatpush2.msra.mxu0 0.0
        %4319 = vmatprep.subr.mxu0 0.0
        %4320 = vmatpush2.msra.mxu0 0.0
        %4321 = vmatprep.subr.mxu0 0.0
        %4322 = vmatpush2.msra.mxu0 0.0
        %4323 = vmatprep.subr.mxu0 0.0
        %4324 = vmatpush2.msra.mxu0 0.0
        %4325 = vmatprep.subr.mxu0 0.0
        %4326 = vmatpush2.msra.mxu0 0.0
        %4327 = vmatprep.subr.mxu0 0.0
        %4328 = vmatpush2.msra.mxu0 0.0
        %4329 = vmatprep.subr.mxu0 0.0
        %4330 = vmatpush2.msra.mxu0 0.0
        %4331 = vmatprep.subr.mxu0 0.0
        %4332 = vmatpush2.msra.mxu0 0.0
        %4333 = vmatprep.subr.mxu0 0.0
        %4334 = vmatpush2.msra.mxu0 0.0
        %4335 = vmatprep.subr.mxu0 0.0
        %4336 = vmatpush2.msra.mxu0 0.0
        %4337 = vmatprep.subr.mxu0 0.0
        %4338 = vmatpush2.msra.mxu0 0.0
        %4339 = vmatprep.mubr.f32.mxu0 0.0
        %4340 = vmatmul.mubr.f32.gmra.mxu0 %v4257
        %v4341 = vpop.f32.mrf.mxu0
        %v4342 = vadd.f32 %v4274, %v4341
        %v4343 = vpop.f32.mrf.mxu0
        %4344 = vdwg.mxu0
        %vm4345 = vcmask 16384
        %4346 = vst.msk [vmem:[%s1393] sm:$0x1] %vm4345, %v4342
        %s4347 = sand.u32 %s870, 1
        %s4348 = scalar_lea.sflag [#allocation4], %s4347
        %s4349 = sand.u32 %s870, 1
        %s4350 = scalar_lea.vmem [#allocation37], %s4349
        // Predicated region
        $region260: #{tpu_custom_call.1} parent=163 // pred_check
          %p4351 = pneg %p880
        $region261: #{tpu_custom_call.1} parent=163 // pred_check_branch
          %4353 = sbr.rel (%p4351) target = $region263
        $region262: #{tpu_custom_call.1} parent=163 // pred_region
          %s4355 = ssub.s32 16, 16
          %4356 = vsyncadd %s4348, %s4355
          %s4357 = smul.addr %s101, 16
          %s4358 = scalar_lea.hbm %s73, %s4357
          %s4360 = sshll.u32 %s4350, 4
          %s4361 = int_to_ptr.vmem [resolvable:$true] %s4360
          %4363 = dma.vmem_to_hbm [thread:$0]  %s4361, 16, %s4358, %s4348
        $region263: #{tpu_custom_call.1} parent=163 // pred_fallthru
          _
      $region164: #{tpu_custom_call.1} parent=5 // pred_fallthru
        _
      %p4364 = scmp.le.s32.totalorder 2, %s96
      // Predicated region
      $region264: #{tpu_custom_call.1} parent=5 // pred_check
        %p4365 = pneg %p4364
      $region265: #{tpu_custom_call.1} parent=5 // pred_check_branch
        %4367 = sbr.rel (%p4365) target = $region267
      $region266: #{tpu_custom_call.1} parent=5 // pred_region
        %s4368 = ssub.s32 %s96, 2
        // Predicated region
        $region268: #{tpu_custom_call.1} parent=266 // pred_check
          %p4369 = pneg %p886
        $region269: #{tpu_custom_call.1} parent=266 // pred_check_branch
          %4371 = sbr.rel (%p4369) target = $region271
        $region270: #{tpu_custom_call.1} parent=266 // pred_region
          %s4372 = sand.u32 %s871, 1
          %s4373 = scalar_lea.sflag [#allocation4], %s4372
          %s4374 = sand.u32 %s871, 1
          %s4375 = scalar_lea.vmem [#allocation37], %s4374
          %4376 = dma.done %s4373, 16
        $region271: #{tpu_custom_call.1} parent=266 // pred_fallthru
          _
      $region267: #{tpu_custom_call.1} parent=5 // pred_fallthru
        _
    $region6: #{tpu_custom_call.1} parent=1 // loop_footer
      %s100 = sadd.s32 1, %s96
    $region7: #{tpu_custom_call.1} parent=1 // loop_footer_branch
      %95 = sbr.rel target = $region3
    $region8: #{tpu_custom_call.1} parent=1 // loop_exit
      _
    %4377 = vsyncpa [#allocation3], 1
    %s4378 = scalar_lea.sflag [#allocation3], 1
    %4379 = vsyncpa %s4378, 1
    %4380 = vsyncpa [#allocation6], 1
    %4381 = vsyncpa [#allocation9], 1
    %4382 = vsyncpa [#allocation12], 1
    %4383 = vsyncpa [#allocation15], 1
    %4384 = vsyncpa [#allocation18], 1
    %4385 = vsyncpa [#allocation21], 1
    %4386 = vsyncpa [#allocation24], 1
    %4387 = vsyncpa [#allocation27], 1
    %4388 = vsyncpa [#allocation30], 1
    %4389 = vsyncpa [#allocation33], 1
    %4390 = vsyncpa [#allocation36], 1
    %4391 = vsyncpa [#allocation4], 1
    %s4392 = scalar_lea.sflag [#allocation4], 1
    %4393 = vsyncpa %s4392, 1

</llo_original>
